<compile_context>
chip_gen: v7x
topology: tpu7x:2x2x1
jax: 0.10.0
libtpu: 0.0.40
codegen_flags: <defaults>
</compile_context>

<pallas_src>
import functools
import math

import jax
import jax.numpy as jnp
from jax.experimental import pallas as pl
from jax.experimental.pallas import tpu as pltpu


# ------------------------------------------------------------------
# In-kernel building blocks
# ------------------------------------------------------------------

def _layernorm(x, eps=1e-5):
    # LayerNorm(dim_V, elementwise_affine=False): normalize over the last dim.
    mu = jnp.mean(x, axis=-1, keepdims=True)
    var = jnp.mean((x - mu) ** 2, axis=-1, keepdims=True)
    return (x - mu) * jax.lax.rsqrt(var + eps)


def _multihead_attention(q, k, v, *, num_heads):
    """Per head: O_h = Q_h + softmax(Q_h K_h^T) V_h, heads concatenated on lanes.

    q, k, v: (Bt, Nq/Nk, dim_V).  The 1/sqrt(dim_V) scale is pre-folded into
    the K projection (weight side), so no per-score multiply is needed here and
    the residual still adds the UNscaled Q_h (matches the PyTorch MAB)."""
    dim_V = q.shape[-1]
    ds = dim_V // num_heads
    outs = []
    for h in range(num_heads):                     # static unroll over heads
        qh = q[:, :, h * ds:(h + 1) * ds]
        kh = k[:, :, h * ds:(h + 1) * ds]
        vh = v[:, :, h * ds:(h + 1) * ds]
        s = jnp.einsum('bqd,bkd->bqk', qh, kh, preferred_element_type=jnp.float32)
        s = s - jnp.max(s, axis=-1, keepdims=True)
        p = jnp.exp(s)
        # NOTE: approx reciprocal (EUP) -> ~1e-3 rel. error in the softmax
        # denominator; switch to exact division if bit-level parity matters.
        a = p * pl.reciprocal(jnp.sum(p, axis=-1, keepdims=True), approx=True)
        outs.append(qh + jnp.einsum('bqk,bkd->bqd', a, vh,
                                    preferred_element_type=jnp.float32))
    return jnp.concatenate(outs, axis=-1)          # (Bt, Nq, dim_V)


def _mab_post(o, wo, bo, *, ln):
    """ln0 -> residual sigmoid(fc_o(.)) -> ln1, all row-wise (2-D rows)."""
    if ln:
        o = _layernorm(o)
    o = o + jax.nn.sigmoid(jnp.dot(o, wo, preferred_element_type=jnp.float32) + bo)
    if ln:
        o = _layernorm(o)
    return o


# ------------------------------------------------------------------
# Fused Pallas kernel (one grid step = Bt batch elements)
# ------------------------------------------------------------------

def _quan2_fused_kernel(x_ref, wcomb_ref, bcomb_ref,
                        wsab_o_ref, bsab_o_ref,
                        qpma_ref, wpma_kv_ref, bpma_kv_ref,
                        wpma_o_ref, bpma_o_ref,
                        wdec_ref, bdec_ref,
                        o_ref, *, num_heads, dim_V, ln):
    Bt, S, NrNc = x_ref.shape

    # --- conv + BN + NCHW flatten + fused SAB Q|K|V projection: ONE matmul ---
    x2 = x_ref[...].reshape(Bt * S, NrNc)                          # (Bt*S, Nr*Nc)
    qkv2 = jnp.dot(x2, wcomb_ref[...],
                   preferred_element_type=jnp.float32) + bcomb_ref[...]
    qkv = qkv2.reshape(Bt, S, 3 * dim_V)

    # --- encoder: SAB followed by sigmoid  (X = sig(enc(X))) ------------------
    attn = _multihead_attention(qkv[:, :, :dim_V],
                                qkv[:, :, dim_V:2 * dim_V],
                                qkv[:, :, 2 * dim_V:],
                                num_heads=num_heads)               # (Bt, S, dim_V)
    enc2 = _mab_post(attn.reshape(Bt * S, dim_V),
                     wsab_o_ref[...], bsab_o_ref[...], ln=ln)
    enc2 = jax.nn.sigmoid(enc2)                                    # (Bt*S, dim_V)

    # --- decoder: PMA, seed 0 only ---------------------------------------------
    # The module returns dec(X)[:, 0]; fc_o / LayerNorms / Linear are row-wise
    # and each seed's attention row is independent, so seed 0 is exact alone.
    kv2 = jnp.dot(enc2, wpma_kv_ref[...],
                  preferred_element_type=jnp.float32) + bpma_kv_ref[...]
    kv = kv2.reshape(Bt, S, 2 * dim_V)
    qp = jnp.broadcast_to(qpma_ref[...].reshape(1, 1, dim_V), (Bt, 1, dim_V))
    attn_p = _multihead_attention(qp, kv[:, :, :dim_V], kv[:, :, dim_V:],
                                  num_heads=num_heads)             # (Bt, 1, dim_V)
    pma2 = _mab_post(attn_p.reshape(Bt, dim_V),
                     wpma_o_ref[...], bpma_o_ref[...], ln=ln)      # (Bt, dim_V)

    # --- final Linear + Sigmoid, lane-padded to a dense 128-wide store --------
    out = jax.nn.sigmoid(
        jnp.dot(pma2, wdec_ref[...], preferred_element_type=jnp.float32)
        + bdec_ref[...])                                           # (Bt, OUT_PAD)
    o_ref[0] = out.astype(o_ref.dtype)


# ------------------------------------------------------------------
# Wrapper: one fused pallas_call, Bt batch elements per grid step
# ------------------------------------------------------------------

def _pick_bt(B, S, *, min_grid_steps=2):
    """Largest Bt dividing B with Bt*S ~<= 128 sublanes, keeping >= 2 grid
    steps when possible (so both v7x TensorCores get work)."""
    cap = max(1, 128 // max(S, 1))
    if B >= min_grid_steps:
        cap = min(cap, B // min_grid_steps)
    cap = max(min(cap, B), 1)
    for bt in range(cap, 0, -1):
        if B % bt == 0:
            return bt
    return 1


def quan2_forward(X, fused, *, num_heads, dim_output, ln=True):
    """X: (B, set_size, Nr, Nc) float32 -> (B, dim_output)."""
    B, S, Nr, Nc = X.shape
    dim_V = fused["w_sab_o"].shape[0]
    out_pad = fused["w_dec_pad"].shape[1]

    Bt = _pick_bt(B, S)
    G = B // Bt

    x_flat = X.reshape(B, S, Nr * Nc)          # raw pixels go straight in

    weight_order = ("w_comb", "b_comb", "w_sab_o", "b_sab_o",
                    "q_pma0", "w_pma_kv", "b_pma_kv", "w_pma_o", "b_pma_o",
                    "w_dec_pad", "b_dec_pad")
    weights = [fused[k] for k in weight_order]

    kernel = functools.partial(_quan2_fused_kernel, num_heads=num_heads,
                               dim_V=dim_V, ln=ln)

    in_specs = [pl.BlockSpec((Bt, S, Nr * Nc), lambda g: (g, 0, 0))]
    # All weights are small 2-D constants: full-shape resident VMEM blocks.
    # (pipeline_mode=pl.Buffered(1) would drop their unused second buffer; at
    #  tens of KiB total it is left at the default for robustness.)
    in_specs += [pl.BlockSpec(a.shape, lambda g: (0, 0)) for a in weights]

    # Advisory cost estimate for the XLA scheduler (per batch element).
    flops_e = (2 * S * (Nr * Nc) * 3 * dim_V      # fused conv/BN/QKV projection
               + 4 * S * S * dim_V                # SAB attention (all heads)
               + 2 * S * dim_V * dim_V            # SAB fc_o
               + 4 * S * dim_V * dim_V            # PMA K|V projection
               + 4 * S * dim_V                    # PMA attention (1 query row)
               + 2 * dim_V * dim_V                # PMA fc_o
               + 2 * dim_V * out_pad)             # decoder
    trans_e = num_heads * S * (S + 1) + 2 * S * dim_V + dim_V + out_pad
    nbytes = (int(x_flat.size) * 4 + sum(int(a.size) * 4 for a in weights)
              + G * Bt * out_pad * 4)
    cost = pl.CostEstimate(flops=int(B * flops_e),
                           transcendentals=int(B * trans_e),
                           bytes_accessed=int(nbytes))

    out = pl.pallas_call(
        kernel,
        grid=(G,),
        in_specs=in_specs,
        out_specs=pl.BlockSpec((1, Bt, out_pad), lambda g: (g, 0, 0)),
        out_shape=jax.ShapeDtypeStruct((G, Bt, out_pad), jnp.float32),
        compiler_params=pltpu.CompilerParams(
            dimension_semantics=("parallel",)),
        cost_estimate=cost,
    )(x_flat, *weights)
    return out.reshape(B, out_pad)[:, :dim_output]


# ------------------------------------------------------------------
# Parameter init (PyTorch-like layout) + one-time fusion/fold prep
# ------------------------------------------------------------------

def init_linear(key, fan_in, fan_out):
    k1, k2 = jax.random.split(key)
    bound = 1.0 / math.sqrt(fan_in)
    w = jax.random.uniform(k1, (fan_in, fan_out), jnp.float32, -bound, bound)
    b = jax.random.uniform(k2, (1, fan_out), jnp.float32, -bound, bound)
    return w, b


def init_mab(key, dim_q, dim_k, dim_v):
    ks = jax.random.split(key, 4)
    wq, bq = init_linear(ks[0], dim_q, dim_v)
    wk, bk = init_linear(ks[1], dim_k, dim_v)
    wv, bv = init_linear(ks[2], dim_k, dim_v)
    wo, bo = init_linear(ks[3], dim_v, dim_v)
    return dict(wq=wq, bq=bq, wk=wk, bk=bk, wv=wv, bv=bv, wo=wo, bo=bo)


def init_quan2_params(key, *, channel, kersize, dim_hidden, num_heads,
                      p_outputs, dim_output, rNr, rNc):
    keys = jax.random.split(key, 6)
    KK = kersize * kersize
    dim_in = channel * rNr * rNc

    # Conv2d(1, channel, kersize, stride, bias=False): weight stored (ks*ks, Ch).
    bound = 1.0 / math.sqrt(KK)
    wc = jax.random.uniform(keys[0], (KK, channel), jnp.float32, -bound, bound)

    # BatchNorm2d(channel) in eval mode, folded to per-channel scale/shift.
    # TODO(synk): training-mode BatchNorm (batch statistics + running-stat
    # updates) is not reproduced; eval-mode affine is used.
    kb = jax.random.split(keys[1], 3)
    gamma = jax.random.uniform(kb[0], (1, channel), jnp.float32, 0.5, 1.5)
    beta = jax.random.uniform(kb[1], (1, channel), jnp.float32, -0.5, 0.5)
    running_mean = jax.random.uniform(kb[2], (1, channel), jnp.float32, -0.1, 0.1)
    running_var = jnp.ones((1, channel), jnp.float32)
    bn_scale = gamma / jnp.sqrt(running_var + 1e-5)
    bn_shift = beta - running_mean * bn_scale

    sab = init_mab(keys[2], dim_in, dim_in, dim_hidden)
    pma = init_mab(keys[3], dim_hidden, dim_hidden, dim_hidden)

    # PMA seed S: (1, num_seeds, dim_hidden), xavier-uniform.
    xb = math.sqrt(6.0 / (p_outputs + dim_hidden))
    S_seed = jax.random.uniform(keys[4], (1, p_outputs, dim_hidden),
                                jnp.float32, -xb, xb)

    wdec, bdec = init_linear(keys[5], dim_hidden, dim_output)

    return dict(wc=wc, bn_scale=bn_scale, bn_shift=bn_shift,
                sab=sab, pma=pma, S_seed=S_seed, wdec=wdec, bdec=bdec)


def prepare_fused_params(params, *, channel, kersize, stride, Nr, Nc,
                         dim_output, out_lane_pad=128):
    """One-time weight-side preprocessing (zero per-forward cost):
       BN fold, im2col/conv/flatten/QKV fold into W_comb, attention-scale fold
       into the K projections, PMA seed-0 query precompute, decoder lane-pad."""
    rNr = (Nr - kersize) // stride + 1
    rNc = (Nc - kersize) // stride + 1
    P = rNr * rNc
    Ch = channel
    sab = params["sab"]
    pma = params["pma"]
    dim_V = sab["wq"].shape[1]
    inv_sqrt = 1.0 / math.sqrt(dim_V)      # module scales by sqrt(dim_V)

    # 1) fold eval-mode BatchNorm into per-channel conv scale/shift.
    wc_bn = params["wc"] * params["bn_scale"]                       # (ks*ks, Ch)
    bn_shift = params["bn_shift"]                                   # (1, Ch)

    # 2) fuse SAB Wq|Wk|Wv and fold the NCHW channel-major flatten into the rows.
    #    Torch feature index c*P + p  <->  patch-major index (p, c).
    wqkv = jnp.concatenate([sab["wq"], sab["wk"], sab["wv"]], axis=1)  # (Ch*P, 3D)
    bqkv = jnp.concatenate([sab["bq"], sab["bk"], sab["bv"]], axis=1)  # (1, 3D)
    idx = jnp.arange(Ch * P)
    perm = (idx % Ch) * P + (idx // Ch)
    w_qkv_pm = wqkv[perm].reshape(P, Ch, 3 * dim_V)                    # (P, Ch, 3D)

    # 3) fold im2col + conv + BN into one (Nr*Nc, 3*dim_V) weight:
    #    qkv[s] = sum_pix x[s, pix] * W_comb[pix] + b_comb   (exact, all-linear).
    w_patch = jnp.einsum('kc,pcd->pkd', wc_bn, w_qkv_pm)               # (P, ks*ks, 3D)
    w_comb = jnp.zeros((Nr * Nc, 3 * dim_V), jnp.float32)
    for pi in range(rNr):
        for pj in range(rNc):
            p = pi * rNc + pj
            for di in range(kersize):
                for dj in range(kersize):
                    k = di * kersize + dj
                    pix = (pi * stride + di) * Nc + (pj * stride + dj)
                    w_comb = w_comb.at[pix].add(w_patch[p, k])
    b_comb = bqkv + bn_shift @ jnp.sum(w_qkv_pm, axis=0)               # (1, 3D)

    # 4) fold the 1/sqrt(dim_V) attention scale into the K columns (K never
    #    appears in the residual, unlike Q, so the fold is exact).
    w_comb = w_comb.at[:, dim_V:2 * dim_V].multiply(inv_sqrt)
    b_comb = b_comb.at[:, dim_V:2 * dim_V].multiply(inv_sqrt)

    # 5) PMA: fuse Wk|Wv (K half pre-scaled); precompute the seed-0 query only
    #    (downstream consumes dec(X)[:, 0] exclusively).
    w_pma_kv = jnp.concatenate([pma["wk"] * inv_sqrt, pma["wv"]], axis=1)
    b_pma_kv = jnp.concatenate([pma["bk"] * inv_sqrt, pma["bv"]], axis=1)
    q_pma0 = params["S_seed"][0, 0:1] @ pma["wq"] + pma["bq"]          # (1, dim_V)

    # 6) lane-pad the decoder Linear to a dense 128-wide store.
    out_pad = max(out_lane_pad, ((dim_output + 127) // 128) * 128)
    w_dec_pad = jnp.zeros((dim_V, out_pad), jnp.float32).at[:, :dim_output].set(params["wdec"])
    b_dec_pad = jnp.zeros((1, out_pad), jnp.float32).at[:, :dim_output].set(params["bdec"])

    return dict(w_comb=w_comb, b_comb=b_comb,
                w_sab_o=sab["wo"], b_sab_o=sab["bo"],
                q_pma0=q_pma0, w_pma_kv=w_pma_kv, b_pma_kv=b_pma_kv,
                w_pma_o=pma["wo"], b_pma_o=pma["bo"],
                w_dec_pad=w_dec_pad, b_dec_pad=b_dec_pad)


# ------------------------------------------------------------------
# Demo
# ------------------------------------------------------------------

if __name__ == "__main__":
    # Small, module-consistent configuration (module hard-codes Nr = Nc = 4).
    B = 2
    set_size = 8
    channel = 4
    dim_output = 2
    kersize = 2
    stride = 2
    dim_hidden = 32
    num_heads = 4
    Nt = 4              # unused in forward (kept for parity with the module)
    p_outputs = 2
    Nr = Nc = 4
    rNr = (Nr - kersize) // stride + 1
    rNc = (Nc - kersize) // stride + 1

    key = jax.random.PRNGKey(0)
    kx, kp = jax.random.split(key)
    X = jax.random.normal(kx, (B, set_size, Nr, Nc), jnp.float32)

    params = init_quan2_params(kp, channel=channel, kersize=kersize,
                               dim_hidden=dim_hidden, num_heads=num_heads,
                               p_outputs=p_outputs, dim_output=dim_output,
                               rNr=rNr, rNc=rNc)
    fused = prepare_fused_params(params, channel=channel, kersize=kersize,
                                 stride=stride, Nr=Nr, Nc=Nc,
                                 dim_output=dim_output)

    out = quan2_forward(X, fused, num_heads=num_heads,
                        dim_output=dim_output, ln=True)
    out = jax.block_until_ready(out)
    assert out.shape == (B, dim_output)
    print("KERNEL_OK")
</pallas_src>

<mosaic_0001>
module attributes {stable_mosaic.version = 11 : i64} {
  func.func @_quan2_fused_kernel(%arg0: i32, %arg1: memref<1x8x16xf32, #tpu.memory_space<vmem>>, %arg2: memref<16x96xf32, #tpu.memory_space<vmem>>, %arg3: memref<1x96xf32, #tpu.memory_space<vmem>>, %arg4: memref<32x32xf32, #tpu.memory_space<vmem>>, %arg5: memref<1x32xf32, #tpu.memory_space<vmem>>, %arg6: memref<1x32xf32, #tpu.memory_space<vmem>>, %arg7: memref<32x64xf32, #tpu.memory_space<vmem>>, %arg8: memref<1x64xf32, #tpu.memory_space<vmem>>, %arg9: memref<32x32xf32, #tpu.memory_space<vmem>>, %arg10: memref<1x32xf32, #tpu.memory_space<vmem>>, %arg11: memref<32x128xf32, #tpu.memory_space<vmem>>, %arg12: memref<1x128xf32, #tpu.memory_space<vmem>>, %arg13: memref<1x1x128xf32, #tpu.memory_space<vmem>>) attributes {dimension_semantics = [#tpu.dimension_semantics<parallel>], iteration_bounds = array<i64: 2>, scalar_prefetch = 0 : i64, scratch_operands = 0 : i64, tpu.core_type = #tpu.core_type<tc>, window_params = [{transform_indices = @transform_0, window_bounds = array<i64: 1, 8, 16>}, {pipeline_mode = #tpu.pipeline_mode<synchronous>, transform_indices = @transform_1, window_bounds = array<i64: 16, 96>}, {pipeline_mode = #tpu.pipeline_mode<synchronous>, transform_indices = @transform_2, window_bounds = array<i64: 1, 96>}, {pipeline_mode = #tpu.pipeline_mode<synchronous>, transform_indices = @transform_3, window_bounds = array<i64: 32, 32>}, {pipeline_mode = #tpu.pipeline_mode<synchronous>, transform_indices = @transform_4, window_bounds = array<i64: 1, 32>}, {pipeline_mode = #tpu.pipeline_mode<synchronous>, transform_indices = @transform_5, window_bounds = array<i64: 1, 32>}, {pipeline_mode = #tpu.pipeline_mode<synchronous>, transform_indices = @transform_6, window_bounds = array<i64: 32, 64>}, {pipeline_mode = #tpu.pipeline_mode<synchronous>, transform_indices = @transform_7, window_bounds = array<i64: 1, 64>}, {pipeline_mode = #tpu.pipeline_mode<synchronous>, transform_indices = @transform_8, window_bounds = array<i64: 32, 32>}, {pipeline_mode = #tpu.pipeline_mode<synchronous>, transform_indices = @transform_9, window_bounds = array<i64: 1, 32>}, {pipeline_mode = #tpu.pipeline_mode<synchronous>, transform_indices = @transform_10, window_bounds = array<i64: 32, 128>}, {pipeline_mode = #tpu.pipeline_mode<synchronous>, transform_indices = @transform_11, window_bounds = array<i64: 1, 128>}, {transform_indices = @transform_12, window_bounds = array<i64: 1, 1, 128>}]} {
    %c0 = arith.constant 0 : index
    %c0_0 = arith.constant 0 : index
    %c0_1 = arith.constant 0 : index
    %0 = vector.load %arg1[%c0, %c0_0, %c0_1] : memref<1x8x16xf32, #tpu.memory_space<vmem>>, vector<1x8x16xf32>
    %1 = vector.shape_cast %0 : vector<1x8x16xf32> to vector<8x16xf32>
    %c0_2 = arith.constant 0 : index
    %c0_3 = arith.constant 0 : index
    %2 = vector.load %arg2[%c0_2, %c0_3] : memref<16x96xf32, #tpu.memory_space<vmem>>, vector<16x96xf32>
    %cst = arith.constant dense<0.000000e+00> : vector<8x96xf32>
    %3 = tpu.matmul %1, %2, %cst {dimension_numbers = #tpu.dot_dimension_numbers<[1], [0], [0], [1], [0, 0, 1, 1], [], []>} : vector<8x16xf32>, vector<16x96xf32>, vector<8x96xf32> -> vector<8x96xf32>
    %c0_4 = arith.constant 0 : index
    %c0_5 = arith.constant 0 : index
    %4 = vector.load %arg3[%c0_4, %c0_5] : memref<1x96xf32, #tpu.memory_space<vmem>>, vector<1x96xf32>
    %5 = vector.broadcast %4 : vector<1x96xf32> to vector<8x96xf32>
    %6 = arith.addf %3, %5 : vector<8x96xf32>
    %7 = vector.shape_cast %6 : vector<8x96xf32> to vector<1x8x96xf32>
    %8 = vector.extract_strided_slice %7 {offsets = [0, 0, 0], sizes = [1, 8, 32], strides = [1, 1, 1]} : vector<1x8x96xf32> to vector<1x8x32xf32>
    %9 = vector.extract_strided_slice %7 {offsets = [0, 0, 32], sizes = [1, 8, 32], strides = [1, 1, 1]} : vector<1x8x96xf32> to vector<1x8x32xf32>
    %10 = vector.extract_strided_slice %7 {offsets = [0, 0, 64], sizes = [1, 8, 32], strides = [1, 1, 1]} : vector<1x8x96xf32> to vector<1x8x32xf32>
    %11 = vector.extract_strided_slice %8 {offsets = [0, 0, 0], sizes = [1, 8, 8], strides = [1, 1, 1]} : vector<1x8x32xf32> to vector<1x8x8xf32>
    %12 = vector.extract_strided_slice %9 {offsets = [0, 0, 0], sizes = [1, 8, 8], strides = [1, 1, 1]} : vector<1x8x32xf32> to vector<1x8x8xf32>
    %13 = vector.extract_strided_slice %10 {offsets = [0, 0, 0], sizes = [1, 8, 8], strides = [1, 1, 1]} : vector<1x8x32xf32> to vector<1x8x8xf32>
    "tpu.trace_start"() <{level = 10 : i32, message = "bqd,bkd->bqk"}> : () -> ()
    %cst_6 = arith.constant dense<0.000000e+00> : vector<1x8x8xf32>
    %14 = tpu.matmul %11, %12, %cst_6 {dimension_numbers = #tpu.dot_dimension_numbers<[2], [2], [1], [1], [0, 0, 0, 1, 1, 1], [0], [0]>} : vector<1x8x8xf32>, vector<1x8x8xf32>, vector<1x8x8xf32> -> vector<1x8x8xf32>
    "tpu.trace_stop"() : () -> ()
    %cst_7 = arith.constant dense<0xFF800000> : vector<1x8xf32>
    %15 = vector.multi_reduction <maximumf>, %14, %cst_7 [2] : vector<1x8x8xf32> to vector<1x8xf32>
    %16 = vector.shape_cast %15 : vector<1x8xf32> to vector<1x8x1xf32>
    %17 = vector.broadcast %16 : vector<1x8x1xf32> to vector<1x8x8xf32>
    %18 = arith.subf %14, %17 : vector<1x8x8xf32>
    %19 = math.exp %18 : vector<1x8x8xf32>
    %cst_8 = arith.constant dense<0.000000e+00> : vector<1x8xf32>
    %20 = vector.multi_reduction <add>, %19, %cst_8 [2] : vector<1x8x8xf32> to vector<1x8xf32>
    %21 = vector.shape_cast %20 : vector<1x8xf32> to vector<1x8x1xf32>
    %22 = tpu.reciprocal %21 {approx = true} : vector<1x8x1xf32> -> vector<1x8x1xf32>
    %23 = vector.broadcast %22 : vector<1x8x1xf32> to vector<1x8x8xf32>
    %24 = arith.mulf %19, %23 : vector<1x8x8xf32>
    "tpu.trace_start"() <{level = 10 : i32, message = "bqk,bkd->bqd"}> : () -> ()
    %cst_9 = arith.constant dense<0.000000e+00> : vector<1x8x8xf32>
    %25 = tpu.matmul %24, %13, %cst_9 {dimension_numbers = #tpu.dot_dimension_numbers<[2], [1], [1], [2], [0, 0, 0, 1, 1, 2], [0], [0]>} : vector<1x8x8xf32>, vector<1x8x8xf32>, vector<1x8x8xf32> -> vector<1x8x8xf32>
    "tpu.trace_stop"() : () -> ()
    %26 = arith.addf %11, %25 : vector<1x8x8xf32>
    %27 = vector.extract_strided_slice %8 {offsets = [0, 0, 8], sizes = [1, 8, 8], strides = [1, 1, 1]} : vector<1x8x32xf32> to vector<1x8x8xf32>
    %28 = vector.extract_strided_slice %9 {offsets = [0, 0, 8], sizes = [1, 8, 8], strides = [1, 1, 1]} : vector<1x8x32xf32> to vector<1x8x8xf32>
    %29 = vector.extract_strided_slice %10 {offsets = [0, 0, 8], sizes = [1, 8, 8], strides = [1, 1, 1]} : vector<1x8x32xf32> to vector<1x8x8xf32>
    "tpu.trace_start"() <{level = 10 : i32, message = "bqd,bkd->bqk"}> : () -> ()
    %cst_10 = arith.constant dense<0.000000e+00> : vector<1x8x8xf32>
    %30 = tpu.matmul %27, %28, %cst_10 {dimension_numbers = #tpu.dot_dimension_numbers<[2], [2], [1], [1], [0, 0, 0, 1, 1, 1], [0], [0]>} : vector<1x8x8xf32>, vector<1x8x8xf32>, vector<1x8x8xf32> -> vector<1x8x8xf32>
    "tpu.trace_stop"() : () -> ()
    %cst_11 = arith.constant dense<0xFF800000> : vector<1x8xf32>
    %31 = vector.multi_reduction <maximumf>, %30, %cst_11 [2] : vector<1x8x8xf32> to vector<1x8xf32>
    %32 = vector.shape_cast %31 : vector<1x8xf32> to vector<1x8x1xf32>
    %33 = vector.broadcast %32 : vector<1x8x1xf32> to vector<1x8x8xf32>
    %34 = arith.subf %30, %33 : vector<1x8x8xf32>
    %35 = math.exp %34 : vector<1x8x8xf32>
    %cst_12 = arith.constant dense<0.000000e+00> : vector<1x8xf32>
    %36 = vector.multi_reduction <add>, %35, %cst_12 [2] : vector<1x8x8xf32> to vector<1x8xf32>
    %37 = vector.shape_cast %36 : vector<1x8xf32> to vector<1x8x1xf32>
    %38 = tpu.reciprocal %37 {approx = true} : vector<1x8x1xf32> -> vector<1x8x1xf32>
    %39 = vector.broadcast %38 : vector<1x8x1xf32> to vector<1x8x8xf32>
    %40 = arith.mulf %35, %39 : vector<1x8x8xf32>
    "tpu.trace_start"() <{level = 10 : i32, message = "bqk,bkd->bqd"}> : () -> ()
    %cst_13 = arith.constant dense<0.000000e+00> : vector<1x8x8xf32>
    %41 = tpu.matmul %40, %29, %cst_13 {dimension_numbers = #tpu.dot_dimension_numbers<[2], [1], [1], [2], [0, 0, 0, 1, 1, 2], [0], [0]>} : vector<1x8x8xf32>, vector<1x8x8xf32>, vector<1x8x8xf32> -> vector<1x8x8xf32>
    "tpu.trace_stop"() : () -> ()
    %42 = arith.addf %27, %41 : vector<1x8x8xf32>
    %43 = vector.extract_strided_slice %8 {offsets = [0, 0, 16], sizes = [1, 8, 8], strides = [1, 1, 1]} : vector<1x8x32xf32> to vector<1x8x8xf32>
    %44 = vector.extract_strided_slice %9 {offsets = [0, 0, 16], sizes = [1, 8, 8], strides = [1, 1, 1]} : vector<1x8x32xf32> to vector<1x8x8xf32>
    %45 = vector.extract_strided_slice %10 {offsets = [0, 0, 16], sizes = [1, 8, 8], strides = [1, 1, 1]} : vector<1x8x32xf32> to vector<1x8x8xf32>
    "tpu.trace_start"() <{level = 10 : i32, message = "bqd,bkd->bqk"}> : () -> ()
    %cst_14 = arith.constant dense<0.000000e+00> : vector<1x8x8xf32>
    %46 = tpu.matmul %43, %44, %cst_14 {dimension_numbers = #tpu.dot_dimension_numbers<[2], [2], [1], [1], [0, 0, 0, 1, 1, 1], [0], [0]>} : vector<1x8x8xf32>, vector<1x8x8xf32>, vector<1x8x8xf32> -> vector<1x8x8xf32>
    "tpu.trace_stop"() : () -> ()
    %cst_15 = arith.constant dense<0xFF800000> : vector<1x8xf32>
    %47 = vector.multi_reduction <maximumf>, %46, %cst_15 [2] : vector<1x8x8xf32> to vector<1x8xf32>
    %48 = vector.shape_cast %47 : vector<1x8xf32> to vector<1x8x1xf32>
    %49 = vector.broadcast %48 : vector<1x8x1xf32> to vector<1x8x8xf32>
    %50 = arith.subf %46, %49 : vector<1x8x8xf32>
    %51 = math.exp %50 : vector<1x8x8xf32>
    %cst_16 = arith.constant dense<0.000000e+00> : vector<1x8xf32>
    %52 = vector.multi_reduction <add>, %51, %cst_16 [2] : vector<1x8x8xf32> to vector<1x8xf32>
    %53 = vector.shape_cast %52 : vector<1x8xf32> to vector<1x8x1xf32>
    %54 = tpu.reciprocal %53 {approx = true} : vector<1x8x1xf32> -> vector<1x8x1xf32>
    %55 = vector.broadcast %54 : vector<1x8x1xf32> to vector<1x8x8xf32>
    %56 = arith.mulf %51, %55 : vector<1x8x8xf32>
    "tpu.trace_start"() <{level = 10 : i32, message = "bqk,bkd->bqd"}> : () -> ()
    %cst_17 = arith.constant dense<0.000000e+00> : vector<1x8x8xf32>
    %57 = tpu.matmul %56, %45, %cst_17 {dimension_numbers = #tpu.dot_dimension_numbers<[2], [1], [1], [2], [0, 0, 0, 1, 1, 2], [0], [0]>} : vector<1x8x8xf32>, vector<1x8x8xf32>, vector<1x8x8xf32> -> vector<1x8x8xf32>
    "tpu.trace_stop"() : () -> ()
    %58 = arith.addf %43, %57 : vector<1x8x8xf32>
    %59 = vector.extract_strided_slice %8 {offsets = [0, 0, 24], sizes = [1, 8, 8], strides = [1, 1, 1]} : vector<1x8x32xf32> to vector<1x8x8xf32>
    %60 = vector.extract_strided_slice %9 {offsets = [0, 0, 24], sizes = [1, 8, 8], strides = [1, 1, 1]} : vector<1x8x32xf32> to vector<1x8x8xf32>
    %61 = vector.extract_strided_slice %10 {offsets = [0, 0, 24], sizes = [1, 8, 8], strides = [1, 1, 1]} : vector<1x8x32xf32> to vector<1x8x8xf32>
    "tpu.trace_start"() <{level = 10 : i32, message = "bqd,bkd->bqk"}> : () -> ()
    %cst_18 = arith.constant dense<0.000000e+00> : vector<1x8x8xf32>
    %62 = tpu.matmul %59, %60, %cst_18 {dimension_numbers = #tpu.dot_dimension_numbers<[2], [2], [1], [1], [0, 0, 0, 1, 1, 1], [0], [0]>} : vector<1x8x8xf32>, vector<1x8x8xf32>, vector<1x8x8xf32> -> vector<1x8x8xf32>
    "tpu.trace_stop"() : () -> ()
    %cst_19 = arith.constant dense<0xFF800000> : vector<1x8xf32>
    %63 = vector.multi_reduction <maximumf>, %62, %cst_19 [2] : vector<1x8x8xf32> to vector<1x8xf32>
    %64 = vector.shape_cast %63 : vector<1x8xf32> to vector<1x8x1xf32>
    %65 = vector.broadcast %64 : vector<1x8x1xf32> to vector<1x8x8xf32>
    %66 = arith.subf %62, %65 : vector<1x8x8xf32>
    %67 = math.exp %66 : vector<1x8x8xf32>
    %cst_20 = arith.constant dense<0.000000e+00> : vector<1x8xf32>
    %68 = vector.multi_reduction <add>, %67, %cst_20 [2] : vector<1x8x8xf32> to vector<1x8xf32>
    %69 = vector.shape_cast %68 : vector<1x8xf32> to vector<1x8x1xf32>
    %70 = tpu.reciprocal %69 {approx = true} : vector<1x8x1xf32> -> vector<1x8x1xf32>
    %71 = vector.broadcast %70 : vector<1x8x1xf32> to vector<1x8x8xf32>
    %72 = arith.mulf %67, %71 : vector<1x8x8xf32>
    "tpu.trace_start"() <{level = 10 : i32, message = "bqk,bkd->bqd"}> : () -> ()
    %cst_21 = arith.constant dense<0.000000e+00> : vector<1x8x8xf32>
    %73 = tpu.matmul %72, %61, %cst_21 {dimension_numbers = #tpu.dot_dimension_numbers<[2], [1], [1], [2], [0, 0, 0, 1, 1, 2], [0], [0]>} : vector<1x8x8xf32>, vector<1x8x8xf32>, vector<1x8x8xf32> -> vector<1x8x8xf32>
    "tpu.trace_stop"() : () -> ()
    %74 = arith.addf %59, %73 : vector<1x8x8xf32>
    %75 = tpu.concatenate %26, %42, %58, %74 in 2 : vector<1x8x8xf32>, vector<1x8x8xf32>, vector<1x8x8xf32>, vector<1x8x8xf32> -> vector<1x8x32xf32>
    %76 = vector.shape_cast %75 : vector<1x8x32xf32> to vector<8x32xf32>
    %c0_22 = arith.constant 0 : index
    %c0_23 = arith.constant 0 : index
    %77 = vector.load %arg4[%c0_22, %c0_23] : memref<32x32xf32, #tpu.memory_space<vmem>>, vector<32x32xf32>
    %c0_24 = arith.constant 0 : index
    %c0_25 = arith.constant 0 : index
    %78 = vector.load %arg5[%c0_24, %c0_25] : memref<1x32xf32, #tpu.memory_space<vmem>>, vector<1x32xf32>
    %cst_26 = arith.constant dense<0.000000e+00> : vector<8xf32>
    %79 = vector.multi_reduction <add>, %76, %cst_26 [1] : vector<8x32xf32> to vector<8xf32>
    %80 = vector.shape_cast %79 : vector<8xf32> to vector<8x1xf32>
    %cst_27 = arith.constant 3.200000e+01 : f32
    %81 = vector.broadcast %cst_27 : f32 to vector<8x1xf32>
    %82 = arith.divf %80, %81 : vector<8x1xf32>
    %83 = vector.broadcast %82 : vector<8x1xf32> to vector<8x32xf32>
    %84 = arith.subf %76, %83 : vector<8x32xf32>
    %85 = arith.mulf %84, %84 : vector<8x32xf32>
    %cst_28 = arith.constant dense<0.000000e+00> : vector<8xf32>
    %86 = vector.multi_reduction <add>, %85, %cst_28 [1] : vector<8x32xf32> to vector<8xf32>
    %87 = vector.shape_cast %86 : vector<8xf32> to vector<8x1xf32>
    %cst_29 = arith.constant 3.200000e+01 : f32
    %88 = vector.broadcast %cst_29 : f32 to vector<8x1xf32>
    %89 = arith.divf %87, %88 : vector<8x1xf32>
    %90 = vector.broadcast %82 : vector<8x1xf32> to vector<8x32xf32>
    %91 = arith.subf %76, %90 : vector<8x32xf32>
    %cst_30 = arith.constant 9.99999974E-6 : f32
    %92 = vector.broadcast %cst_30 : f32 to vector<8x1xf32>
    %93 = arith.addf %89, %92 : vector<8x1xf32>
    %94 = math.rsqrt %93 : vector<8x1xf32>
    %95 = vector.broadcast %94 : vector<8x1xf32> to vector<8x32xf32>
    %96 = arith.mulf %91, %95 : vector<8x32xf32>
    %cst_31 = arith.constant dense<0.000000e+00> : vector<8x32xf32>
    %97 = tpu.matmul %96, %77, %cst_31 {dimension_numbers = #tpu.dot_dimension_numbers<[1], [0], [0], [1], [0, 0, 1, 1], [], []>} : vector<8x32xf32>, vector<32x32xf32>, vector<8x32xf32> -> vector<8x32xf32>
    %98 = vector.broadcast %78 : vector<1x32xf32> to vector<8x32xf32>
    %99 = arith.addf %97, %98 : vector<8x32xf32>
    %100 = arith.negf %99 : vector<8x32xf32>
    %101 = math.exp %100 : vector<8x32xf32>
    %cst_32 = arith.constant 1.000000e+00 : f32
    %102 = vector.broadcast %cst_32 : f32 to vector<8x32xf32>
    %103 = arith.addf %102, %101 : vector<8x32xf32>
    %104 = arith.divf %102, %103 : vector<8x32xf32>
    %105 = arith.addf %96, %104 : vector<8x32xf32>
    %cst_33 = arith.constant dense<0.000000e+00> : vector<8xf32>
    %106 = vector.multi_reduction <add>, %105, %cst_33 [1] : vector<8x32xf32> to vector<8xf32>
    %107 = vector.shape_cast %106 : vector<8xf32> to vector<8x1xf32>
    %cst_34 = arith.constant 3.200000e+01 : f32
    %108 = vector.broadcast %cst_34 : f32 to vector<8x1xf32>
    %109 = arith.divf %107, %108 : vector<8x1xf32>
    %110 = vector.broadcast %109 : vector<8x1xf32> to vector<8x32xf32>
    %111 = arith.subf %105, %110 : vector<8x32xf32>
    %112 = arith.mulf %111, %111 : vector<8x32xf32>
    %cst_35 = arith.constant dense<0.000000e+00> : vector<8xf32>
    %113 = vector.multi_reduction <add>, %112, %cst_35 [1] : vector<8x32xf32> to vector<8xf32>
    %114 = vector.shape_cast %113 : vector<8xf32> to vector<8x1xf32>
    %cst_36 = arith.constant 3.200000e+01 : f32
    %115 = vector.broadcast %cst_36 : f32 to vector<8x1xf32>
    %116 = arith.divf %114, %115 : vector<8x1xf32>
    %117 = vector.broadcast %109 : vector<8x1xf32> to vector<8x32xf32>
    %118 = arith.subf %105, %117 : vector<8x32xf32>
    %cst_37 = arith.constant 9.99999974E-6 : f32
    %119 = vector.broadcast %cst_37 : f32 to vector<8x1xf32>
    %120 = arith.addf %116, %119 : vector<8x1xf32>
    %121 = math.rsqrt %120 : vector<8x1xf32>
    %122 = vector.broadcast %121 : vector<8x1xf32> to vector<8x32xf32>
    %123 = arith.mulf %118, %122 : vector<8x32xf32>
    %124 = arith.negf %123 : vector<8x32xf32>
    %125 = math.exp %124 : vector<8x32xf32>
    %cst_38 = arith.constant 1.000000e+00 : f32
    %126 = vector.broadcast %cst_38 : f32 to vector<8x32xf32>
    %127 = arith.addf %126, %125 : vector<8x32xf32>
    %128 = arith.divf %126, %127 : vector<8x32xf32>
    %c0_39 = arith.constant 0 : index
    %c0_40 = arith.constant 0 : index
    %129 = vector.load %arg7[%c0_39, %c0_40] : memref<32x64xf32, #tpu.memory_space<vmem>>, vector<32x64xf32>
    %cst_41 = arith.constant dense<0.000000e+00> : vector<8x64xf32>
    %130 = tpu.matmul %128, %129, %cst_41 {dimension_numbers = #tpu.dot_dimension_numbers<[1], [0], [0], [1], [0, 0, 1, 1], [], []>} : vector<8x32xf32>, vector<32x64xf32>, vector<8x64xf32> -> vector<8x64xf32>
    %c0_42 = arith.constant 0 : index
    %c0_43 = arith.constant 0 : index
    %131 = vector.load %arg8[%c0_42, %c0_43] : memref<1x64xf32, #tpu.memory_space<vmem>>, vector<1x64xf32>
    %132 = vector.broadcast %131 : vector<1x64xf32> to vector<8x64xf32>
    %133 = arith.addf %130, %132 : vector<8x64xf32>
    %134 = vector.shape_cast %133 : vector<8x64xf32> to vector<1x8x64xf32>
    %c0_44 = arith.constant 0 : index
    %c0_45 = arith.constant 0 : index
    %135 = vector.load %arg6[%c0_44, %c0_45] : memref<1x32xf32, #tpu.memory_space<vmem>>, vector<1x32xf32>
    %136 = vector.shape_cast %135 : vector<1x32xf32> to vector<1x1x32xf32>
    %137 = vector.extract_strided_slice %134 {offsets = [0, 0, 0], sizes = [1, 8, 32], strides = [1, 1, 1]} : vector<1x8x64xf32> to vector<1x8x32xf32>
    %138 = vector.extract_strided_slice %134 {offsets = [0, 0, 32], sizes = [1, 8, 32], strides = [1, 1, 1]} : vector<1x8x64xf32> to vector<1x8x32xf32>
    %139 = vector.extract_strided_slice %136 {offsets = [0, 0, 0], sizes = [1, 1, 8], strides = [1, 1, 1]} : vector<1x1x32xf32> to vector<1x1x8xf32>
    %140 = vector.extract_strided_slice %137 {offsets = [0, 0, 0], sizes = [1, 8, 8], strides = [1, 1, 1]} : vector<1x8x32xf32> to vector<1x8x8xf32>
    %141 = vector.extract_strided_slice %138 {offsets = [0, 0, 0], sizes = [1, 8, 8], strides = [1, 1, 1]} : vector<1x8x32xf32> to vector<1x8x8xf32>
    "tpu.trace_start"() <{level = 10 : i32, message = "bqd,bkd->bqk"}> : () -> ()
    %cst_46 = arith.constant dense<0.000000e+00> : vector<1x1x8xf32>
    %142 = tpu.matmul %139, %140, %cst_46 {dimension_numbers = #tpu.dot_dimension_numbers<[2], [2], [1], [1], [0, 0, 0, 1, 1, 1], [0], [0]>} : vector<1x1x8xf32>, vector<1x8x8xf32>, vector<1x1x8xf32> -> vector<1x1x8xf32>
    "tpu.trace_stop"() : () -> ()
    %cst_47 = arith.constant dense<0xFF800000> : vector<1x1xf32>
    %143 = vector.multi_reduction <maximumf>, %142, %cst_47 [2] : vector<1x1x8xf32> to vector<1x1xf32>
    %144 = vector.shape_cast %143 : vector<1x1xf32> to vector<1x1x1xf32>
    %145 = vector.broadcast %144 : vector<1x1x1xf32> to vector<1x1x8xf32>
    %146 = arith.subf %142, %145 : vector<1x1x8xf32>
    %147 = math.exp %146 : vector<1x1x8xf32>
    %cst_48 = arith.constant dense<0.000000e+00> : vector<1x1xf32>
    %148 = vector.multi_reduction <add>, %147, %cst_48 [2] : vector<1x1x8xf32> to vector<1x1xf32>
    %149 = vector.shape_cast %148 : vector<1x1xf32> to vector<1x1x1xf32>
    %150 = tpu.reciprocal %149 {approx = true} : vector<1x1x1xf32> -> vector<1x1x1xf32>
    %151 = vector.broadcast %150 : vector<1x1x1xf32> to vector<1x1x8xf32>
    %152 = arith.mulf %147, %151 : vector<1x1x8xf32>
    "tpu.trace_start"() <{level = 10 : i32, message = "bqk,bkd->bqd"}> : () -> ()
    %cst_49 = arith.constant dense<0.000000e+00> : vector<1x1x8xf32>
    %153 = tpu.matmul %152, %141, %cst_49 {dimension_numbers = #tpu.dot_dimension_numbers<[2], [1], [1], [2], [0, 0, 0, 1, 1, 2], [0], [0]>} : vector<1x1x8xf32>, vector<1x8x8xf32>, vector<1x1x8xf32> -> vector<1x1x8xf32>
    "tpu.trace_stop"() : () -> ()
    %154 = arith.addf %139, %153 : vector<1x1x8xf32>
    %155 = vector.extract_strided_slice %136 {offsets = [0, 0, 8], sizes = [1, 1, 8], strides = [1, 1, 1]} : vector<1x1x32xf32> to vector<1x1x8xf32>
    %156 = vector.extract_strided_slice %137 {offsets = [0, 0, 8], sizes = [1, 8, 8], strides = [1, 1, 1]} : vector<1x8x32xf32> to vector<1x8x8xf32>
    %157 = vector.extract_strided_slice %138 {offsets = [0, 0, 8], sizes = [1, 8, 8], strides = [1, 1, 1]} : vector<1x8x32xf32> to vector<1x8x8xf32>
    "tpu.trace_start"() <{level = 10 : i32, message = "bqd,bkd->bqk"}> : () -> ()
    %cst_50 = arith.constant dense<0.000000e+00> : vector<1x1x8xf32>
    %158 = tpu.matmul %155, %156, %cst_50 {dimension_numbers = #tpu.dot_dimension_numbers<[2], [2], [1], [1], [0, 0, 0, 1, 1, 1], [0], [0]>} : vector<1x1x8xf32>, vector<1x8x8xf32>, vector<1x1x8xf32> -> vector<1x1x8xf32>
    "tpu.trace_stop"() : () -> ()
    %cst_51 = arith.constant dense<0xFF800000> : vector<1x1xf32>
    %159 = vector.multi_reduction <maximumf>, %158, %cst_51 [2] : vector<1x1x8xf32> to vector<1x1xf32>
    %160 = vector.shape_cast %159 : vector<1x1xf32> to vector<1x1x1xf32>
    %161 = vector.broadcast %160 : vector<1x1x1xf32> to vector<1x1x8xf32>
    %162 = arith.subf %158, %161 : vector<1x1x8xf32>
    %163 = math.exp %162 : vector<1x1x8xf32>
    %cst_52 = arith.constant dense<0.000000e+00> : vector<1x1xf32>
    %164 = vector.multi_reduction <add>, %163, %cst_52 [2] : vector<1x1x8xf32> to vector<1x1xf32>
    %165 = vector.shape_cast %164 : vector<1x1xf32> to vector<1x1x1xf32>
    %166 = tpu.reciprocal %165 {approx = true} : vector<1x1x1xf32> -> vector<1x1x1xf32>
    %167 = vector.broadcast %166 : vector<1x1x1xf32> to vector<1x1x8xf32>
    %168 = arith.mulf %163, %167 : vector<1x1x8xf32>
    "tpu.trace_start"() <{level = 10 : i32, message = "bqk,bkd->bqd"}> : () -> ()
    %cst_53 = arith.constant dense<0.000000e+00> : vector<1x1x8xf32>
    %169 = tpu.matmul %168, %157, %cst_53 {dimension_numbers = #tpu.dot_dimension_numbers<[2], [1], [1], [2], [0, 0, 0, 1, 1, 2], [0], [0]>} : vector<1x1x8xf32>, vector<1x8x8xf32>, vector<1x1x8xf32> -> vector<1x1x8xf32>
    "tpu.trace_stop"() : () -> ()
    %170 = arith.addf %155, %169 : vector<1x1x8xf32>
    %171 = vector.extract_strided_slice %136 {offsets = [0, 0, 16], sizes = [1, 1, 8], strides = [1, 1, 1]} : vector<1x1x32xf32> to vector<1x1x8xf32>
    %172 = vector.extract_strided_slice %137 {offsets = [0, 0, 16], sizes = [1, 8, 8], strides = [1, 1, 1]} : vector<1x8x32xf32> to vector<1x8x8xf32>
    %173 = vector.extract_strided_slice %138 {offsets = [0, 0, 16], sizes = [1, 8, 8], strides = [1, 1, 1]} : vector<1x8x32xf32> to vector<1x8x8xf32>
    "tpu.trace_start"() <{level = 10 : i32, message = "bqd,bkd->bqk"}> : () -> ()
    %cst_54 = arith.constant dense<0.000000e+00> : vector<1x1x8xf32>
    %174 = tpu.matmul %171, %172, %cst_54 {dimension_numbers = #tpu.dot_dimension_numbers<[2], [2], [1], [1], [0, 0, 0, 1, 1, 1], [0], [0]>} : vector<1x1x8xf32>, vector<1x8x8xf32>, vector<1x1x8xf32> -> vector<1x1x8xf32>
    "tpu.trace_stop"() : () -> ()
    %cst_55 = arith.constant dense<0xFF800000> : vector<1x1xf32>
    %175 = vector.multi_reduction <maximumf>, %174, %cst_55 [2] : vector<1x1x8xf32> to vector<1x1xf32>
    %176 = vector.shape_cast %175 : vector<1x1xf32> to vector<1x1x1xf32>
    %177 = vector.broadcast %176 : vector<1x1x1xf32> to vector<1x1x8xf32>
    %178 = arith.subf %174, %177 : vector<1x1x8xf32>
    %179 = math.exp %178 : vector<1x1x8xf32>
    %cst_56 = arith.constant dense<0.000000e+00> : vector<1x1xf32>
    %180 = vector.multi_reduction <add>, %179, %cst_56 [2] : vector<1x1x8xf32> to vector<1x1xf32>
    %181 = vector.shape_cast %180 : vector<1x1xf32> to vector<1x1x1xf32>
    %182 = tpu.reciprocal %181 {approx = true} : vector<1x1x1xf32> -> vector<1x1x1xf32>
    %183 = vector.broadcast %182 : vector<1x1x1xf32> to vector<1x1x8xf32>
    %184 = arith.mulf %179, %183 : vector<1x1x8xf32>
    "tpu.trace_start"() <{level = 10 : i32, message = "bqk,bkd->bqd"}> : () -> ()
    %cst_57 = arith.constant dense<0.000000e+00> : vector<1x1x8xf32>
    %185 = tpu.matmul %184, %173, %cst_57 {dimension_numbers = #tpu.dot_dimension_numbers<[2], [1], [1], [2], [0, 0, 0, 1, 1, 2], [0], [0]>} : vector<1x1x8xf32>, vector<1x8x8xf32>, vector<1x1x8xf32> -> vector<1x1x8xf32>
    "tpu.trace_stop"() : () -> ()
    %186 = arith.addf %171, %185 : vector<1x1x8xf32>
    %187 = vector.extract_strided_slice %136 {offsets = [0, 0, 24], sizes = [1, 1, 8], strides = [1, 1, 1]} : vector<1x1x32xf32> to vector<1x1x8xf32>
    %188 = vector.extract_strided_slice %137 {offsets = [0, 0, 24], sizes = [1, 8, 8], strides = [1, 1, 1]} : vector<1x8x32xf32> to vector<1x8x8xf32>
    %189 = vector.extract_strided_slice %138 {offsets = [0, 0, 24], sizes = [1, 8, 8], strides = [1, 1, 1]} : vector<1x8x32xf32> to vector<1x8x8xf32>
    "tpu.trace_start"() <{level = 10 : i32, message = "bqd,bkd->bqk"}> : () -> ()
    %cst_58 = arith.constant dense<0.000000e+00> : vector<1x1x8xf32>
    %190 = tpu.matmul %187, %188, %cst_58 {dimension_numbers = #tpu.dot_dimension_numbers<[2], [2], [1], [1], [0, 0, 0, 1, 1, 1], [0], [0]>} : vector<1x1x8xf32>, vector<1x8x8xf32>, vector<1x1x8xf32> -> vector<1x1x8xf32>
    "tpu.trace_stop"() : () -> ()
    %cst_59 = arith.constant dense<0xFF800000> : vector<1x1xf32>
    %191 = vector.multi_reduction <maximumf>, %190, %cst_59 [2] : vector<1x1x8xf32> to vector<1x1xf32>
    %192 = vector.shape_cast %191 : vector<1x1xf32> to vector<1x1x1xf32>
    %193 = vector.broadcast %192 : vector<1x1x1xf32> to vector<1x1x8xf32>
    %194 = arith.subf %190, %193 : vector<1x1x8xf32>
    %195 = math.exp %194 : vector<1x1x8xf32>
    %cst_60 = arith.constant dense<0.000000e+00> : vector<1x1xf32>
    %196 = vector.multi_reduction <add>, %195, %cst_60 [2] : vector<1x1x8xf32> to vector<1x1xf32>
    %197 = vector.shape_cast %196 : vector<1x1xf32> to vector<1x1x1xf32>
    %198 = tpu.reciprocal %197 {approx = true} : vector<1x1x1xf32> -> vector<1x1x1xf32>
    %199 = vector.broadcast %198 : vector<1x1x1xf32> to vector<1x1x8xf32>
    %200 = arith.mulf %195, %199 : vector<1x1x8xf32>
    "tpu.trace_start"() <{level = 10 : i32, message = "bqk,bkd->bqd"}> : () -> ()
    %cst_61 = arith.constant dense<0.000000e+00> : vector<1x1x8xf32>
    %201 = tpu.matmul %200, %189, %cst_61 {dimension_numbers = #tpu.dot_dimension_numbers<[2], [1], [1], [2], [0, 0, 0, 1, 1, 2], [0], [0]>} : vector<1x1x8xf32>, vector<1x8x8xf32>, vector<1x1x8xf32> -> vector<1x1x8xf32>
    "tpu.trace_stop"() : () -> ()
    %202 = arith.addf %187, %201 : vector<1x1x8xf32>
    %203 = tpu.concatenate %154, %170, %186, %202 in 2 : vector<1x1x8xf32>, vector<1x1x8xf32>, vector<1x1x8xf32>, vector<1x1x8xf32> -> vector<1x1x32xf32>
    %204 = vector.shape_cast %203 : vector<1x1x32xf32> to vector<1x32xf32>
    %c0_62 = arith.constant 0 : index
    %c0_63 = arith.constant 0 : index
    %205 = vector.load %arg9[%c0_62, %c0_63] : memref<32x32xf32, #tpu.memory_space<vmem>>, vector<32x32xf32>
    %c0_64 = arith.constant 0 : index
    %c0_65 = arith.constant 0 : index
    %206 = vector.load %arg10[%c0_64, %c0_65] : memref<1x32xf32, #tpu.memory_space<vmem>>, vector<1x32xf32>
    %cst_66 = arith.constant dense<0.000000e+00> : vector<1xf32>
    %207 = vector.multi_reduction <add>, %204, %cst_66 [1] : vector<1x32xf32> to vector<1xf32>
    %208 = vector.shape_cast %207 : vector<1xf32> to vector<1x1xf32>
    %cst_67 = arith.constant 3.200000e+01 : f32
    %209 = vector.broadcast %cst_67 : f32 to vector<1x1xf32>
    %210 = arith.divf %208, %209 : vector<1x1xf32>
    %211 = vector.broadcast %210 : vector<1x1xf32> to vector<1x32xf32>
    %212 = arith.subf %204, %211 : vector<1x32xf32>
    %213 = arith.mulf %212, %212 : vector<1x32xf32>
    %cst_68 = arith.constant dense<0.000000e+00> : vector<1xf32>
    %214 = vector.multi_reduction <add>, %213, %cst_68 [1] : vector<1x32xf32> to vector<1xf32>
    %215 = vector.shape_cast %214 : vector<1xf32> to vector<1x1xf32>
    %cst_69 = arith.constant 3.200000e+01 : f32
    %216 = vector.broadcast %cst_69 : f32 to vector<1x1xf32>
    %217 = arith.divf %215, %216 : vector<1x1xf32>
    %218 = vector.broadcast %210 : vector<1x1xf32> to vector<1x32xf32>
    %219 = arith.subf %204, %218 : vector<1x32xf32>
    %cst_70 = arith.constant 9.99999974E-6 : f32
    %220 = vector.broadcast %cst_70 : f32 to vector<1x1xf32>
    %221 = arith.addf %217, %220 : vector<1x1xf32>
    %222 = math.rsqrt %221 : vector<1x1xf32>
    %223 = vector.broadcast %222 : vector<1x1xf32> to vector<1x32xf32>
    %224 = arith.mulf %219, %223 : vector<1x32xf32>
    %cst_71 = arith.constant dense<0.000000e+00> : vector<1x32xf32>
    %225 = tpu.matmul %224, %205, %cst_71 {dimension_numbers = #tpu.dot_dimension_numbers<[1], [0], [0], [1], [0, 0, 1, 1], [], []>} : vector<1x32xf32>, vector<32x32xf32>, vector<1x32xf32> -> vector<1x32xf32>
    %226 = arith.addf %225, %206 : vector<1x32xf32>
    %227 = arith.negf %226 : vector<1x32xf32>
    %228 = math.exp %227 : vector<1x32xf32>
    %cst_72 = arith.constant 1.000000e+00 : f32
    %229 = vector.broadcast %cst_72 : f32 to vector<1x32xf32>
    %230 = arith.addf %229, %228 : vector<1x32xf32>
    %231 = arith.divf %229, %230 : vector<1x32xf32>
    %232 = arith.addf %224, %231 : vector<1x32xf32>
    %cst_73 = arith.constant dense<0.000000e+00> : vector<1xf32>
    %233 = vector.multi_reduction <add>, %232, %cst_73 [1] : vector<1x32xf32> to vector<1xf32>
    %234 = vector.shape_cast %233 : vector<1xf32> to vector<1x1xf32>
    %cst_74 = arith.constant 3.200000e+01 : f32
    %235 = vector.broadcast %cst_74 : f32 to vector<1x1xf32>
    %236 = arith.divf %234, %235 : vector<1x1xf32>
    %237 = vector.broadcast %236 : vector<1x1xf32> to vector<1x32xf32>
    %238 = arith.subf %232, %237 : vector<1x32xf32>
    %239 = arith.mulf %238, %238 : vector<1x32xf32>
    %cst_75 = arith.constant dense<0.000000e+00> : vector<1xf32>
    %240 = vector.multi_reduction <add>, %239, %cst_75 [1] : vector<1x32xf32> to vector<1xf32>
    %241 = vector.shape_cast %240 : vector<1xf32> to vector<1x1xf32>
    %cst_76 = arith.constant 3.200000e+01 : f32
    %242 = vector.broadcast %cst_76 : f32 to vector<1x1xf32>
    %243 = arith.divf %241, %242 : vector<1x1xf32>
    %244 = vector.broadcast %236 : vector<1x1xf32> to vector<1x32xf32>
    %245 = arith.subf %232, %244 : vector<1x32xf32>
    %cst_77 = arith.constant 9.99999974E-6 : f32
    %246 = vector.broadcast %cst_77 : f32 to vector<1x1xf32>
    %247 = arith.addf %243, %246 : vector<1x1xf32>
    %248 = math.rsqrt %247 : vector<1x1xf32>
    %249 = vector.broadcast %248 : vector<1x1xf32> to vector<1x32xf32>
    %250 = arith.mulf %245, %249 : vector<1x32xf32>
    %c0_78 = arith.constant 0 : index
    %c0_79 = arith.constant 0 : index
    %251 = vector.load %arg11[%c0_78, %c0_79] : memref<32x128xf32, #tpu.memory_space<vmem>>, vector<32x128xf32>
    %cst_80 = arith.constant dense<0.000000e+00> : vector<1x128xf32>
    %252 = tpu.matmul %250, %251, %cst_80 {dimension_numbers = #tpu.dot_dimension_numbers<[1], [0], [0], [1], [0, 0, 1, 1], [], []>} : vector<1x32xf32>, vector<32x128xf32>, vector<1x128xf32> -> vector<1x128xf32>
    %c0_81 = arith.constant 0 : index
    %c0_82 = arith.constant 0 : index
    %253 = vector.load %arg12[%c0_81, %c0_82] : memref<1x128xf32, #tpu.memory_space<vmem>>, vector<1x128xf32>
    %254 = arith.addf %252, %253 : vector<1x128xf32>
    %255 = arith.negf %254 : vector<1x128xf32>
    %256 = math.exp %255 : vector<1x128xf32>
    %cst_83 = arith.constant 1.000000e+00 : f32
    %257 = vector.broadcast %cst_83 : f32 to vector<1x128xf32>
    %258 = arith.addf %257, %256 : vector<1x128xf32>
    %259 = arith.divf %257, %258 : vector<1x128xf32>
    %c0_84 = arith.constant 0 : index
    %c0_85 = arith.constant 0 : index
    %c0_86 = arith.constant 0 : index
    %260 = vector.load %arg13[%c0_84, %c0_85, %c0_86] : memref<1x1x128xf32, #tpu.memory_space<vmem>>, vector<1x1x128xf32>
    %261 = vector.shape_cast %260 : vector<1x1x128xf32> to vector<1x128xf32>
    %262 = vector.shape_cast %259 : vector<1x128xf32> to vector<1x1x128xf32>
    tpu.vector_store %arg13[%c0_84, %c0_85, %c0_86], %262 {strides = array<i32>} : memref<1x1x128xf32, #tpu.memory_space<vmem>>, vector<1x1x128xf32>,
    return
  }
  func.func @transform_0(%arg0: i32) -> (i32, i32, i32) {
    %c0_i32 = arith.constant 0 : i32
    %c0_i32_0 = arith.constant 0 : i32
    %c0_i32_1 = arith.constant 0 : i32
    return %arg0, %c0_i32, %c0_i32_0 : i32, i32, i32
  }
  func.func @transform_1(%arg0: i32) -> (i32, i32) {
    %c0_i32 = arith.constant 0 : i32
    %c0_i32_0 = arith.constant 0 : i32
    %c0_i32_1 = arith.constant 0 : i32
    return %c0_i32, %c0_i32_0 : i32, i32
  }
  func.func @transform_2(%arg0: i32) -> (i32, i32) {
    %c0_i32 = arith.constant 0 : i32
    %c0_i32_0 = arith.constant 0 : i32
    %c0_i32_1 = arith.constant 0 : i32
    return %c0_i32, %c0_i32_0 : i32, i32
  }
  func.func @transform_3(%arg0: i32) -> (i32, i32) {
    %c0_i32 = arith.constant 0 : i32
    %c0_i32_0 = arith.constant 0 : i32
    %c0_i32_1 = arith.constant 0 : i32
    return %c0_i32, %c0_i32_0 : i32, i32
  }
  func.func @transform_4(%arg0: i32) -> (i32, i32) {
    %c0_i32 = arith.constant 0 : i32
    %c0_i32_0 = arith.constant 0 : i32
    %c0_i32_1 = arith.constant 0 : i32
    return %c0_i32, %c0_i32_0 : i32, i32
  }
  func.func @transform_5(%arg0: i32) -> (i32, i32) {
    %c0_i32 = arith.constant 0 : i32
    %c0_i32_0 = arith.constant 0 : i32
    %c0_i32_1 = arith.constant 0 : i32
    return %c0_i32, %c0_i32_0 : i32, i32
  }
  func.func @transform_6(%arg0: i32) -> (i32, i32) {
    %c0_i32 = arith.constant 0 : i32
    %c0_i32_0 = arith.constant 0 : i32
    %c0_i32_1 = arith.constant 0 : i32
    return %c0_i32, %c0_i32_0 : i32, i32
  }
  func.func @transform_7(%arg0: i32) -> (i32, i32) {
    %c0_i32 = arith.constant 0 : i32
    %c0_i32_0 = arith.constant 0 : i32
    %c0_i32_1 = arith.constant 0 : i32
    return %c0_i32, %c0_i32_0 : i32, i32
  }
  func.func @transform_8(%arg0: i32) -> (i32, i32) {
    %c0_i32 = arith.constant 0 : i32
    %c0_i32_0 = arith.constant 0 : i32
    %c0_i32_1 = arith.constant 0 : i32
    return %c0_i32, %c0_i32_0 : i32, i32
  }
  func.func @transform_9(%arg0: i32) -> (i32, i32) {
    %c0_i32 = arith.constant 0 : i32
    %c0_i32_0 = arith.constant 0 : i32
    %c0_i32_1 = arith.constant 0 : i32
    return %c0_i32, %c0_i32_0 : i32, i32
  }
  func.func @transform_10(%arg0: i32) -> (i32, i32) {
    %c0_i32 = arith.constant 0 : i32
    %c0_i32_0 = arith.constant 0 : i32
    %c0_i32_1 = arith.constant 0 : i32
    return %c0_i32, %c0_i32_0 : i32, i32
  }
  func.func @transform_11(%arg0: i32) -> (i32, i32) {
    %c0_i32 = arith.constant 0 : i32
    %c0_i32_0 = arith.constant 0 : i32
    %c0_i32_1 = arith.constant 0 : i32
    return %c0_i32, %c0_i32_0 : i32, i32
  }
  func.func @transform_12(%arg0: i32) -> (i32, i32, i32) {
    %c0_i32 = arith.constant 0 : i32
    %c0_i32_0 = arith.constant 0 : i32
    %c0_i32_1 = arith.constant 0 : i32
    return %arg0, %c0_i32, %c0_i32_0 : i32, i32, i32
  }
}

</mosaic_0001>

<llo_original>
// kernel: tpu_custom_call.1
$region0: #{tpu_custom_call.1}
  #allocation0 [shape = 'u32[]', space=smem, size = 0x4, offset = 0x4, fixed_abs, tag = 'smem constant byte address 0x4 - core index']
  #allocation1 [shape = 'u32[144,128]{1,0:T(1,128)}', space=vmem, size = 0x12000, scoped, tag = 'internal scratch']
  %s0 = inlined_call_operand.hbm [shape: f32[2,8,16], index: 0, kind: input, shape index: {}]
  %s1 = inlined_call_operand.hbm [shape: f32[16,96], index: 1, kind: input, shape index: {}]
  %s2 = inlined_call_operand.vmem [shape: f32[1,96], index: 2, kind: input, shape index: {}]
  %s3 = inlined_call_operand.hbm [shape: f32[32,32], index: 3, kind: input, shape index: {}]
  %s4 = inlined_call_operand.vmem [shape: f32[1,32], index: 4, kind: input, shape index: {}]
  %s5 = inlined_call_operand.vmem [shape: f32[1,32], index: 5, kind: input, shape index: {}]
  %s6 = inlined_call_operand.hbm [shape: f32[32,64], index: 6, kind: input, shape index: {}]
  %s7 = inlined_call_operand.vmem [shape: f32[1,64], index: 7, kind: input, shape index: {}]
  %s8 = inlined_call_operand.hbm [shape: f32[32,32], index: 8, kind: input, shape index: {}]
  %s9 = inlined_call_operand.vmem [shape: f32[1,32], index: 9, kind: input, shape index: {}]
  %s10 = inlined_call_operand.vmem [shape: f32[32,128], index: 10, kind: input, shape index: {}]
  %s11 = inlined_call_operand.vmem [shape: f32[1,128], index: 11, kind: input, shape index: {}]
  %s12 = inlined_call_operand.hbm [shape: f32[2,1,128], index: 12, kind: output, shape index: {}]
  %s13 = sld [smem:[#allocation0]]
  $region101: #{tpu_custom_call.1} parent=0
    _
  %s15 = ssub.s32 1, %s13
  %s16 = scalar_select 0, %s15, %s13
  $region1: #{tpu_custom_call.1} parent=0
    #allocation2 [shape = 'u8[8192]{0}', space=vmem, size = 0x2000, scoped, tag = 'input window, operand 0']
    #allocation3 [shape = 's32[2]{0}', space=sflag, size = 0x8, scoped, tag = 'scoped memory for tpu_custom_call.1']
    #allocation4 [shape = 's32[2]{0}', space=sflag, size = 0x8, scoped, tag = 'scoped memory for tpu_custom_call.1']
    #allocation5 [shape = 'u8[8192]{0}', space=vmem, size = 0x2000, scoped, tag = 'input window, operand 1, single buffered']
    #allocation6 [shape = 's32[1]{0}', space=sflag, size = 0x4, scoped, tag = 'scoped memory for tpu_custom_call.1']
    #allocation7 [shape = 'u8[16384]{0}', space=vmem, size = 0x4000, scoped, tag = 'input window, operand 3, single buffered']
    #allocation8 [shape = 'u8[16384]{0}', space=vmem, size = 0x4000, scoped, tag = 'input window, operand 6, single buffered']
    #allocation9 [shape = 's32[1]{0}', space=sflag, size = 0x4, scoped, tag = 'scoped memory for tpu_custom_call.1']
    #allocation10 [shape = 'u8[16384]{0}', space=vmem, size = 0x4000, scoped, tag = 'input window, operand 8, single buffered']
    #allocation11 [shape = 'u8[1024]{0}', space=vmem, size = 0x400, scoped, tag = 'output window, operand 0']
    %17 = vsyncpa [#allocation3], 0
    %s18 = scalar_lea.sflag [#allocation3], 1
    %19 = vsyncpa %s18, 0
    %20 = vsyncpa [#allocation6], 0
    %21 = vsyncpa [#allocation9], 0
    %22 = vsyncpa [#allocation4], 0
    %s23 = scalar_lea.sflag [#allocation4], 1
    %24 = vsyncpa %s23, 0
    loop: start=0, step=1, limit=4
    $region2: #{tpu_custom_call.1} parent=1 // loop_pre_header
      _
    $region3: #{tpu_custom_call.1} parent=1 // loop_header
      %s26 = sphi 0, %s30
      %p27 = scmp.ge.s32.totalorder %s26, 4
      %s36 = sphi 0, %s38
      %s39 = sphi 0, %s36
      %s40 = sphi 0, %s39
      %s56 = sphi 0, %s40
      %s60 = sphi 0, %s60
      %s62 = sphi 0, %s60
      %s63 = sphi 0, %s62
      %s77 = sphi 0, %s63
      %s81 = sphi 0, %s81
      %s83 = sphi 0, %s81
      %s84 = sphi 0, %s83
      %s98 = sphi 0, %s84
      %s102 = sphi 0, %s102
      %s104 = sphi 0, %s102
      %s105 = sphi 0, %s104
      %s119 = sphi 0, %s105
      %s123 = sphi 0, %s123
      %s125 = sphi 0, %s123
      %s126 = sphi 0, %s125
      %s140 = sphi 0, %s126
      %s144 = sphi 0, %s144
      %s146 = sphi 0, %s144
      %s147 = sphi 0, %s146
      %s161 = sphi 0, %s147
      %s165 = sphi 0, %s165
      %s167 = sphi 0, %s165
      %s168 = sphi 0, %s167
      %s182 = sphi 0, %s168
      %s186 = sphi 0, %s186
      %s188 = sphi 0, %s186
      %s189 = sphi 0, %s188
      %s203 = sphi 0, %s189
      %s207 = sphi 0, %s207
      %s209 = sphi 0, %s207
      %s210 = sphi 0, %s209
      %s224 = sphi 0, %s210
      %s228 = sphi 0, %s228
      %s230 = sphi 0, %s228
      %s231 = sphi 0, %s230
      %s245 = sphi 0, %s231
      %s249 = sphi 0, %s249
      %s251 = sphi 0, %s249
      %s252 = sphi 0, %s251
      %s266 = sphi 0, %s252
      %s270 = sphi 0, %s270
      %s272 = sphi 0, %s270
      %s273 = sphi 0, %s272
      %s287 = sphi 0, %s273
      %s293 = sphi 0, %s295
      %s296 = sphi 0, %s293
      %s297 = sphi 0, %s296
      %s313 = sphi 0, %s297
    $region4: #{tpu_custom_call.1} parent=1 // loop_header_branch
      %29 = sbr.rel (%p27) target = $region8
    $region5: #{tpu_custom_call.1} parent=1 // loop_body
      %s31 = ssub.s32 %s26, 1
      %s32 = ssub.s32 %s26, 2
      %s33 = sadd.s32 %s26, 1
      %s34 = ssub.s32 %s26, %s33
      %p35 = scmp.eq.s32.totalorder %s34, 0
      %s37 = sadd.s32 %s36, 1
      %s38 = scalar_select %p35, %s36, %s37
      %p41 = pneg %p35
      %p42 = scmp.eq.s32.totalorder %s26, 1
      %p43 = por %p41, %p42
      %p44 = scmp.ne.s32.totalorder %s36, %s39
      %p45 = scmp.eq.s32.totalorder %s26, 0
      %p46 = por %p44, %p45
      %p47 = scmp.ne.s32.totalorder %s36, %s39
      %p48 = scmp.eq.s32.totalorder %s31, 1
      %p49 = por %p47, %p48
      %p50 = scmp.ne.s32.totalorder %s39, %s40
      %p51 = scmp.eq.s32.totalorder %s31, 0
      %p52 = por %p50, %p51
      %p53 = scmp.ne.s32.totalorder %s39, %s40
      %p54 = scmp.eq.s32.totalorder %s32, 1
      %p55 = por %p53, %p54
      %p57 = scmp.ne.s32.totalorder %s40, %s56
      %p58 = scmp.eq.s32.totalorder %s32, 0
      %p59 = por %p57, %p58
      %s61 = sadd.s32 %s60, 1
      %p64 = scmp.eq.s32.totalorder %s26, 1
      %p65 = scmp.ne.s32.totalorder %s60, %s62
      %p66 = scmp.eq.s32.totalorder %s26, 0
      %p67 = por %p65, %p66
      %p68 = scmp.ne.s32.totalorder %s60, %s62
      %p69 = scmp.eq.s32.totalorder %s31, 1
      %p70 = por %p68, %p69
      %p71 = scmp.ne.s32.totalorder %s62, %s63
      %p72 = scmp.eq.s32.totalorder %s31, 0
      %p73 = por %p71, %p72
      %p74 = scmp.ne.s32.totalorder %s62, %s63
      %p75 = scmp.eq.s32.totalorder %s32, 1
      %p76 = por %p74, %p75
      %p78 = scmp.ne.s32.totalorder %s63, %s77
      %p79 = scmp.eq.s32.totalorder %s32, 0
      %p80 = por %p78, %p79
      %s82 = sadd.s32 %s81, 1
      %p85 = scmp.eq.s32.totalorder %s26, 1
      %p86 = scmp.ne.s32.totalorder %s81, %s83
      %p87 = scmp.eq.s32.totalorder %s26, 0
      %p88 = por %p86, %p87
      %p89 = scmp.ne.s32.totalorder %s81, %s83
      %p90 = scmp.eq.s32.totalorder %s31, 1
      %p91 = por %p89, %p90
      %p92 = scmp.ne.s32.totalorder %s83, %s84
      %p93 = scmp.eq.s32.totalorder %s31, 0
      %p94 = por %p92, %p93
      %p95 = scmp.ne.s32.totalorder %s83, %s84
      %p96 = scmp.eq.s32.totalorder %s32, 1
      %p97 = por %p95, %p96
      %p99 = scmp.ne.s32.totalorder %s84, %s98
      %p100 = scmp.eq.s32.totalorder %s32, 0
      %p101 = por %p99, %p100
      %s103 = sadd.s32 %s102, 1
      %p106 = scmp.eq.s32.totalorder %s26, 1
      %p107 = scmp.ne.s32.totalorder %s102, %s104
      %p108 = scmp.eq.s32.totalorder %s26, 0
      %p109 = por %p107, %p108
      %p110 = scmp.ne.s32.totalorder %s102, %s104
      %p111 = scmp.eq.s32.totalorder %s31, 1
      %p112 = por %p110, %p111
      %p113 = scmp.ne.s32.totalorder %s104, %s105
      %p114 = scmp.eq.s32.totalorder %s31, 0
      %p115 = por %p113, %p114
      %p116 = scmp.ne.s32.totalorder %s104, %s105
      %p117 = scmp.eq.s32.totalorder %s32, 1
      %p118 = por %p116, %p117
      %p120 = scmp.ne.s32.totalorder %s105, %s119
      %p121 = scmp.eq.s32.totalorder %s32, 0
      %p122 = por %p120, %p121
      %s124 = sadd.s32 %s123, 1
      %p127 = scmp.eq.s32.totalorder %s26, 1
      %p128 = scmp.ne.s32.totalorder %s123, %s125
      %p129 = scmp.eq.s32.totalorder %s26, 0
      %p130 = por %p128, %p129
      %p131 = scmp.ne.s32.totalorder %s123, %s125
      %p132 = scmp.eq.s32.totalorder %s31, 1
      %p133 = por %p131, %p132
      %p134 = scmp.ne.s32.totalorder %s125, %s126
      %p135 = scmp.eq.s32.totalorder %s31, 0
      %p136 = por %p134, %p135
      %p137 = scmp.ne.s32.totalorder %s125, %s126
      %p138 = scmp.eq.s32.totalorder %s32, 1
      %p139 = por %p137, %p138
      %p141 = scmp.ne.s32.totalorder %s126, %s140
      %p142 = scmp.eq.s32.totalorder %s32, 0
      %p143 = por %p141, %p142
      %s145 = sadd.s32 %s144, 1
      %p148 = scmp.eq.s32.totalorder %s26, 1
      %p149 = scmp.ne.s32.totalorder %s144, %s146
      %p150 = scmp.eq.s32.totalorder %s26, 0
      %p151 = por %p149, %p150
      %p152 = scmp.ne.s32.totalorder %s144, %s146
      %p153 = scmp.eq.s32.totalorder %s31, 1
      %p154 = por %p152, %p153
      %p155 = scmp.ne.s32.totalorder %s146, %s147
      %p156 = scmp.eq.s32.totalorder %s31, 0
      %p157 = por %p155, %p156
      %p158 = scmp.ne.s32.totalorder %s146, %s147
      %p159 = scmp.eq.s32.totalorder %s32, 1
      %p160 = por %p158, %p159
      %p162 = scmp.ne.s32.totalorder %s147, %s161
      %p163 = scmp.eq.s32.totalorder %s32, 0
      %p164 = por %p162, %p163
      %s166 = sadd.s32 %s165, 1
      %p169 = scmp.eq.s32.totalorder %s26, 1
      %p170 = scmp.ne.s32.totalorder %s165, %s167
      %p171 = scmp.eq.s32.totalorder %s26, 0
      %p172 = por %p170, %p171
      %p173 = scmp.ne.s32.totalorder %s165, %s167
      %p174 = scmp.eq.s32.totalorder %s31, 1
      %p175 = por %p173, %p174
      %p176 = scmp.ne.s32.totalorder %s167, %s168
      %p177 = scmp.eq.s32.totalorder %s31, 0
      %p178 = por %p176, %p177
      %p179 = scmp.ne.s32.totalorder %s167, %s168
      %p180 = scmp.eq.s32.totalorder %s32, 1
      %p181 = por %p179, %p180
      %p183 = scmp.ne.s32.totalorder %s168, %s182
      %p184 = scmp.eq.s32.totalorder %s32, 0
      %p185 = por %p183, %p184
      %s187 = sadd.s32 %s186, 1
      %p190 = scmp.eq.s32.totalorder %s26, 1
      %p191 = scmp.ne.s32.totalorder %s186, %s188
      %p192 = scmp.eq.s32.totalorder %s26, 0
      %p193 = por %p191, %p192
      %p194 = scmp.ne.s32.totalorder %s186, %s188
      %p195 = scmp.eq.s32.totalorder %s31, 1
      %p196 = por %p194, %p195
      %p197 = scmp.ne.s32.totalorder %s188, %s189
      %p198 = scmp.eq.s32.totalorder %s31, 0
      %p199 = por %p197, %p198
      %p200 = scmp.ne.s32.totalorder %s188, %s189
      %p201 = scmp.eq.s32.totalorder %s32, 1
      %p202 = por %p200, %p201
      %p204 = scmp.ne.s32.totalorder %s189, %s203
      %p205 = scmp.eq.s32.totalorder %s32, 0
      %p206 = por %p204, %p205
      %s208 = sadd.s32 %s207, 1
      %p211 = scmp.eq.s32.totalorder %s26, 1
      %p212 = scmp.ne.s32.totalorder %s207, %s209
      %p213 = scmp.eq.s32.totalorder %s26, 0
      %p214 = por %p212, %p213
      %p215 = scmp.ne.s32.totalorder %s207, %s209
      %p216 = scmp.eq.s32.totalorder %s31, 1
      %p217 = por %p215, %p216
      %p218 = scmp.ne.s32.totalorder %s209, %s210
      %p219 = scmp.eq.s32.totalorder %s31, 0
      %p220 = por %p218, %p219
      %p221 = scmp.ne.s32.totalorder %s209, %s210
      %p222 = scmp.eq.s32.totalorder %s32, 1
      %p223 = por %p221, %p222
      %p225 = scmp.ne.s32.totalorder %s210, %s224
      %p226 = scmp.eq.s32.totalorder %s32, 0
      %p227 = por %p225, %p226
      %s229 = sadd.s32 %s228, 1
      %p232 = scmp.eq.s32.totalorder %s26, 1
      %p233 = scmp.ne.s32.totalorder %s228, %s230
      %p234 = scmp.eq.s32.totalorder %s26, 0
      %p235 = por %p233, %p234
      %p236 = scmp.ne.s32.totalorder %s228, %s230
      %p237 = scmp.eq.s32.totalorder %s31, 1
      %p238 = por %p236, %p237
      %p239 = scmp.ne.s32.totalorder %s230, %s231
      %p240 = scmp.eq.s32.totalorder %s31, 0
      %p241 = por %p239, %p240
      %p242 = scmp.ne.s32.totalorder %s230, %s231
      %p243 = scmp.eq.s32.totalorder %s32, 1
      %p244 = por %p242, %p243
      %p246 = scmp.ne.s32.totalorder %s231, %s245
      %p247 = scmp.eq.s32.totalorder %s32, 0
      %p248 = por %p246, %p247
      %s250 = sadd.s32 %s249, 1
      %p253 = scmp.eq.s32.totalorder %s26, 1
      %p254 = scmp.ne.s32.totalorder %s249, %s251
      %p255 = scmp.eq.s32.totalorder %s26, 0
      %p256 = por %p254, %p255
      %p257 = scmp.ne.s32.totalorder %s249, %s251
      %p258 = scmp.eq.s32.totalorder %s31, 1
      %p259 = por %p257, %p258
      %p260 = scmp.ne.s32.totalorder %s251, %s252
      %p261 = scmp.eq.s32.totalorder %s31, 0
      %p262 = por %p260, %p261
      %p263 = scmp.ne.s32.totalorder %s251, %s252
      %p264 = scmp.eq.s32.totalorder %s32, 1
      %p265 = por %p263, %p264
      %p267 = scmp.ne.s32.totalorder %s252, %s266
      %p268 = scmp.eq.s32.totalorder %s32, 0
      %p269 = por %p267, %p268
      %s271 = sadd.s32 %s270, 1
      %p274 = scmp.eq.s32.totalorder %s26, 1
      %p275 = scmp.ne.s32.totalorder %s270, %s272
      %p276 = scmp.eq.s32.totalorder %s26, 0
      %p277 = por %p275, %p276
      %p278 = scmp.ne.s32.totalorder %s270, %s272
      %p279 = scmp.eq.s32.totalorder %s31, 1
      %p280 = por %p278, %p279
      %p281 = scmp.ne.s32.totalorder %s272, %s273
      %p282 = scmp.eq.s32.totalorder %s31, 0
      %p283 = por %p281, %p282
      %p284 = scmp.ne.s32.totalorder %s272, %s273
      %p285 = scmp.eq.s32.totalorder %s32, 1
      %p286 = por %p284, %p285
      %p288 = scmp.ne.s32.totalorder %s273, %s287
      %p289 = scmp.eq.s32.totalorder %s32, 0
      %p290 = por %p288, %p289
      %s291 = ssub.s32 %s26, %s33
      %p292 = scmp.eq.s32.totalorder %s291, 0
      %s294 = sadd.s32 %s293, 1
      %s295 = scalar_select %p292, %s293, %s294
      %p298 = pneg %p292
      %p299 = scmp.eq.s32.totalorder %s26, 1
      %p300 = por %p298, %p299
      %p301 = scmp.ne.s32.totalorder %s293, %s296
      %p302 = scmp.eq.s32.totalorder %s26, 0
      %p303 = por %p301, %p302
      %p304 = scmp.ne.s32.totalorder %s293, %s296
      %p305 = scmp.eq.s32.totalorder %s31, 1
      %p306 = por %p304, %p305
      %p307 = scmp.ne.s32.totalorder %s296, %s297
      %p308 = scmp.eq.s32.totalorder %s31, 0
      %p309 = por %p307, %p308
      %p310 = scmp.ne.s32.totalorder %s296, %s297
      %p311 = scmp.eq.s32.totalorder %s32, 1
      %p312 = por %p310, %p311
      %p314 = scmp.ne.s32.totalorder %s297, %s313
      %p315 = scmp.eq.s32.totalorder %s32, 0
      %p316 = por %p314, %p315
      %p317 = scmp.le.s32.totalorder 1, %s26
      %p318 = scmp.lt.s32.totalorder %s26, 3
      %p319 = pnand %p317, %p318
      %p320 = pneg %p319
      // Predicated region
      $region9: #{tpu_custom_call.1} parent=5 // pred_check
        _
      $region10: #{tpu_custom_call.1} parent=5 // pred_check_branch
        %322 = sbr.rel (%p319) target = $region12
      $region11: #{tpu_custom_call.1} parent=5 // pred_region
        %s323 = ssub.s32 %s26, 1
        // Predicated region
        $region13: #{tpu_custom_call.1} parent=11 // pred_check
          %p324 = pneg %p73
        $region14: #{tpu_custom_call.1} parent=11 // pred_check_branch
          %326 = sbr.rel (%p324) target = $region16
        $region15: #{tpu_custom_call.1} parent=11 // pred_region
          %s328 = ssub.s32 256, 256
          %329 = vsyncadd [#allocation6], %s328
          %s330 = sshll.u32 [#allocation5], 4
          %s331 = int_to_ptr.vmem [resolvable:$true] %s330
          %336 = dma.hbm_to_vmem [thread:$0]  %s1, 256, %s331, [#allocation6], 128, 128, 8
        $region16: #{tpu_custom_call.1} parent=11 // pred_fallthru
          _
        // Predicated region
        $region17: #{tpu_custom_call.1} parent=11 // pred_check
          %p337 = pneg %p94
        $region18: #{tpu_custom_call.1} parent=11 // pred_check_branch
          %339 = sbr.rel (%p337) target = $region20
        $region19: #{tpu_custom_call.1} parent=11 // pred_region
          _
        $region20: #{tpu_custom_call.1} parent=11 // pred_fallthru
          _
        // Predicated region
        $region21: #{tpu_custom_call.1} parent=11 // pred_check
          %p340 = pneg %p115
        $region22: #{tpu_custom_call.1} parent=11 // pred_check_branch
          %342 = sbr.rel (%p340) target = $region24
        $region23: #{tpu_custom_call.1} parent=11 // pred_region
          %s344 = ssub.s32 512, 512
          %345 = vsyncadd [#allocation6], %s344
          %s346 = sshll.u32 [#allocation7], 4
          %s347 = int_to_ptr.vmem [resolvable:$true] %s346
          %352 = dma.hbm_to_vmem [thread:$0]  %s3, 512, %s347, [#allocation6], 128, 128, 8
        $region24: #{tpu_custom_call.1} parent=11 // pred_fallthru
          _
        // Predicated region
        $region25: #{tpu_custom_call.1} parent=11 // pred_check
          %p353 = pneg %p136
        $region26: #{tpu_custom_call.1} parent=11 // pred_check_branch
          %355 = sbr.rel (%p353) target = $region28
        $region27: #{tpu_custom_call.1} parent=11 // pred_region
          _
        $region28: #{tpu_custom_call.1} parent=11 // pred_fallthru
          _
        // Predicated region
        $region29: #{tpu_custom_call.1} parent=11 // pred_check
          %p356 = pneg %p157
        $region30: #{tpu_custom_call.1} parent=11 // pred_check_branch
          %358 = sbr.rel (%p356) target = $region32
        $region31: #{tpu_custom_call.1} parent=11 // pred_region
          _
        $region32: #{tpu_custom_call.1} parent=11 // pred_fallthru
          _
        // Predicated region
        $region33: #{tpu_custom_call.1} parent=11 // pred_check
          %p359 = pneg %p178
        $region34: #{tpu_custom_call.1} parent=11 // pred_check_branch
          %361 = sbr.rel (%p359) target = $region36
        $region35: #{tpu_custom_call.1} parent=11 // pred_region
          %s363 = ssub.s32 512, 512
          %364 = vsyncadd [#allocation9], %s363
          %s365 = sshll.u32 [#allocation8], 4
          %s366 = int_to_ptr.vmem [resolvable:$true] %s365
          %371 = dma.hbm_to_vmem [thread:$0]  %s6, 512, %s366, [#allocation9], 128, 128, 8
        $region36: #{tpu_custom_call.1} parent=11 // pred_fallthru
          _
        // Predicated region
        $region37: #{tpu_custom_call.1} parent=11 // pred_check
          %p372 = pneg %p199
        $region38: #{tpu_custom_call.1} parent=11 // pred_check_branch
          %374 = sbr.rel (%p372) target = $region40
        $region39: #{tpu_custom_call.1} parent=11 // pred_region
          _
        $region40: #{tpu_custom_call.1} parent=11 // pred_fallthru
          _
        // Predicated region
        $region41: #{tpu_custom_call.1} parent=11 // pred_check
          %p375 = pneg %p220
        $region42: #{tpu_custom_call.1} parent=11 // pred_check_branch
          %377 = sbr.rel (%p375) target = $region44
        $region43: #{tpu_custom_call.1} parent=11 // pred_region
          %s379 = ssub.s32 512, 512
          %380 = vsyncadd [#allocation9], %s379
          %s381 = sshll.u32 [#allocation10], 4
          %s382 = int_to_ptr.vmem [resolvable:$true] %s381
          %387 = dma.hbm_to_vmem [thread:$0]  %s8, 512, %s382, [#allocation9], 128, 128, 8
        $region44: #{tpu_custom_call.1} parent=11 // pred_fallthru
          _
        // Predicated region
        $region45: #{tpu_custom_call.1} parent=11 // pred_check
          %p388 = pneg %p241
        $region46: #{tpu_custom_call.1} parent=11 // pred_check_branch
          %390 = sbr.rel (%p388) target = $region48
        $region47: #{tpu_custom_call.1} parent=11 // pred_region
          _
        $region48: #{tpu_custom_call.1} parent=11 // pred_fallthru
          _
        // Predicated region
        $region49: #{tpu_custom_call.1} parent=11 // pred_check
          %p391 = pneg %p262
        $region50: #{tpu_custom_call.1} parent=11 // pred_check_branch
          %393 = sbr.rel (%p391) target = $region52
        $region51: #{tpu_custom_call.1} parent=11 // pred_region
          _
        $region52: #{tpu_custom_call.1} parent=11 // pred_fallthru
          _
        // Predicated region
        $region53: #{tpu_custom_call.1} parent=11 // pred_check
          %p394 = pneg %p283
        $region54: #{tpu_custom_call.1} parent=11 // pred_check_branch
          %396 = sbr.rel (%p394) target = $region56
        $region55: #{tpu_custom_call.1} parent=11 // pred_region
          _
        $region56: #{tpu_custom_call.1} parent=11 // pred_fallthru
          _
      $region12: #{tpu_custom_call.1} parent=5 // pred_fallthru
        _
      %p397 = scmp.lt.s32.totalorder %s26, 2
      // Predicated region
      $region57: #{tpu_custom_call.1} parent=5 // pred_check
        %p398 = pneg %p397
      $region58: #{tpu_custom_call.1} parent=5 // pred_check_branch
        %400 = sbr.rel (%p398) target = $region60
      $region59: #{tpu_custom_call.1} parent=5 // pred_region
        // Predicated region
        $region61: #{tpu_custom_call.1} parent=59 // pred_check
          %p401 = pneg %p46
        $region62: #{tpu_custom_call.1} parent=59 // pred_check_branch
          %403 = sbr.rel (%p401) target = $region64
        $region63: #{tpu_custom_call.1} parent=59 // pred_region
          %s404 = sand.u32 %s36, 1
          %s405 = scalar_lea.sflag [#allocation3], %s404
          %s406 = sand.u32 %s36, 1
          %s407 = smul.addr %s406, 8
          %s408 = scalar_lea.vmem [#allocation2], %s407
          %s410 = ssub.s32 128, 128
          %411 = vsyncadd %s405, %s410
          %s412 = smul.addr %s26, 128
          %s413 = scalar_lea.hbm %s0, %s412
          %s415 = sshll.u32 %s408, 4
          %s416 = int_to_ptr.vmem [resolvable:$true] %s415
          %418 = dma.hbm_to_vmem [thread:$0]  %s413, 128, %s416, %s405
        $region64: #{tpu_custom_call.1} parent=59 // pred_fallthru
          _
      $region60: #{tpu_custom_call.1} parent=5 // pred_fallthru
        _
      %p419 = scmp.le.s32.totalorder 1, %s26
      %p420 = scmp.lt.s32.totalorder %s26, 3
      %p421 = pnand %p419, %p420
      %p422 = pneg %p421
      // Predicated region
      $region65: #{tpu_custom_call.1} parent=5 // pred_check
        _
      $region66: #{tpu_custom_call.1} parent=5 // pred_check_branch
        %424 = sbr.rel (%p421) target = $region68
      $region67: #{tpu_custom_call.1} parent=5 // pred_region
        %s425 = ssub.s32 %s26, 1
        %s426 = sand.u32 %s39, 1
        %s427 = scalar_lea.sflag [#allocation3], %s426
        %s428 = sand.u32 %s39, 1
        %s429 = smul.addr %s428, 8
        %s430 = scalar_lea.vmem [#allocation2], %s429
        // Predicated region
        $region69: #{tpu_custom_call.1} parent=67 // pred_check
          %p431 = pneg %p52
        $region70: #{tpu_custom_call.1} parent=67 // pred_check_branch
          %433 = sbr.rel (%p431) target = $region72
        $region71: #{tpu_custom_call.1} parent=67 // pred_region
          %434 = dma.done %s427, 128
        $region72: #{tpu_custom_call.1} parent=67 // pred_fallthru
          _
        // Predicated region
        $region73: #{tpu_custom_call.1} parent=67 // pred_check
          %p435 = pneg %p73
        $region74: #{tpu_custom_call.1} parent=67 // pred_check_branch
          %437 = sbr.rel (%p435) target = $region76
        $region75: #{tpu_custom_call.1} parent=67 // pred_region
          %438 = dma.done [#allocation6], 256
        $region76: #{tpu_custom_call.1} parent=67 // pred_fallthru
          _
        // Predicated region
        $region77: #{tpu_custom_call.1} parent=67 // pred_check
          %p439 = pneg %p115
        $region78: #{tpu_custom_call.1} parent=67 // pred_check_branch
          %441 = sbr.rel (%p439) target = $region80
        $region79: #{tpu_custom_call.1} parent=67 // pred_region
          %442 = dma.done [#allocation6], 512
        $region80: #{tpu_custom_call.1} parent=67 // pred_fallthru
          _
        // Predicated region
        $region81: #{tpu_custom_call.1} parent=67 // pred_check
          %p443 = pneg %p178
        $region82: #{tpu_custom_call.1} parent=67 // pred_check_branch
          %445 = sbr.rel (%p443) target = $region84
        $region83: #{tpu_custom_call.1} parent=67 // pred_region
          %446 = dma.done [#allocation9], 512
        $region84: #{tpu_custom_call.1} parent=67 // pred_fallthru
          _
        // Predicated region
        $region85: #{tpu_custom_call.1} parent=67 // pred_check
          %p447 = pneg %p220
        $region86: #{tpu_custom_call.1} parent=67 // pred_check_branch
          %449 = sbr.rel (%p447) target = $region88
        $region87: #{tpu_custom_call.1} parent=67 // pred_region
          %450 = dma.done [#allocation9], 512
        $region88: #{tpu_custom_call.1} parent=67 // pred_fallthru
          _
        %s451 = sand.u32 %s39, 1
        %s452 = scalar_lea.sflag [#allocation3], %s451
        %s453 = sand.u32 %s39, 1
        %s454 = smul.addr %s453, 8
        %s455 = scalar_lea.vmem [#allocation2], %s454
        %p456 = pneg %p52
        %p457 = pneg %p49
        %p458 = pneg %p73
        %p459 = pneg %p70
        %p460 = pneg %p94
        %p461 = pneg %p91
        %p462 = pneg %p115
        %p463 = pneg %p112
        %p464 = pneg %p136
        %p465 = pneg %p133
        %p466 = pneg %p157
        %p467 = pneg %p154
        %p468 = pneg %p178
        %p469 = pneg %p175
        %p470 = pneg %p199
        %p471 = pneg %p196
        %p472 = pneg %p220
        %p473 = pneg %p217
        %p474 = pneg %p241
        %p475 = pneg %p238
        %p476 = pneg %p262
        %p477 = pneg %p259
        %p478 = pneg %p283
        %p479 = pneg %p280
        %p480 = pneg %p309
        %p481 = pneg %p306
        %s482 = sand.u32 %s296, 1
        %s483 = scalar_lea.sflag [#allocation4], %s482
        %s484 = sand.u32 %s296, 1
        %s485 = scalar_lea.vmem [#allocation11], %s484
        %v486 = vld [vmem:[%s430] sm:$0xff]
        %v487 = vld [vmem:[#allocation5] sm:$0xff]
        %v488 = vld [vmem:[#allocation5 + $0x8] sm:$0xff]
        %v489 = vld [vmem:[%s2] sm:$0x1]
        %v491 = vlaneseq
        %v492 = vshrl.u32 %v491, 7
        %v493 = vsub.s32 0, %v492
        %v494 = vrot.slane %v489, %v493
        %vm496 = vcmask 130048
        %v498 = vsel %vm496, %v486, 0
        %500 = vmatprep.subr.mxu0 0.0
        %501 = vmatpush1.msra.mxu0 %v487
        %502 = vmatprep.subr.mxu0 0.0
        %503 = vmatpush1.msra.mxu0 %v488
        %504 = vmatprep.subr.mxu0 0.0
        %505 = vmatpush1.msra.mxu0 0.0
        %506 = vmatprep.subr.mxu0 0.0
        %507 = vmatpush1.msra.mxu0 0.0
        %508 = vmatprep.subr.mxu0 0.0
        %509 = vmatpush1.msra.mxu0 0.0
        %510 = vmatprep.subr.mxu0 0.0
        %511 = vmatpush1.msra.mxu0 0.0
        %512 = vmatprep.subr.mxu0 0.0
        %513 = vmatpush1.msra.mxu0 0.0
        %514 = vmatprep.subr.mxu0 0.0
        %515 = vmatpush1.msra.mxu0 0.0
        %516 = vmatprep.subr.mxu0 0.0
        %517 = vmatpush1.msra.mxu0 0.0
        %518 = vmatprep.subr.mxu0 0.0
        %519 = vmatpush1.msra.mxu0 0.0
        %520 = vmatprep.subr.mxu0 0.0
        %521 = vmatpush1.msra.mxu0 0.0
        %522 = vmatprep.subr.mxu0 0.0
        %523 = vmatpush1.msra.mxu0 0.0
        %524 = vmatprep.subr.mxu0 0.0
        %525 = vmatpush1.msra.mxu0 0.0
        %526 = vmatprep.subr.mxu0 0.0
        %527 = vmatpush1.msra.mxu0 0.0
        %528 = vmatprep.subr.mxu0 0.0
        %529 = vmatpush1.msra.mxu0 0.0
        %530 = vmatprep.subr.mxu0 0.0
        %531 = vmatpush1.msra.mxu0 0.0
        %532 = vmatprep.subr.mxu0 0.0
        %533 = vmatpush1.msra.mxu0 0.0
        %534 = vmatprep.subr.mxu0 0.0
        %535 = vmatpush1.msra.mxu0 0.0
        %536 = vmatprep.subr.mxu0 0.0
        %537 = vmatpush1.msra.mxu0 0.0
        %538 = vmatprep.subr.mxu0 0.0
        %539 = vmatpush1.msra.mxu0 0.0
        %540 = vmatprep.subr.mxu0 0.0
        %541 = vmatpush1.msra.mxu0 0.0
        %542 = vmatprep.subr.mxu0 0.0
        %543 = vmatpush1.msra.mxu0 0.0
        %544 = vmatprep.subr.mxu0 0.0
        %545 = vmatpush1.msra.mxu0 0.0
        %546 = vmatprep.subr.mxu0 0.0
        %547 = vmatpush1.msra.mxu0 0.0
        %548 = vmatprep.subr.mxu0 0.0
        %549 = vmatpush1.msra.mxu0 0.0
        %550 = vmatprep.subr.mxu0 0.0
        %551 = vmatpush1.msra.mxu0 0.0
        %552 = vmatprep.subr.mxu0 0.0
        %553 = vmatpush1.msra.mxu0 0.0
        %554 = vmatprep.subr.mxu0 0.0
        %555 = vmatpush1.msra.mxu0 0.0
        %556 = vmatprep.subr.mxu0 0.0
        %557 = vmatpush1.msra.mxu0 0.0
        %558 = vmatprep.subr.mxu0 0.0
        %559 = vmatpush1.msra.mxu0 0.0
        %560 = vmatprep.subr.mxu0 0.0
        %561 = vmatpush1.msra.mxu0 0.0
        %562 = vmatprep.subr.mxu0 0.0
        %563 = vmatpush1.msra.mxu0 0.0
        %564 = vmatprep.mubr.f32.mxu0 0.0
        %565 = vmatmul.mubr.f32.gmra.mrb[0].mxu0 %v498
        %v566 = vpop.f32.mrb[0].mxu0
        %v567 = vadd.f32 %v494, %v566
        %v568 = vpop.f32.mrb[0].mxu0
        %569 = vdwg.mxu0
        %571 = vrot.lane.b32.xlu0 %v567, 96
        %v572 = vpop.permute.xlu0 %571
        %vm573 = vcmask 64512
        %v574 = vsel %vm573, %v567, 0
        %v576 = vsel %vm573, %v572, 0
        %578 = vmatprep.subr.mxu0 0.0
        %579 = vmatpush1.xpose.msra.mxu0 %v576
        %580 = vmatprep.subr.mxu0 0.0
        %581 = vmatpush1.xpose.msra.mxu0 0.0
        %582 = vmatprep.subr.mxu0 0.0
        %583 = vmatpush1.xpose.msra.mxu0 0.0
        %584 = vmatprep.subr.mxu0 0.0
        %585 = vmatpush1.xpose.msra.mxu0 0.0
        %586 = vmatprep.subr.mxu0 0.0
        %587 = vmatpush1.xpose.msra.mxu0 0.0
        %588 = vmatprep.subr.mxu0 0.0
        %589 = vmatpush1.xpose.msra.mxu0 0.0
        %590 = vmatprep.subr.mxu0 0.0
        %591 = vmatpush1.xpose.msra.mxu0 0.0
        %592 = vmatprep.subr.mxu0 0.0
        %593 = vmatpush1.xpose.msra.mxu0 0.0
        %594 = vmatprep.subr.mxu0 0.0
        %595 = vmatpush1.xpose.msra.mxu0 0.0
        %596 = vmatprep.subr.mxu0 0.0
        %597 = vmatpush1.xpose.msra.mxu0 0.0
        %598 = vmatprep.subr.mxu0 0.0
        %599 = vmatpush1.xpose.msra.mxu0 0.0
        %600 = vmatprep.subr.mxu0 0.0
        %601 = vmatpush1.xpose.msra.mxu0 0.0
        %602 = vmatprep.subr.mxu0 0.0
        %603 = vmatpush1.xpose.msra.mxu0 0.0
        %604 = vmatprep.subr.mxu0 0.0
        %605 = vmatpush1.xpose.msra.mxu0 0.0
        %606 = vmatprep.subr.mxu0 0.0
        %607 = vmatpush1.xpose.msra.mxu0 0.0
        %608 = vmatprep.subr.mxu0 0.0
        %609 = vmatpush1.xpose.msra.mxu0 0.0
        %610 = vmatprep.subr.mxu0 0.0
        %611 = vmatpush1.xpose.msra.mxu0 0.0
        %612 = vmatprep.subr.mxu0 0.0
        %613 = vmatpush1.xpose.msra.mxu0 0.0
        %614 = vmatprep.subr.mxu0 0.0
        %615 = vmatpush1.xpose.msra.mxu0 0.0
        %616 = vmatprep.subr.mxu0 0.0
        %617 = vmatpush1.xpose.msra.mxu0 0.0
        %618 = vmatprep.subr.mxu0 0.0
        %619 = vmatpush1.xpose.msra.mxu0 0.0
        %620 = vmatprep.subr.mxu0 0.0
        %621 = vmatpush1.xpose.msra.mxu0 0.0
        %622 = vmatprep.subr.mxu0 0.0
        %623 = vmatpush1.xpose.msra.mxu0 0.0
        %624 = vmatprep.subr.mxu0 0.0
        %625 = vmatpush1.xpose.msra.mxu0 0.0
        %626 = vmatprep.subr.mxu0 0.0
        %627 = vmatpush1.xpose.msra.mxu0 0.0
        %628 = vmatprep.subr.mxu0 0.0
        %629 = vmatpush1.xpose.msra.mxu0 0.0
        %630 = vmatprep.subr.mxu0 0.0
        %631 = vmatpush1.xpose.msra.mxu0 0.0
        %632 = vmatprep.subr.mxu0 0.0
        %633 = vmatpush1.xpose.msra.mxu0 0.0
        %634 = vmatprep.subr.mxu0 0.0
        %635 = vmatpush1.xpose.msra.mxu0 0.0
        %636 = vmatprep.subr.mxu0 0.0
        %637 = vmatpush1.xpose.msra.mxu0 0.0
        %638 = vmatprep.subr.mxu0 0.0
        %639 = vmatpush1.xpose.msra.mxu0 0.0
        %640 = vmatprep.subr.mxu0 0.0
        %641 = vmatpush1.xpose.msra.mxu0 0.0
        %642 = vmatprep.mubr.f32.mxu0 0.0
        %643 = vmatmul.mubr.f32.gmra.mrb[0].mxu0 %v574
        %v644 = vpop.f32.mrb[0].mxu0
        %v645 = vadd.f32 0.0, %v644
        %v646 = vpop.f32.mrb[0].mxu0
        %647 = vdwg.mxu0
        %v648 = vsel %vm573, %v645, -inf
        %649 = vmax.xlane.f32.xlu0 %v648
        %v650 = vpop.xlane.xlu0 %649
        %v651 = vsub.f32 %v645, %v650
        %v652 = vmul.f32 %v651, 1.442695
        %v653 = vpow.pop %v652
        %v654 = vsel %vm573, %v653, 0.0
        %655 = vadd.xlane.f32.xlu0 %v654
        %v656 = vpop.xlane.xlu0 %655
        %v657 = vrcp.pop %v656
        %v658 = vmul.f32 %v653, %v657
        %659 = vrot.lane.b32.xlu0 %v567, 64
        %v660 = vpop.permute.xlu0 %659
        %v663 = vsel %vm573, %v658, 0
        %665 = vmatprep.subr.mxu0 0.0
        %666 = vmatpush1.msra.mxu0 %v660
        %667 = vmatprep.subr.mxu0 0.0
        %668 = vmatpush1.msra.mxu0 0.0
        %669 = vmatprep.subr.mxu0 0.0
        %670 = vmatpush1.msra.mxu0 0.0
        %671 = vmatprep.subr.mxu0 0.0
        %672 = vmatpush1.msra.mxu0 0.0
        %673 = vmatprep.subr.mxu0 0.0
        %674 = vmatpush1.msra.mxu0 0.0
        %675 = vmatprep.subr.mxu0 0.0
        %676 = vmatpush1.msra.mxu0 0.0
        %677 = vmatprep.subr.mxu0 0.0
        %678 = vmatpush1.msra.mxu0 0.0
        %679 = vmatprep.subr.mxu0 0.0
        %680 = vmatpush1.msra.mxu0 0.0
        %681 = vmatprep.subr.mxu0 0.0
        %682 = vmatpush1.msra.mxu0 0.0
        %683 = vmatprep.subr.mxu0 0.0
        %684 = vmatpush1.msra.mxu0 0.0
        %685 = vmatprep.subr.mxu0 0.0
        %686 = vmatpush1.msra.mxu0 0.0
        %687 = vmatprep.subr.mxu0 0.0
        %688 = vmatpush1.msra.mxu0 0.0
        %689 = vmatprep.subr.mxu0 0.0
        %690 = vmatpush1.msra.mxu0 0.0
        %691 = vmatprep.subr.mxu0 0.0
        %692 = vmatpush1.msra.mxu0 0.0
        %693 = vmatprep.subr.mxu0 0.0
        %694 = vmatpush1.msra.mxu0 0.0
        %695 = vmatprep.subr.mxu0 0.0
        %696 = vmatpush1.msra.mxu0 0.0
        %697 = vmatprep.subr.mxu0 0.0
        %698 = vmatpush1.msra.mxu0 0.0
        %699 = vmatprep.subr.mxu0 0.0
        %700 = vmatpush1.msra.mxu0 0.0
        %701 = vmatprep.subr.mxu0 0.0
        %702 = vmatpush1.msra.mxu0 0.0
        %703 = vmatprep.subr.mxu0 0.0
        %704 = vmatpush1.msra.mxu0 0.0
        %705 = vmatprep.subr.mxu0 0.0
        %706 = vmatpush1.msra.mxu0 0.0
        %707 = vmatprep.subr.mxu0 0.0
        %708 = vmatpush1.msra.mxu0 0.0
        %709 = vmatprep.subr.mxu0 0.0
        %710 = vmatpush1.msra.mxu0 0.0
        %711 = vmatprep.subr.mxu0 0.0
        %712 = vmatpush1.msra.mxu0 0.0
        %713 = vmatprep.subr.mxu0 0.0
        %714 = vmatpush1.msra.mxu0 0.0
        %715 = vmatprep.subr.mxu0 0.0
        %716 = vmatpush1.msra.mxu0 0.0
        %717 = vmatprep.subr.mxu0 0.0
        %718 = vmatpush1.msra.mxu0 0.0
        %719 = vmatprep.subr.mxu0 0.0
        %720 = vmatpush1.msra.mxu0 0.0
        %721 = vmatprep.subr.mxu0 0.0
        %722 = vmatpush1.msra.mxu0 0.0
        %723 = vmatprep.subr.mxu0 0.0
        %724 = vmatpush1.msra.mxu0 0.0
        %725 = vmatprep.subr.mxu0 0.0
        %726 = vmatpush1.msra.mxu0 0.0
        %727 = vmatprep.subr.mxu0 0.0
        %728 = vmatpush1.msra.mxu0 0.0
        %729 = vmatprep.mubr.f32.mxu0 0.0
        %730 = vmatmul.mubr.f32.gmra.mrb[0].mxu0 %v663
        %v731 = vpop.f32.mrb[0].mxu0
        %v732 = vadd.f32 0.0, %v731
        %v733 = vpop.f32.mrb[0].mxu0
        %734 = vdwg.mxu0
        %v735 = vadd.f32 %v567, %v732
        %736 = vrot.lane.b32.xlu0 %v567, 120
        %v737 = vpop.permute.xlu0 %736
        %738 = vrot.lane.b32.xlu0 %v567, 88
        %v739 = vpop.permute.xlu0 %738
        %v740 = vsel %vm573, %v737, 0
        %v742 = vsel %vm573, %v739, 0
        %744 = vmatprep.subr.mxu0 0.0
        %745 = vmatpush1.xpose.msra.mxu0 %v742
        %746 = vmatprep.subr.mxu0 0.0
        %747 = vmatpush1.xpose.msra.mxu0 0.0
        %748 = vmatprep.subr.mxu0 0.0
        %749 = vmatpush1.xpose.msra.mxu0 0.0
        %750 = vmatprep.subr.mxu0 0.0
        %751 = vmatpush1.xpose.msra.mxu0 0.0
        %752 = vmatprep.subr.mxu0 0.0
        %753 = vmatpush1.xpose.msra.mxu0 0.0
        %754 = vmatprep.subr.mxu0 0.0
        %755 = vmatpush1.xpose.msra.mxu0 0.0
        %756 = vmatprep.subr.mxu0 0.0
        %757 = vmatpush1.xpose.msra.mxu0 0.0
        %758 = vmatprep.subr.mxu0 0.0
        %759 = vmatpush1.xpose.msra.mxu0 0.0
        %760 = vmatprep.subr.mxu0 0.0
        %761 = vmatpush1.xpose.msra.mxu0 0.0
        %762 = vmatprep.subr.mxu0 0.0
        %763 = vmatpush1.xpose.msra.mxu0 0.0
        %764 = vmatprep.subr.mxu0 0.0
        %765 = vmatpush1.xpose.msra.mxu0 0.0
        %766 = vmatprep.subr.mxu0 0.0
        %767 = vmatpush1.xpose.msra.mxu0 0.0
        %768 = vmatprep.subr.mxu0 0.0
        %769 = vmatpush1.xpose.msra.mxu0 0.0
        %770 = vmatprep.subr.mxu0 0.0
        %771 = vmatpush1.xpose.msra.mxu0 0.0
        %772 = vmatprep.subr.mxu0 0.0
        %773 = vmatpush1.xpose.msra.mxu0 0.0
        %774 = vmatprep.subr.mxu0 0.0
        %775 = vmatpush1.xpose.msra.mxu0 0.0
        %776 = vmatprep.subr.mxu0 0.0
        %777 = vmatpush1.xpose.msra.mxu0 0.0
        %778 = vmatprep.subr.mxu0 0.0
        %779 = vmatpush1.xpose.msra.mxu0 0.0
        %780 = vmatprep.subr.mxu0 0.0
        %781 = vmatpush1.xpose.msra.mxu0 0.0
        %782 = vmatprep.subr.mxu0 0.0
        %783 = vmatpush1.xpose.msra.mxu0 0.0
        %784 = vmatprep.subr.mxu0 0.0
        %785 = vmatpush1.xpose.msra.mxu0 0.0
        %786 = vmatprep.subr.mxu0 0.0
        %787 = vmatpush1.xpose.msra.mxu0 0.0
        %788 = vmatprep.subr.mxu0 0.0
        %789 = vmatpush1.xpose.msra.mxu0 0.0
        %790 = vmatprep.subr.mxu0 0.0
        %791 = vmatpush1.xpose.msra.mxu0 0.0
        %792 = vmatprep.subr.mxu0 0.0
        %793 = vmatpush1.xpose.msra.mxu0 0.0
        %794 = vmatprep.subr.mxu0 0.0
        %795 = vmatpush1.xpose.msra.mxu0 0.0
        %796 = vmatprep.subr.mxu0 0.0
        %797 = vmatpush1.xpose.msra.mxu0 0.0
        %798 = vmatprep.subr.mxu0 0.0
        %799 = vmatpush1.xpose.msra.mxu0 0.0
        %800 = vmatprep.subr.mxu0 0.0
        %801 = vmatpush1.xpose.msra.mxu0 0.0
        %802 = vmatprep.subr.mxu0 0.0
        %803 = vmatpush1.xpose.msra.mxu0 0.0
        %804 = vmatprep.subr.mxu0 0.0
        %805 = vmatpush1.xpose.msra.mxu0 0.0
        %806 = vmatprep.subr.mxu0 0.0
        %807 = vmatpush1.xpose.msra.mxu0 0.0
        %808 = vmatprep.mubr.f32.mxu0 0.0
        %809 = vmatmul.mubr.f32.gmra.mrb[0].mxu0 %v740
        %v810 = vpop.f32.mrb[0].mxu0
        %v811 = vadd.f32 0.0, %v810
        %v812 = vpop.f32.mrb[0].mxu0
        %813 = vdwg.mxu0
        %v814 = vsel %vm573, %v811, -inf
        %815 = vmax.xlane.f32.xlu0 %v814
        %v816 = vpop.xlane.xlu0 %815
        %v817 = vsub.f32 %v811, %v816
        %v818 = vmul.f32 %v817, 1.442695
        %v819 = vpow.pop %v818
        %v820 = vsel %vm573, %v819, 0.0
        %821 = vadd.xlane.f32.xlu0 %v820
        %v822 = vpop.xlane.xlu0 %821
        %v823 = vrcp.pop %v822
        %v824 = vmul.f32 %v819, %v823
        %825 = vrot.lane.b32.xlu0 %v567, 56
        %v826 = vpop.permute.xlu0 %825
        %v829 = vsel %vm573, %v824, 0
        %831 = vmatprep.subr.mxu0 0.0
        %832 = vmatpush1.msra.mxu0 %v826
        %833 = vmatprep.subr.mxu0 0.0
        %834 = vmatpush1.msra.mxu0 0.0
        %835 = vmatprep.subr.mxu0 0.0
        %836 = vmatpush1.msra.mxu0 0.0
        %837 = vmatprep.subr.mxu0 0.0
        %838 = vmatpush1.msra.mxu0 0.0
        %839 = vmatprep.subr.mxu0 0.0
        %840 = vmatpush1.msra.mxu0 0.0
        %841 = vmatprep.subr.mxu0 0.0
        %842 = vmatpush1.msra.mxu0 0.0
        %843 = vmatprep.subr.mxu0 0.0
        %844 = vmatpush1.msra.mxu0 0.0
        %845 = vmatprep.subr.mxu0 0.0
        %846 = vmatpush1.msra.mxu0 0.0
        %847 = vmatprep.subr.mxu0 0.0
        %848 = vmatpush1.msra.mxu0 0.0
        %849 = vmatprep.subr.mxu0 0.0
        %850 = vmatpush1.msra.mxu0 0.0
        %851 = vmatprep.subr.mxu0 0.0
        %852 = vmatpush1.msra.mxu0 0.0
        %853 = vmatprep.subr.mxu0 0.0
        %854 = vmatpush1.msra.mxu0 0.0
        %855 = vmatprep.subr.mxu0 0.0
        %856 = vmatpush1.msra.mxu0 0.0
        %857 = vmatprep.subr.mxu0 0.0
        %858 = vmatpush1.msra.mxu0 0.0
        %859 = vmatprep.subr.mxu0 0.0
        %860 = vmatpush1.msra.mxu0 0.0
        %861 = vmatprep.subr.mxu0 0.0
        %862 = vmatpush1.msra.mxu0 0.0
        %863 = vmatprep.subr.mxu0 0.0
        %864 = vmatpush1.msra.mxu0 0.0
        %865 = vmatprep.subr.mxu0 0.0
        %866 = vmatpush1.msra.mxu0 0.0
        %867 = vmatprep.subr.mxu0 0.0
        %868 = vmatpush1.msra.mxu0 0.0
        %869 = vmatprep.subr.mxu0 0.0
        %870 = vmatpush1.msra.mxu0 0.0
        %871 = vmatprep.subr.mxu0 0.0
        %872 = vmatpush1.msra.mxu0 0.0
        %873 = vmatprep.subr.mxu0 0.0
        %874 = vmatpush1.msra.mxu0 0.0
        %875 = vmatprep.subr.mxu0 0.0
        %876 = vmatpush1.msra.mxu0 0.0
        %877 = vmatprep.subr.mxu0 0.0
        %878 = vmatpush1.msra.mxu0 0.0
        %879 = vmatprep.subr.mxu0 0.0
        %880 = vmatpush1.msra.mxu0 0.0
        %881 = vmatprep.subr.mxu0 0.0
        %882 = vmatpush1.msra.mxu0 0.0
        %883 = vmatprep.subr.mxu0 0.0
        %884 = vmatpush1.msra.mxu0 0.0
        %885 = vmatprep.subr.mxu0 0.0
        %886 = vmatpush1.msra.mxu0 0.0
        %887 = vmatprep.subr.mxu0 0.0
        %888 = vmatpush1.msra.mxu0 0.0
        %889 = vmatprep.subr.mxu0 0.0
        %890 = vmatpush1.msra.mxu0 0.0
        %891 = vmatprep.subr.mxu0 0.0
        %892 = vmatpush1.msra.mxu0 0.0
        %893 = vmatprep.subr.mxu0 0.0
        %894 = vmatpush1.msra.mxu0 0.0
        %895 = vmatprep.mubr.f32.mxu0 0.0
        %896 = vmatmul.mubr.f32.gmra.mrb[0].mxu0 %v829
        %v897 = vpop.f32.mrb[0].mxu0
        %v898 = vadd.f32 0.0, %v897
        %v899 = vpop.f32.mrb[0].mxu0
        %900 = vdwg.mxu0
        %902 = vrot.lane.b32.xlu0 %v898, 8
        %v903 = vpop.permute.xlu0 %902
        %v905 = vadd.f32 %v567, %v903
        %906 = vrot.lane.b32.xlu0 %v567, 112
        %v907 = vpop.permute.xlu0 %906
        %908 = vrot.lane.b32.xlu0 %v567, 80
        %v909 = vpop.permute.xlu0 %908
        %v910 = vsel %vm573, %v907, 0
        %v912 = vsel %vm573, %v909, 0
        %914 = vmatprep.subr.mxu0 0.0
        %915 = vmatpush1.xpose.msra.mxu0 %v912
        %916 = vmatprep.subr.mxu0 0.0
        %917 = vmatpush1.xpose.msra.mxu0 0.0
        %918 = vmatprep.subr.mxu0 0.0
        %919 = vmatpush1.xpose.msra.mxu0 0.0
        %920 = vmatprep.subr.mxu0 0.0
        %921 = vmatpush1.xpose.msra.mxu0 0.0
        %922 = vmatprep.subr.mxu0 0.0
        %923 = vmatpush1.xpose.msra.mxu0 0.0
        %924 = vmatprep.subr.mxu0 0.0
        %925 = vmatpush1.xpose.msra.mxu0 0.0
        %926 = vmatprep.subr.mxu0 0.0
        %927 = vmatpush1.xpose.msra.mxu0 0.0
        %928 = vmatprep.subr.mxu0 0.0
        %929 = vmatpush1.xpose.msra.mxu0 0.0
        %930 = vmatprep.subr.mxu0 0.0
        %931 = vmatpush1.xpose.msra.mxu0 0.0
        %932 = vmatprep.subr.mxu0 0.0
        %933 = vmatpush1.xpose.msra.mxu0 0.0
        %934 = vmatprep.subr.mxu0 0.0
        %935 = vmatpush1.xpose.msra.mxu0 0.0
        %936 = vmatprep.subr.mxu0 0.0
        %937 = vmatpush1.xpose.msra.mxu0 0.0
        %938 = vmatprep.subr.mxu0 0.0
        %939 = vmatpush1.xpose.msra.mxu0 0.0
        %940 = vmatprep.subr.mxu0 0.0
        %941 = vmatpush1.xpose.msra.mxu0 0.0
        %942 = vmatprep.subr.mxu0 0.0
        %943 = vmatpush1.xpose.msra.mxu0 0.0
        %944 = vmatprep.subr.mxu0 0.0
        %945 = vmatpush1.xpose.msra.mxu0 0.0
        %946 = vmatprep.subr.mxu0 0.0
        %947 = vmatpush1.xpose.msra.mxu0 0.0
        %948 = vmatprep.subr.mxu0 0.0
        %949 = vmatpush1.xpose.msra.mxu0 0.0
        %950 = vmatprep.subr.mxu0 0.0
        %951 = vmatpush1.xpose.msra.mxu0 0.0
        %952 = vmatprep.subr.mxu0 0.0
        %953 = vmatpush1.xpose.msra.mxu0 0.0
        %954 = vmatprep.subr.mxu0 0.0
        %955 = vmatpush1.xpose.msra.mxu0 0.0
        %956 = vmatprep.subr.mxu0 0.0
        %957 = vmatpush1.xpose.msra.mxu0 0.0
        %958 = vmatprep.subr.mxu0 0.0
        %959 = vmatpush1.xpose.msra.mxu0 0.0
        %960 = vmatprep.subr.mxu0 0.0
        %961 = vmatpush1.xpose.msra.mxu0 0.0
        %962 = vmatprep.subr.mxu0 0.0
        %963 = vmatpush1.xpose.msra.mxu0 0.0
        %964 = vmatprep.subr.mxu0 0.0
        %965 = vmatpush1.xpose.msra.mxu0 0.0
        %966 = vmatprep.subr.mxu0 0.0
        %967 = vmatpush1.xpose.msra.mxu0 0.0
        %968 = vmatprep.subr.mxu0 0.0
        %969 = vmatpush1.xpose.msra.mxu0 0.0
        %970 = vmatprep.subr.mxu0 0.0
        %971 = vmatpush1.xpose.msra.mxu0 0.0
        %972 = vmatprep.subr.mxu0 0.0
        %973 = vmatpush1.xpose.msra.mxu0 0.0
        %974 = vmatprep.subr.mxu0 0.0
        %975 = vmatpush1.xpose.msra.mxu0 0.0
        %976 = vmatprep.subr.mxu0 0.0
        %977 = vmatpush1.xpose.msra.mxu0 0.0
        %978 = vmatprep.mubr.f32.mxu0 0.0
        %979 = vmatmul.mubr.f32.gmra.mrb[0].mxu0 %v910
        %v980 = vpop.f32.mrb[0].mxu0
        %v981 = vadd.f32 0.0, %v980
        %v982 = vpop.f32.mrb[0].mxu0
        %983 = vdwg.mxu0
        %v984 = vsel %vm573, %v981, -inf
        %985 = vmax.xlane.f32.xlu0 %v984
        %v986 = vpop.xlane.xlu0 %985
        %v987 = vsub.f32 %v981, %v986
        %v988 = vmul.f32 %v987, 1.442695
        %v989 = vpow.pop %v988
        %v990 = vsel %vm573, %v989, 0.0
        %991 = vadd.xlane.f32.xlu0 %v990
        %v992 = vpop.xlane.xlu0 %991
        %v993 = vrcp.pop %v992
        %v994 = vmul.f32 %v989, %v993
        %995 = vrot.lane.b32.xlu0 %v567, 48
        %v996 = vpop.permute.xlu0 %995
        %v999 = vsel %vm573, %v994, 0
        %1001 = vmatprep.subr.mxu0 0.0
        %1002 = vmatpush1.msra.mxu0 %v996
        %1003 = vmatprep.subr.mxu0 0.0
        %1004 = vmatpush1.msra.mxu0 0.0
        %1005 = vmatprep.subr.mxu0 0.0
        %1006 = vmatpush1.msra.mxu0 0.0
        %1007 = vmatprep.subr.mxu0 0.0
        %1008 = vmatpush1.msra.mxu0 0.0
        %1009 = vmatprep.subr.mxu0 0.0
        %1010 = vmatpush1.msra.mxu0 0.0
        %1011 = vmatprep.subr.mxu0 0.0
        %1012 = vmatpush1.msra.mxu0 0.0
        %1013 = vmatprep.subr.mxu0 0.0
        %1014 = vmatpush1.msra.mxu0 0.0
        %1015 = vmatprep.subr.mxu0 0.0
        %1016 = vmatpush1.msra.mxu0 0.0
        %1017 = vmatprep.subr.mxu0 0.0
        %1018 = vmatpush1.msra.mxu0 0.0
        %1019 = vmatprep.subr.mxu0 0.0
        %1020 = vmatpush1.msra.mxu0 0.0
        %1021 = vmatprep.subr.mxu0 0.0
        %1022 = vmatpush1.msra.mxu0 0.0
        %1023 = vmatprep.subr.mxu0 0.0
        %1024 = vmatpush1.msra.mxu0 0.0
        %1025 = vmatprep.subr.mxu0 0.0
        %1026 = vmatpush1.msra.mxu0 0.0
        %1027 = vmatprep.subr.mxu0 0.0
        %1028 = vmatpush1.msra.mxu0 0.0
        %1029 = vmatprep.subr.mxu0 0.0
        %1030 = vmatpush1.msra.mxu0 0.0
        %1031 = vmatprep.subr.mxu0 0.0
        %1032 = vmatpush1.msra.mxu0 0.0
        %1033 = vmatprep.subr.mxu0 0.0
        %1034 = vmatpush1.msra.mxu0 0.0
        %1035 = vmatprep.subr.mxu0 0.0
        %1036 = vmatpush1.msra.mxu0 0.0
        %1037 = vmatprep.subr.mxu0 0.0
        %1038 = vmatpush1.msra.mxu0 0.0
        %1039 = vmatprep.subr.mxu0 0.0
        %1040 = vmatpush1.msra.mxu0 0.0
        %1041 = vmatprep.subr.mxu0 0.0
        %1042 = vmatpush1.msra.mxu0 0.0
        %1043 = vmatprep.subr.mxu0 0.0
        %1044 = vmatpush1.msra.mxu0 0.0
        %1045 = vmatprep.subr.mxu0 0.0
        %1046 = vmatpush1.msra.mxu0 0.0
        %1047 = vmatprep.subr.mxu0 0.0
        %1048 = vmatpush1.msra.mxu0 0.0
        %1049 = vmatprep.subr.mxu0 0.0
        %1050 = vmatpush1.msra.mxu0 0.0
        %1051 = vmatprep.subr.mxu0 0.0
        %1052 = vmatpush1.msra.mxu0 0.0
        %1053 = vmatprep.subr.mxu0 0.0
        %1054 = vmatpush1.msra.mxu0 0.0
        %1055 = vmatprep.subr.mxu0 0.0
        %1056 = vmatpush1.msra.mxu0 0.0
        %1057 = vmatprep.subr.mxu0 0.0
        %1058 = vmatpush1.msra.mxu0 0.0
        %1059 = vmatprep.subr.mxu0 0.0
        %1060 = vmatpush1.msra.mxu0 0.0
        %1061 = vmatprep.subr.mxu0 0.0
        %1062 = vmatpush1.msra.mxu0 0.0
        %1063 = vmatprep.subr.mxu0 0.0
        %1064 = vmatpush1.msra.mxu0 0.0
        %1065 = vmatprep.mubr.f32.mxu0 0.0
        %1066 = vmatmul.mubr.f32.gmra.mrb[0].mxu0 %v999
        %v1067 = vpop.f32.mrb[0].mxu0
        %v1068 = vadd.f32 0.0, %v1067
        %v1069 = vpop.f32.mrb[0].mxu0
        %1070 = vdwg.mxu0
        %1072 = vrot.lane.b32.xlu0 %v1068, 16
        %v1073 = vpop.permute.xlu0 %1072
        %v1075 = vadd.f32 %v567, %v1073
        %1076 = vrot.lane.b32.xlu0 %v567, 104
        %v1077 = vpop.permute.xlu0 %1076
        %1078 = vrot.lane.b32.xlu0 %v567, 72
        %v1079 = vpop.permute.xlu0 %1078
        %v1080 = vsel %vm573, %v1077, 0
        %v1082 = vsel %vm573, %v1079, 0
        %1084 = vmatprep.subr.mxu0 0.0
        %1085 = vmatpush1.xpose.msra.mxu0 %v1082
        %1086 = vmatprep.subr.mxu0 0.0
        %1087 = vmatpush1.xpose.msra.mxu0 0.0
        %1088 = vmatprep.subr.mxu0 0.0
        %1089 = vmatpush1.xpose.msra.mxu0 0.0
        %1090 = vmatprep.subr.mxu0 0.0
        %1091 = vmatpush1.xpose.msra.mxu0 0.0
        %1092 = vmatprep.subr.mxu0 0.0
        %1093 = vmatpush1.xpose.msra.mxu0 0.0
        %1094 = vmatprep.subr.mxu0 0.0
        %1095 = vmatpush1.xpose.msra.mxu0 0.0
        %1096 = vmatprep.subr.mxu0 0.0
        %1097 = vmatpush1.xpose.msra.mxu0 0.0
        %1098 = vmatprep.subr.mxu0 0.0
        %1099 = vmatpush1.xpose.msra.mxu0 0.0
        %1100 = vmatprep.subr.mxu0 0.0
        %1101 = vmatpush1.xpose.msra.mxu0 0.0
        %1102 = vmatprep.subr.mxu0 0.0
        %1103 = vmatpush1.xpose.msra.mxu0 0.0
        %1104 = vmatprep.subr.mxu0 0.0
        %1105 = vmatpush1.xpose.msra.mxu0 0.0
        %1106 = vmatprep.subr.mxu0 0.0
        %1107 = vmatpush1.xpose.msra.mxu0 0.0
        %1108 = vmatprep.subr.mxu0 0.0
        %1109 = vmatpush1.xpose.msra.mxu0 0.0
        %1110 = vmatprep.subr.mxu0 0.0
        %1111 = vmatpush1.xpose.msra.mxu0 0.0
        %1112 = vmatprep.subr.mxu0 0.0
        %1113 = vmatpush1.xpose.msra.mxu0 0.0
        %1114 = vmatprep.subr.mxu0 0.0
        %1115 = vmatpush1.xpose.msra.mxu0 0.0
        %1116 = vmatprep.subr.mxu0 0.0
        %1117 = vmatpush1.xpose.msra.mxu0 0.0
        %1118 = vmatprep.subr.mxu0 0.0
        %1119 = vmatpush1.xpose.msra.mxu0 0.0
        %1120 = vmatprep.subr.mxu0 0.0
        %1121 = vmatpush1.xpose.msra.mxu0 0.0
        %1122 = vmatprep.subr.mxu0 0.0
        %1123 = vmatpush1.xpose.msra.mxu0 0.0
        %1124 = vmatprep.subr.mxu0 0.0
        %1125 = vmatpush1.xpose.msra.mxu0 0.0
        %1126 = vmatprep.subr.mxu0 0.0
        %1127 = vmatpush1.xpose.msra.mxu0 0.0
        %1128 = vmatprep.subr.mxu0 0.0
        %1129 = vmatpush1.xpose.msra.mxu0 0.0
        %1130 = vmatprep.subr.mxu0 0.0
        %1131 = vmatpush1.xpose.msra.mxu0 0.0
        %1132 = vmatprep.subr.mxu0 0.0
        %1133 = vmatpush1.xpose.msra.mxu0 0.0
        %1134 = vmatprep.subr.mxu0 0.0
        %1135 = vmatpush1.xpose.msra.mxu0 0.0
        %1136 = vmatprep.subr.mxu0 0.0
        %1137 = vmatpush1.xpose.msra.mxu0 0.0
        %1138 = vmatprep.subr.mxu0 0.0
        %1139 = vmatpush1.xpose.msra.mxu0 0.0
        %1140 = vmatprep.subr.mxu0 0.0
        %1141 = vmatpush1.xpose.msra.mxu0 0.0
        %1142 = vmatprep.subr.mxu0 0.0
        %1143 = vmatpush1.xpose.msra.mxu0 0.0
        %1144 = vmatprep.subr.mxu0 0.0
        %1145 = vmatpush1.xpose.msra.mxu0 0.0
        %1146 = vmatprep.subr.mxu0 0.0
        %1147 = vmatpush1.xpose.msra.mxu0 0.0
        %1148 = vmatprep.mubr.f32.mxu0 0.0
        %1149 = vmatmul.mubr.f32.gmra.mrb[0].mxu0 %v1080
        %v1150 = vpop.f32.mrb[0].mxu0
        %v1151 = vadd.f32 0.0, %v1150
        %v1152 = vpop.f32.mrb[0].mxu0
        %1153 = vdwg.mxu0
        %v1154 = vsel %vm573, %v1151, -inf
        %1155 = vmax.xlane.f32.xlu0 %v1154
        %v1156 = vpop.xlane.xlu0 %1155
        %v1157 = vsub.f32 %v1151, %v1156
        %v1158 = vmul.f32 %v1157, 1.442695
        %v1159 = vpow.pop %v1158
        %v1160 = vsel %vm573, %v1159, 0.0
        %1161 = vadd.xlane.f32.xlu0 %v1160
        %v1162 = vpop.xlane.xlu0 %1161
        %v1163 = vrcp.pop %v1162
        %v1164 = vmul.f32 %v1159, %v1163
        %1165 = vrot.lane.b32.xlu0 %v567, 40
        %v1166 = vpop.permute.xlu0 %1165
        %v1169 = vsel %vm573, %v1164, 0
        %1171 = vmatprep.subr.mxu0 0.0
        %1172 = vmatpush1.msra.mxu0 %v1166
        %1173 = vmatprep.subr.mxu0 0.0
        %1174 = vmatpush1.msra.mxu0 0.0
        %1175 = vmatprep.subr.mxu0 0.0
        %1176 = vmatpush1.msra.mxu0 0.0
        %1177 = vmatprep.subr.mxu0 0.0
        %1178 = vmatpush1.msra.mxu0 0.0
        %1179 = vmatprep.subr.mxu0 0.0
        %1180 = vmatpush1.msra.mxu0 0.0
        %1181 = vmatprep.subr.mxu0 0.0
        %1182 = vmatpush1.msra.mxu0 0.0
        %1183 = vmatprep.subr.mxu0 0.0
        %1184 = vmatpush1.msra.mxu0 0.0
        %1185 = vmatprep.subr.mxu0 0.0
        %1186 = vmatpush1.msra.mxu0 0.0
        %1187 = vmatprep.subr.mxu0 0.0
        %1188 = vmatpush1.msra.mxu0 0.0
        %1189 = vmatprep.subr.mxu0 0.0
        %1190 = vmatpush1.msra.mxu0 0.0
        %1191 = vmatprep.subr.mxu0 0.0
        %1192 = vmatpush1.msra.mxu0 0.0
        %1193 = vmatprep.subr.mxu0 0.0
        %1194 = vmatpush1.msra.mxu0 0.0
        %1195 = vmatprep.subr.mxu0 0.0
        %1196 = vmatpush1.msra.mxu0 0.0
        %1197 = vmatprep.subr.mxu0 0.0
        %1198 = vmatpush1.msra.mxu0 0.0
        %1199 = vmatprep.subr.mxu0 0.0
        %1200 = vmatpush1.msra.mxu0 0.0
        %1201 = vmatprep.subr.mxu0 0.0
        %1202 = vmatpush1.msra.mxu0 0.0
        %1203 = vmatprep.subr.mxu0 0.0
        %1204 = vmatpush1.msra.mxu0 0.0
        %1205 = vmatprep.subr.mxu0 0.0
        %1206 = vmatpush1.msra.mxu0 0.0
        %1207 = vmatprep.subr.mxu0 0.0
        %1208 = vmatpush1.msra.mxu0 0.0
        %1209 = vmatprep.subr.mxu0 0.0
        %1210 = vmatpush1.msra.mxu0 0.0
        %1211 = vmatprep.subr.mxu0 0.0
        %1212 = vmatpush1.msra.mxu0 0.0
        %1213 = vmatprep.subr.mxu0 0.0
        %1214 = vmatpush1.msra.mxu0 0.0
        %1215 = vmatprep.subr.mxu0 0.0
        %1216 = vmatpush1.msra.mxu0 0.0
        %1217 = vmatprep.subr.mxu0 0.0
        %1218 = vmatpush1.msra.mxu0 0.0
        %1219 = vmatprep.subr.mxu0 0.0
        %1220 = vmatpush1.msra.mxu0 0.0
        %1221 = vmatprep.subr.mxu0 0.0
        %1222 = vmatpush1.msra.mxu0 0.0
        %1223 = vmatprep.subr.mxu0 0.0
        %1224 = vmatpush1.msra.mxu0 0.0
        %1225 = vmatprep.subr.mxu0 0.0
        %1226 = vmatpush1.msra.mxu0 0.0
        %1227 = vmatprep.subr.mxu0 0.0
        %1228 = vmatpush1.msra.mxu0 0.0
        %1229 = vmatprep.subr.mxu0 0.0
        %1230 = vmatpush1.msra.mxu0 0.0
        %1231 = vmatprep.subr.mxu0 0.0
        %1232 = vmatpush1.msra.mxu0 0.0
        %1233 = vmatprep.subr.mxu0 0.0
        %1234 = vmatpush1.msra.mxu0 0.0
        %1235 = vmatprep.mubr.f32.mxu0 0.0
        %1236 = vmatmul.mubr.f32.gmra.mrb[0].mxu0 %v1169
        %v1237 = vpop.f32.mrb[0].mxu0
        %v1238 = vadd.f32 0.0, %v1237
        %v1239 = vpop.f32.mrb[0].mxu0
        %1240 = vdwg.mxu0
        %1242 = vrot.lane.b32.xlu0 %v1238, 24
        %v1243 = vpop.permute.xlu0 %1242
        %v1245 = vadd.f32 %v567, %v1243
        %v1246 = vsel %vm573, %v735, %v905
        %v1247 = vsel %vm496, %v1246, %v1075
        %vm1248 = vcmask 195584
        %v1249 = vsel %vm1248, %v1247, %v1245
        %v1250 = vld [vmem:[#allocation7] sm:$0xff]
        %v1251 = vld [vmem:[#allocation7 + $0x8] sm:$0xff]
        %v1252 = vld [vmem:[#allocation7 + $0x10] sm:$0xff]
        %v1253 = vld [vmem:[#allocation7 + $0x18] sm:$0xff]
        %v1254 = vld [vmem:[%s4] sm:$0x1]
        %vm1255 = vcmask 261120
        %v1256 = vsel %vm1255, %v1249, 0.0
        %1257 = vadd.xlane.f32.xlu0 %v1256
        %v1258 = vpop.xlane.xlu0 %1257
        %v1259 = vrcp.pop 32.0
        %v1260 = vmul.f32 %v1258, %v1259
        %v1261 = vsub.f32 %v1249, %v1260
        %v1262 = vmul.f32 %v1261, %v1261
        %v1263 = vsel %vm1255, %v1262, 0.0
        %1264 = vadd.xlane.f32.xlu0 %v1263
        %v1265 = vpop.xlane.xlu0 %1264
        %v1266 = vmul.f32 %v1265, %v1259
        %v1267 = vadd.f32 %v1266, 1e-05
        %v1268 = vrsqrt.pop %v1267
        %v1269 = vmul.f32 %v1261, %v1268
        %v1271 = vlaneseq
        %v1272 = vshrl.u32 %v1271, 7
        %v1273 = vsub.s32 0, %v1272
        %v1274 = vrot.slane %v1254, %v1273
        %v1277 = vsel %vm1255, %v1269, 0
        %1279 = vmatprep.subr.mxu0 0.0
        %1280 = vmatpush1.msra.mxu0 %v1250
        %1281 = vmatprep.subr.mxu0 0.0
        %1282 = vmatpush1.msra.mxu0 %v1251
        %1283 = vmatprep.subr.mxu0 0.0
        %1284 = vmatpush1.msra.mxu0 %v1252
        %1285 = vmatprep.subr.mxu0 0.0
        %1286 = vmatpush1.msra.mxu0 %v1253
        %1287 = vmatprep.subr.mxu0 0.0
        %1288 = vmatpush1.msra.mxu0 0.0
        %1289 = vmatprep.subr.mxu0 0.0
        %1290 = vmatpush1.msra.mxu0 0.0
        %1291 = vmatprep.subr.mxu0 0.0
        %1292 = vmatpush1.msra.mxu0 0.0
        %1293 = vmatprep.subr.mxu0 0.0
        %1294 = vmatpush1.msra.mxu0 0.0
        %1295 = vmatprep.subr.mxu0 0.0
        %1296 = vmatpush1.msra.mxu0 0.0
        %1297 = vmatprep.subr.mxu0 0.0
        %1298 = vmatpush1.msra.mxu0 0.0
        %1299 = vmatprep.subr.mxu0 0.0
        %1300 = vmatpush1.msra.mxu0 0.0
        %1301 = vmatprep.subr.mxu0 0.0
        %1302 = vmatpush1.msra.mxu0 0.0
        %1303 = vmatprep.subr.mxu0 0.0
        %1304 = vmatpush1.msra.mxu0 0.0
        %1305 = vmatprep.subr.mxu0 0.0
        %1306 = vmatpush1.msra.mxu0 0.0
        %1307 = vmatprep.subr.mxu0 0.0
        %1308 = vmatpush1.msra.mxu0 0.0
        %1309 = vmatprep.subr.mxu0 0.0
        %1310 = vmatpush1.msra.mxu0 0.0
        %1311 = vmatprep.subr.mxu0 0.0
        %1312 = vmatpush1.msra.mxu0 0.0
        %1313 = vmatprep.subr.mxu0 0.0
        %1314 = vmatpush1.msra.mxu0 0.0
        %1315 = vmatprep.subr.mxu0 0.0
        %1316 = vmatpush1.msra.mxu0 0.0
        %1317 = vmatprep.subr.mxu0 0.0
        %1318 = vmatpush1.msra.mxu0 0.0
        %1319 = vmatprep.subr.mxu0 0.0
        %1320 = vmatpush1.msra.mxu0 0.0
        %1321 = vmatprep.subr.mxu0 0.0
        %1322 = vmatpush1.msra.mxu0 0.0
        %1323 = vmatprep.subr.mxu0 0.0
        %1324 = vmatpush1.msra.mxu0 0.0
        %1325 = vmatprep.subr.mxu0 0.0
        %1326 = vmatpush1.msra.mxu0 0.0
        %1327 = vmatprep.subr.mxu0 0.0
        %1328 = vmatpush1.msra.mxu0 0.0
        %1329 = vmatprep.subr.mxu0 0.0
        %1330 = vmatpush1.msra.mxu0 0.0
        %1331 = vmatprep.subr.mxu0 0.0
        %1332 = vmatpush1.msra.mxu0 0.0
        %1333 = vmatprep.subr.mxu0 0.0
        %1334 = vmatpush1.msra.mxu0 0.0
        %1335 = vmatprep.subr.mxu0 0.0
        %1336 = vmatpush1.msra.mxu0 0.0
        %1337 = vmatprep.subr.mxu0 0.0
        %1338 = vmatpush1.msra.mxu0 0.0
        %1339 = vmatprep.subr.mxu0 0.0
        %1340 = vmatpush1.msra.mxu0 0.0
        %1341 = vmatprep.subr.mxu0 0.0
        %1342 = vmatpush1.msra.mxu0 0.0
        %1343 = vmatprep.mubr.f32.mxu0 0.0
        %1344 = vmatmul.mubr.f32.gmra.mrb[0].mxu0 %v1277
        %v1345 = vpop.f32.mrb[0].mxu0
        %v1346 = vadd.f32 %v1274, %v1345
        %v1347 = vpop.f32.mrb[0].mxu0
        %1348 = vdwg.mxu0
        %v1349 = vxor.u32 %v1346, 2147483648
        %v1350 = vmul.f32 %v1349, 1.442695
        %v1351 = vpow.pop %v1350
        %v1352 = vadd.f32 %v1351, 1.0
        %v1353 = vrcp.pop %v1352
        %v1354 = vmul.f32 1.0, %v1353
        %v1355 = vadd.f32 %v1269, %v1354
        %v1356 = vsel %vm1255, %v1355, 0.0
        %1357 = vadd.xlane.f32.xlu0 %v1356
        %v1358 = vpop.xlane.xlu0 %1357
        %v1359 = vmul.f32 %v1358, %v1259
        %v1360 = vsub.f32 %v1355, %v1359
        %v1361 = vmul.f32 %v1360, %v1360
        %v1362 = vsel %vm1255, %v1361, 0.0
        %1363 = vadd.xlane.f32.xlu0 %v1362
        %v1364 = vpop.xlane.xlu0 %1363
        %v1365 = vmul.f32 %v1364, %v1259
        %v1366 = vadd.f32 %v1365, 1e-05
        %v1367 = vrsqrt.pop %v1366
        %v1368 = vmul.f32 %v1360, %v1367
        %v1369 = vxor.u32 %v1368, 2147483648
        %v1370 = vmul.f32 %v1369, 1.442695
        %v1371 = vpow.pop %v1370
        %v1372 = vadd.f32 %v1371, 1.0
        %v1373 = vrcp.pop %v1372
        %v1374 = vmul.f32 1.0, %v1373
        %v1375 = vld [vmem:[#allocation8] sm:$0xff]
        %v1376 = vld [vmem:[#allocation8 + $0x8] sm:$0xff]
        %v1377 = vld [vmem:[#allocation8 + $0x10] sm:$0xff]
        %v1378 = vld [vmem:[#allocation8 + $0x18] sm:$0xff]
        %v1379 = vld [vmem:[%s7] sm:$0x1]
        %v1381 = vlaneseq
        %v1382 = vshrl.u32 %v1381, 7
        %v1383 = vsub.s32 0, %v1382
        %v1384 = vrot.slane %v1379, %v1383
        %v1387 = vsel %vm1255, %v1374, 0
        %1389 = vmatprep.subr.mxu0 0.0
        %1390 = vmatpush1.msra.mxu0 %v1375
        %1391 = vmatprep.subr.mxu0 0.0
        %1392 = vmatpush1.msra.mxu0 %v1376
        %1393 = vmatprep.subr.mxu0 0.0
        %1394 = vmatpush1.msra.mxu0 %v1377
        %1395 = vmatprep.subr.mxu0 0.0
        %1396 = vmatpush1.msra.mxu0 %v1378
        %1397 = vmatprep.subr.mxu0 0.0
        %1398 = vmatpush1.msra.mxu0 0.0
        %1399 = vmatprep.subr.mxu0 0.0
        %1400 = vmatpush1.msra.mxu0 0.0
        %1401 = vmatprep.subr.mxu0 0.0
        %1402 = vmatpush1.msra.mxu0 0.0
        %1403 = vmatprep.subr.mxu0 0.0
        %1404 = vmatpush1.msra.mxu0 0.0
        %1405 = vmatprep.subr.mxu0 0.0
        %1406 = vmatpush1.msra.mxu0 0.0
        %1407 = vmatprep.subr.mxu0 0.0
        %1408 = vmatpush1.msra.mxu0 0.0
        %1409 = vmatprep.subr.mxu0 0.0
        %1410 = vmatpush1.msra.mxu0 0.0
        %1411 = vmatprep.subr.mxu0 0.0
        %1412 = vmatpush1.msra.mxu0 0.0
        %1413 = vmatprep.subr.mxu0 0.0
        %1414 = vmatpush1.msra.mxu0 0.0
        %1415 = vmatprep.subr.mxu0 0.0
        %1416 = vmatpush1.msra.mxu0 0.0
        %1417 = vmatprep.subr.mxu0 0.0
        %1418 = vmatpush1.msra.mxu0 0.0
        %1419 = vmatprep.subr.mxu0 0.0
        %1420 = vmatpush1.msra.mxu0 0.0
        %1421 = vmatprep.subr.mxu0 0.0
        %1422 = vmatpush1.msra.mxu0 0.0
        %1423 = vmatprep.subr.mxu0 0.0
        %1424 = vmatpush1.msra.mxu0 0.0
        %1425 = vmatprep.subr.mxu0 0.0
        %1426 = vmatpush1.msra.mxu0 0.0
        %1427 = vmatprep.subr.mxu0 0.0
        %1428 = vmatpush1.msra.mxu0 0.0
        %1429 = vmatprep.subr.mxu0 0.0
        %1430 = vmatpush1.msra.mxu0 0.0
        %1431 = vmatprep.subr.mxu0 0.0
        %1432 = vmatpush1.msra.mxu0 0.0
        %1433 = vmatprep.subr.mxu0 0.0
        %1434 = vmatpush1.msra.mxu0 0.0
        %1435 = vmatprep.subr.mxu0 0.0
        %1436 = vmatpush1.msra.mxu0 0.0
        %1437 = vmatprep.subr.mxu0 0.0
        %1438 = vmatpush1.msra.mxu0 0.0
        %1439 = vmatprep.subr.mxu0 0.0
        %1440 = vmatpush1.msra.mxu0 0.0
        %1441 = vmatprep.subr.mxu0 0.0
        %1442 = vmatpush1.msra.mxu0 0.0
        %1443 = vmatprep.subr.mxu0 0.0
        %1444 = vmatpush1.msra.mxu0 0.0
        %1445 = vmatprep.subr.mxu0 0.0
        %1446 = vmatpush1.msra.mxu0 0.0
        %1447 = vmatprep.subr.mxu0 0.0
        %1448 = vmatpush1.msra.mxu0 0.0
        %1449 = vmatprep.subr.mxu0 0.0
        %1450 = vmatpush1.msra.mxu0 0.0
        %1451 = vmatprep.subr.mxu0 0.0
        %1452 = vmatpush1.msra.mxu0 0.0
        %1453 = vmatprep.mubr.f32.mxu0 0.0
        %1454 = vmatmul.mubr.f32.gmra.mrb[0].mxu0 %v1387
        %v1455 = vpop.f32.mrb[0].mxu0
        %v1456 = vadd.f32 %v1384, %v1455
        %v1457 = vpop.f32.mrb[0].mxu0
        %1458 = vdwg.mxu0
        %v1459 = vld [vmem:[%s5] sm:$0x1]
        %v1461 = vsel %vm573, %v1459, 0
        %v1464 = vsel %vm573, %v1456, 0
        %1466 = vmatprep.subr.mxu0 0.0
        %1467 = vmatpush1.xpose.msra.mxu0 %v1464
        %1468 = vmatprep.subr.mxu0 0.0
        %1469 = vmatpush1.xpose.msra.mxu0 0.0
        %1470 = vmatprep.subr.mxu0 0.0
        %1471 = vmatpush1.xpose.msra.mxu0 0.0
        %1472 = vmatprep.subr.mxu0 0.0
        %1473 = vmatpush1.xpose.msra.mxu0 0.0
        %1474 = vmatprep.subr.mxu0 0.0
        %1475 = vmatpush1.xpose.msra.mxu0 0.0
        %1476 = vmatprep.subr.mxu0 0.0
        %1477 = vmatpush1.xpose.msra.mxu0 0.0
        %1478 = vmatprep.subr.mxu0 0.0
        %1479 = vmatpush1.xpose.msra.mxu0 0.0
        %1480 = vmatprep.subr.mxu0 0.0
        %1481 = vmatpush1.xpose.msra.mxu0 0.0
        %1482 = vmatprep.subr.mxu0 0.0
        %1483 = vmatpush1.xpose.msra.mxu0 0.0
        %1484 = vmatprep.subr.mxu0 0.0
        %1485 = vmatpush1.xpose.msra.mxu0 0.0
        %1486 = vmatprep.subr.mxu0 0.0
        %1487 = vmatpush1.xpose.msra.mxu0 0.0
        %1488 = vmatprep.subr.mxu0 0.0
        %1489 = vmatpush1.xpose.msra.mxu0 0.0
        %1490 = vmatprep.subr.mxu0 0.0
        %1491 = vmatpush1.xpose.msra.mxu0 0.0
        %1492 = vmatprep.subr.mxu0 0.0
        %1493 = vmatpush1.xpose.msra.mxu0 0.0
        %1494 = vmatprep.subr.mxu0 0.0
        %1495 = vmatpush1.xpose.msra.mxu0 0.0
        %1496 = vmatprep.subr.mxu0 0.0
        %1497 = vmatpush1.xpose.msra.mxu0 0.0
        %1498 = vmatprep.subr.mxu0 0.0
        %1499 = vmatpush1.xpose.msra.mxu0 0.0
        %1500 = vmatprep.subr.mxu0 0.0
        %1501 = vmatpush1.xpose.msra.mxu0 0.0
        %1502 = vmatprep.subr.mxu0 0.0
        %1503 = vmatpush1.xpose.msra.mxu0 0.0
        %1504 = vmatprep.subr.mxu0 0.0
        %1505 = vmatpush1.xpose.msra.mxu0 0.0
        %1506 = vmatprep.subr.mxu0 0.0
        %1507 = vmatpush1.xpose.msra.mxu0 0.0
        %1508 = vmatprep.subr.mxu0 0.0
        %1509 = vmatpush1.xpose.msra.mxu0 0.0
        %1510 = vmatprep.subr.mxu0 0.0
        %1511 = vmatpush1.xpose.msra.mxu0 0.0
        %1512 = vmatprep.subr.mxu0 0.0
        %1513 = vmatpush1.xpose.msra.mxu0 0.0
        %1514 = vmatprep.subr.mxu0 0.0
        %1515 = vmatpush1.xpose.msra.mxu0 0.0
        %1516 = vmatprep.subr.mxu0 0.0
        %1517 = vmatpush1.xpose.msra.mxu0 0.0
        %1518 = vmatprep.subr.mxu0 0.0
        %1519 = vmatpush1.xpose.msra.mxu0 0.0
        %1520 = vmatprep.subr.mxu0 0.0
        %1521 = vmatpush1.xpose.msra.mxu0 0.0
        %1522 = vmatprep.subr.mxu0 0.0
        %1523 = vmatpush1.xpose.msra.mxu0 0.0
        %1524 = vmatprep.subr.mxu0 0.0
        %1525 = vmatpush1.xpose.msra.mxu0 0.0
        %1526 = vmatprep.subr.mxu0 0.0
        %1527 = vmatpush1.xpose.msra.mxu0 0.0
        %1528 = vmatprep.subr.mxu0 0.0
        %1529 = vmatpush1.xpose.msra.mxu0 0.0
        %1530 = vmatprep.mubr.f32.mxu0 0.0
        %1531 = vmatmul.mubr.f32.gmra.mrb[0].mxu0 %v1461
        %v1532 = vpop.f32.mrb[0].mxu0
        %v1533 = vadd.f32 0.0, %v1532
        %v1534 = vpop.f32.mrb[0].mxu0
        %1535 = vdwg.mxu0
        %vm1536 = vcmask 57344
        %v1537 = vsel %vm1536, %v1533, -inf
        %1538 = vmax.xlane.f32.xlu0 %v1537
        %v1539 = vpop.xlane.xlu0 %1538
        %v1540 = vsub.f32 %v1533, %v1539
        %v1541 = vmul.f32 %v1540, 1.442695
        %v1542 = vpow.pop %v1541
        %v1543 = vsel %vm1536, %v1542, 0.0
        %1544 = vadd.xlane.f32.xlu0 %v1543
        %v1545 = vpop.xlane.xlu0 %1544
        %v1546 = vrcp.pop %v1545
        %v1547 = vmul.f32 %v1542, %v1546
        %1548 = vrot.lane.b32.xlu0 %v1456, 96
        %v1549 = vpop.permute.xlu0 %1548
        %v1552 = vsel %vm573, %v1547, 0
        %1554 = vmatprep.subr.mxu0 0.0
        %1555 = vmatpush1.msra.mxu0 %v1549
        %1556 = vmatprep.subr.mxu0 0.0
        %1557 = vmatpush1.msra.mxu0 0.0
        %1558 = vmatprep.subr.mxu0 0.0
        %1559 = vmatpush1.msra.mxu0 0.0
        %1560 = vmatprep.subr.mxu0 0.0
        %1561 = vmatpush1.msra.mxu0 0.0
        %1562 = vmatprep.subr.mxu0 0.0
        %1563 = vmatpush1.msra.mxu0 0.0
        %1564 = vmatprep.subr.mxu0 0.0
        %1565 = vmatpush1.msra.mxu0 0.0
        %1566 = vmatprep.subr.mxu0 0.0
        %1567 = vmatpush1.msra.mxu0 0.0
        %1568 = vmatprep.subr.mxu0 0.0
        %1569 = vmatpush1.msra.mxu0 0.0
        %1570 = vmatprep.subr.mxu0 0.0
        %1571 = vmatpush1.msra.mxu0 0.0
        %1572 = vmatprep.subr.mxu0 0.0
        %1573 = vmatpush1.msra.mxu0 0.0
        %1574 = vmatprep.subr.mxu0 0.0
        %1575 = vmatpush1.msra.mxu0 0.0
        %1576 = vmatprep.subr.mxu0 0.0
        %1577 = vmatpush1.msra.mxu0 0.0
        %1578 = vmatprep.subr.mxu0 0.0
        %1579 = vmatpush1.msra.mxu0 0.0
        %1580 = vmatprep.subr.mxu0 0.0
        %1581 = vmatpush1.msra.mxu0 0.0
        %1582 = vmatprep.subr.mxu0 0.0
        %1583 = vmatpush1.msra.mxu0 0.0
        %1584 = vmatprep.subr.mxu0 0.0
        %1585 = vmatpush1.msra.mxu0 0.0
        %1586 = vmatprep.subr.mxu0 0.0
        %1587 = vmatpush1.msra.mxu0 0.0
        %1588 = vmatprep.subr.mxu0 0.0
        %1589 = vmatpush1.msra.mxu0 0.0
        %1590 = vmatprep.subr.mxu0 0.0
        %1591 = vmatpush1.msra.mxu0 0.0
        %1592 = vmatprep.subr.mxu0 0.0
        %1593 = vmatpush1.msra.mxu0 0.0
        %1594 = vmatprep.subr.mxu0 0.0
        %1595 = vmatpush1.msra.mxu0 0.0
        %1596 = vmatprep.subr.mxu0 0.0
        %1597 = vmatpush1.msra.mxu0 0.0
        %1598 = vmatprep.subr.mxu0 0.0
        %1599 = vmatpush1.msra.mxu0 0.0
        %1600 = vmatprep.subr.mxu0 0.0
        %1601 = vmatpush1.msra.mxu0 0.0
        %1602 = vmatprep.subr.mxu0 0.0
        %1603 = vmatpush1.msra.mxu0 0.0
        %1604 = vmatprep.subr.mxu0 0.0
        %1605 = vmatpush1.msra.mxu0 0.0
        %1606 = vmatprep.subr.mxu0 0.0
        %1607 = vmatpush1.msra.mxu0 0.0
        %1608 = vmatprep.subr.mxu0 0.0
        %1609 = vmatpush1.msra.mxu0 0.0
        %1610 = vmatprep.subr.mxu0 0.0
        %1611 = vmatpush1.msra.mxu0 0.0
        %1612 = vmatprep.subr.mxu0 0.0
        %1613 = vmatpush1.msra.mxu0 0.0
        %1614 = vmatprep.subr.mxu0 0.0
        %1615 = vmatpush1.msra.mxu0 0.0
        %1616 = vmatprep.subr.mxu0 0.0
        %1617 = vmatpush1.msra.mxu0 0.0
        %1618 = vmatprep.mubr.f32.mxu0 0.0
        %1619 = vmatmul.mubr.f32.gmra.mrb[0].mxu0 %v1552
        %v1620 = vpop.f32.mrb[0].mxu0
        %v1621 = vadd.f32 0.0, %v1620
        %v1622 = vpop.f32.mrb[0].mxu0
        %1623 = vdwg.mxu0
        %v1624 = vadd.f32 %v1459, %v1621
        %v1625 = vlaneseq
        %v1626 = vshrl.u32 %v1625, 7
        %v1627 = vsub.s32 0, %v1626
        %v1628 = vrot.slane %v1459, %v1627
        %1629 = vrot.lane.b32.xlu0 %v1628, 120
        %v1630 = vpop.permute.xlu0 %1629
        %1631 = vrot.lane.b32.xlu0 %v1456, 120
        %v1632 = vpop.permute.xlu0 %1631
        %v1633 = vsel %vm573, %v1630, 0
        %v1635 = vsel %vm573, %v1632, 0
        %1637 = vmatprep.subr.mxu0 0.0
        %1638 = vmatpush1.xpose.msra.mxu0 %v1635
        %1639 = vmatprep.subr.mxu0 0.0
        %1640 = vmatpush1.xpose.msra.mxu0 0.0
        %1641 = vmatprep.subr.mxu0 0.0
        %1642 = vmatpush1.xpose.msra.mxu0 0.0
        %1643 = vmatprep.subr.mxu0 0.0
        %1644 = vmatpush1.xpose.msra.mxu0 0.0
        %1645 = vmatprep.subr.mxu0 0.0
        %1646 = vmatpush1.xpose.msra.mxu0 0.0
        %1647 = vmatprep.subr.mxu0 0.0
        %1648 = vmatpush1.xpose.msra.mxu0 0.0
        %1649 = vmatprep.subr.mxu0 0.0
        %1650 = vmatpush1.xpose.msra.mxu0 0.0
        %1651 = vmatprep.subr.mxu0 0.0
        %1652 = vmatpush1.xpose.msra.mxu0 0.0
        %1653 = vmatprep.subr.mxu0 0.0
        %1654 = vmatpush1.xpose.msra.mxu0 0.0
        %1655 = vmatprep.subr.mxu0 0.0
        %1656 = vmatpush1.xpose.msra.mxu0 0.0
        %1657 = vmatprep.subr.mxu0 0.0
        %1658 = vmatpush1.xpose.msra.mxu0 0.0
        %1659 = vmatprep.subr.mxu0 0.0
        %1660 = vmatpush1.xpose.msra.mxu0 0.0
        %1661 = vmatprep.subr.mxu0 0.0
        %1662 = vmatpush1.xpose.msra.mxu0 0.0
        %1663 = vmatprep.subr.mxu0 0.0
        %1664 = vmatpush1.xpose.msra.mxu0 0.0
        %1665 = vmatprep.subr.mxu0 0.0
        %1666 = vmatpush1.xpose.msra.mxu0 0.0
        %1667 = vmatprep.subr.mxu0 0.0
        %1668 = vmatpush1.xpose.msra.mxu0 0.0
        %1669 = vmatprep.subr.mxu0 0.0
        %1670 = vmatpush1.xpose.msra.mxu0 0.0
        %1671 = vmatprep.subr.mxu0 0.0
        %1672 = vmatpush1.xpose.msra.mxu0 0.0
        %1673 = vmatprep.subr.mxu0 0.0
        %1674 = vmatpush1.xpose.msra.mxu0 0.0
        %1675 = vmatprep.subr.mxu0 0.0
        %1676 = vmatpush1.xpose.msra.mxu0 0.0
        %1677 = vmatprep.subr.mxu0 0.0
        %1678 = vmatpush1.xpose.msra.mxu0 0.0
        %1679 = vmatprep.subr.mxu0 0.0
        %1680 = vmatpush1.xpose.msra.mxu0 0.0
        %1681 = vmatprep.subr.mxu0 0.0
        %1682 = vmatpush1.xpose.msra.mxu0 0.0
        %1683 = vmatprep.subr.mxu0 0.0
        %1684 = vmatpush1.xpose.msra.mxu0 0.0
        %1685 = vmatprep.subr.mxu0 0.0
        %1686 = vmatpush1.xpose.msra.mxu0 0.0
        %1687 = vmatprep.subr.mxu0 0.0
        %1688 = vmatpush1.xpose.msra.mxu0 0.0
        %1689 = vmatprep.subr.mxu0 0.0
        %1690 = vmatpush1.xpose.msra.mxu0 0.0
        %1691 = vmatprep.subr.mxu0 0.0
        %1692 = vmatpush1.xpose.msra.mxu0 0.0
        %1693 = vmatprep.subr.mxu0 0.0
        %1694 = vmatpush1.xpose.msra.mxu0 0.0
        %1695 = vmatprep.subr.mxu0 0.0
        %1696 = vmatpush1.xpose.msra.mxu0 0.0
        %1697 = vmatprep.subr.mxu0 0.0
        %1698 = vmatpush1.xpose.msra.mxu0 0.0
        %1699 = vmatprep.subr.mxu0 0.0
        %1700 = vmatpush1.xpose.msra.mxu0 0.0
        %1701 = vmatprep.mubr.f32.mxu0 0.0
        %1702 = vmatmul.mubr.f32.gmra.mrb[0].mxu0 %v1633
        %v1703 = vpop.f32.mrb[0].mxu0
        %v1704 = vadd.f32 0.0, %v1703
        %v1705 = vpop.f32.mrb[0].mxu0
        %1706 = vdwg.mxu0
        %v1707 = vsel %vm1536, %v1704, -inf
        %1708 = vmax.xlane.f32.xlu0 %v1707
        %v1709 = vpop.xlane.xlu0 %1708
        %v1710 = vsub.f32 %v1704, %v1709
        %v1711 = vmul.f32 %v1710, 1.442695
        %v1712 = vpow.pop %v1711
        %v1713 = vsel %vm1536, %v1712, 0.0
        %1714 = vadd.xlane.f32.xlu0 %v1713
        %v1715 = vpop.xlane.xlu0 %1714
        %v1716 = vrcp.pop %v1715
        %v1717 = vmul.f32 %v1712, %v1716
        %1718 = vrot.lane.b32.xlu0 %v1456, 88
        %v1719 = vpop.permute.xlu0 %1718
        %v1722 = vsel %vm573, %v1717, 0
        %1724 = vmatprep.subr.mxu0 0.0
        %1725 = vmatpush1.msra.mxu0 %v1719
        %1726 = vmatprep.subr.mxu0 0.0
        %1727 = vmatpush1.msra.mxu0 0.0
        %1728 = vmatprep.subr.mxu0 0.0
        %1729 = vmatpush1.msra.mxu0 0.0
        %1730 = vmatprep.subr.mxu0 0.0
        %1731 = vmatpush1.msra.mxu0 0.0
        %1732 = vmatprep.subr.mxu0 0.0
        %1733 = vmatpush1.msra.mxu0 0.0
        %1734 = vmatprep.subr.mxu0 0.0
        %1735 = vmatpush1.msra.mxu0 0.0
        %1736 = vmatprep.subr.mxu0 0.0
        %1737 = vmatpush1.msra.mxu0 0.0
        %1738 = vmatprep.subr.mxu0 0.0
        %1739 = vmatpush1.msra.mxu0 0.0
        %1740 = vmatprep.subr.mxu0 0.0
        %1741 = vmatpush1.msra.mxu0 0.0
        %1742 = vmatprep.subr.mxu0 0.0
        %1743 = vmatpush1.msra.mxu0 0.0
        %1744 = vmatprep.subr.mxu0 0.0
        %1745 = vmatpush1.msra.mxu0 0.0
        %1746 = vmatprep.subr.mxu0 0.0
        %1747 = vmatpush1.msra.mxu0 0.0
        %1748 = vmatprep.subr.mxu0 0.0
        %1749 = vmatpush1.msra.mxu0 0.0
        %1750 = vmatprep.subr.mxu0 0.0
        %1751 = vmatpush1.msra.mxu0 0.0
        %1752 = vmatprep.subr.mxu0 0.0
        %1753 = vmatpush1.msra.mxu0 0.0
        %1754 = vmatprep.subr.mxu0 0.0
        %1755 = vmatpush1.msra.mxu0 0.0
        %1756 = vmatprep.subr.mxu0 0.0
        %1757 = vmatpush1.msra.mxu0 0.0
        %1758 = vmatprep.subr.mxu0 0.0
        %1759 = vmatpush1.msra.mxu0 0.0
        %1760 = vmatprep.subr.mxu0 0.0
        %1761 = vmatpush1.msra.mxu0 0.0
        %1762 = vmatprep.subr.mxu0 0.0
        %1763 = vmatpush1.msra.mxu0 0.0
        %1764 = vmatprep.subr.mxu0 0.0
        %1765 = vmatpush1.msra.mxu0 0.0
        %1766 = vmatprep.subr.mxu0 0.0
        %1767 = vmatpush1.msra.mxu0 0.0
        %1768 = vmatprep.subr.mxu0 0.0
        %1769 = vmatpush1.msra.mxu0 0.0
        %1770 = vmatprep.subr.mxu0 0.0
        %1771 = vmatpush1.msra.mxu0 0.0
        %1772 = vmatprep.subr.mxu0 0.0
        %1773 = vmatpush1.msra.mxu0 0.0
        %1774 = vmatprep.subr.mxu0 0.0
        %1775 = vmatpush1.msra.mxu0 0.0
        %1776 = vmatprep.subr.mxu0 0.0
        %1777 = vmatpush1.msra.mxu0 0.0
        %1778 = vmatprep.subr.mxu0 0.0
        %1779 = vmatpush1.msra.mxu0 0.0
        %1780 = vmatprep.subr.mxu0 0.0
        %1781 = vmatpush1.msra.mxu0 0.0
        %1782 = vmatprep.subr.mxu0 0.0
        %1783 = vmatpush1.msra.mxu0 0.0
        %1784 = vmatprep.subr.mxu0 0.0
        %1785 = vmatpush1.msra.mxu0 0.0
        %1786 = vmatprep.subr.mxu0 0.0
        %1787 = vmatpush1.msra.mxu0 0.0
        %1788 = vmatprep.mubr.f32.mxu0 0.0
        %1789 = vmatmul.mubr.f32.gmra.mrb[0].mxu0 %v1722
        %v1790 = vpop.f32.mrb[0].mxu0
        %v1791 = vadd.f32 0.0, %v1790
        %v1792 = vpop.f32.mrb[0].mxu0
        %1793 = vdwg.mxu0
        %v1796 = vunpack.c.l.s4 1966171168
        %v1797 = vunpack.c.0.s8 %v1796
        %v1798 = vlaneseq
        %v1799 = vshrl.u32 %v1798, 7
        %v1800 = vsub.s32 %v1797, %v1799
        %v1801 = vrot.slane %v1791, %v1800
        %v1803 = vunpack.c.l.s4 1966171168
        %v1804 = vunpack.c.0.s8 %v1803
        %v1805 = vlaneseq
        %v1806 = vshrl.u32 %v1805, 7
        %v1807 = vsub.s32 %v1804, %v1806
        %v1808 = vrot.slane %v1801, %v1807
        %1809 = vrot.lane.b32.xlu0 %v1808, 8
        %v1810 = vpop.permute.xlu0 %1809
        %v1812 = vadd.f32 %v1459, %v1810
        %1813 = vrot.lane.b32.xlu0 %v1628, 112
        %v1814 = vpop.permute.xlu0 %1813
        %1815 = vrot.lane.b32.xlu0 %v1456, 112
        %v1816 = vpop.permute.xlu0 %1815
        %v1817 = vsel %vm573, %v1814, 0
        %v1819 = vsel %vm573, %v1816, 0
        %1821 = vmatprep.subr.mxu0 0.0
        %1822 = vmatpush1.xpose.msra.mxu0 %v1819
        %1823 = vmatprep.subr.mxu0 0.0
        %1824 = vmatpush1.xpose.msra.mxu0 0.0
        %1825 = vmatprep.subr.mxu0 0.0
        %1826 = vmatpush1.xpose.msra.mxu0 0.0
        %1827 = vmatprep.subr.mxu0 0.0
        %1828 = vmatpush1.xpose.msra.mxu0 0.0
        %1829 = vmatprep.subr.mxu0 0.0
        %1830 = vmatpush1.xpose.msra.mxu0 0.0
        %1831 = vmatprep.subr.mxu0 0.0
        %1832 = vmatpush1.xpose.msra.mxu0 0.0
        %1833 = vmatprep.subr.mxu0 0.0
        %1834 = vmatpush1.xpose.msra.mxu0 0.0
        %1835 = vmatprep.subr.mxu0 0.0
        %1836 = vmatpush1.xpose.msra.mxu0 0.0
        %1837 = vmatprep.subr.mxu0 0.0
        %1838 = vmatpush1.xpose.msra.mxu0 0.0
        %1839 = vmatprep.subr.mxu0 0.0
        %1840 = vmatpush1.xpose.msra.mxu0 0.0
        %1841 = vmatprep.subr.mxu0 0.0
        %1842 = vmatpush1.xpose.msra.mxu0 0.0
        %1843 = vmatprep.subr.mxu0 0.0
        %1844 = vmatpush1.xpose.msra.mxu0 0.0
        %1845 = vmatprep.subr.mxu0 0.0
        %1846 = vmatpush1.xpose.msra.mxu0 0.0
        %1847 = vmatprep.subr.mxu0 0.0
        %1848 = vmatpush1.xpose.msra.mxu0 0.0
        %1849 = vmatprep.subr.mxu0 0.0
        %1850 = vmatpush1.xpose.msra.mxu0 0.0
        %1851 = vmatprep.subr.mxu0 0.0
        %1852 = vmatpush1.xpose.msra.mxu0 0.0
        %1853 = vmatprep.subr.mxu0 0.0
        %1854 = vmatpush1.xpose.msra.mxu0 0.0
        %1855 = vmatprep.subr.mxu0 0.0
        %1856 = vmatpush1.xpose.msra.mxu0 0.0
        %1857 = vmatprep.subr.mxu0 0.0
        %1858 = vmatpush1.xpose.msra.mxu0 0.0
        %1859 = vmatprep.subr.mxu0 0.0
        %1860 = vmatpush1.xpose.msra.mxu0 0.0
        %1861 = vmatprep.subr.mxu0 0.0
        %1862 = vmatpush1.xpose.msra.mxu0 0.0
        %1863 = vmatprep.subr.mxu0 0.0
        %1864 = vmatpush1.xpose.msra.mxu0 0.0
        %1865 = vmatprep.subr.mxu0 0.0
        %1866 = vmatpush1.xpose.msra.mxu0 0.0
        %1867 = vmatprep.subr.mxu0 0.0
        %1868 = vmatpush1.xpose.msra.mxu0 0.0
        %1869 = vmatprep.subr.mxu0 0.0
        %1870 = vmatpush1.xpose.msra.mxu0 0.0
        %1871 = vmatprep.subr.mxu0 0.0
        %1872 = vmatpush1.xpose.msra.mxu0 0.0
        %1873 = vmatprep.subr.mxu0 0.0
        %1874 = vmatpush1.xpose.msra.mxu0 0.0
        %1875 = vmatprep.subr.mxu0 0.0
        %1876 = vmatpush1.xpose.msra.mxu0 0.0
        %1877 = vmatprep.subr.mxu0 0.0
        %1878 = vmatpush1.xpose.msra.mxu0 0.0
        %1879 = vmatprep.subr.mxu0 0.0
        %1880 = vmatpush1.xpose.msra.mxu0 0.0
        %1881 = vmatprep.subr.mxu0 0.0
        %1882 = vmatpush1.xpose.msra.mxu0 0.0
        %1883 = vmatprep.subr.mxu0 0.0
        %1884 = vmatpush1.xpose.msra.mxu0 0.0
        %1885 = vmatprep.mubr.f32.mxu0 0.0
        %1886 = vmatmul.mubr.f32.gmra.mrb[0].mxu0 %v1817
        %v1887 = vpop.f32.mrb[0].mxu0
        %v1888 = vadd.f32 0.0, %v1887
        %v1889 = vpop.f32.mrb[0].mxu0
        %1890 = vdwg.mxu0
        %v1891 = vsel %vm1536, %v1888, -inf
        %1892 = vmax.xlane.f32.xlu0 %v1891
        %v1893 = vpop.xlane.xlu0 %1892
        %v1894 = vsub.f32 %v1888, %v1893
        %v1895 = vmul.f32 %v1894, 1.442695
        %v1896 = vpow.pop %v1895
        %v1897 = vsel %vm1536, %v1896, 0.0
        %1898 = vadd.xlane.f32.xlu0 %v1897
        %v1899 = vpop.xlane.xlu0 %1898
        %v1900 = vrcp.pop %v1899
        %v1901 = vmul.f32 %v1896, %v1900
        %1902 = vrot.lane.b32.xlu0 %v1456, 80
        %v1903 = vpop.permute.xlu0 %1902
        %v1906 = vsel %vm573, %v1901, 0
        %1908 = vmatprep.subr.mxu0 0.0
        %1909 = vmatpush1.msra.mxu0 %v1903
        %1910 = vmatprep.subr.mxu0 0.0
        %1911 = vmatpush1.msra.mxu0 0.0
        %1912 = vmatprep.subr.mxu0 0.0
        %1913 = vmatpush1.msra.mxu0 0.0
        %1914 = vmatprep.subr.mxu0 0.0
        %1915 = vmatpush1.msra.mxu0 0.0
        %1916 = vmatprep.subr.mxu0 0.0
        %1917 = vmatpush1.msra.mxu0 0.0
        %1918 = vmatprep.subr.mxu0 0.0
        %1919 = vmatpush1.msra.mxu0 0.0
        %1920 = vmatprep.subr.mxu0 0.0
        %1921 = vmatpush1.msra.mxu0 0.0
        %1922 = vmatprep.subr.mxu0 0.0
        %1923 = vmatpush1.msra.mxu0 0.0
        %1924 = vmatprep.subr.mxu0 0.0
        %1925 = vmatpush1.msra.mxu0 0.0
        %1926 = vmatprep.subr.mxu0 0.0
        %1927 = vmatpush1.msra.mxu0 0.0
        %1928 = vmatprep.subr.mxu0 0.0
        %1929 = vmatpush1.msra.mxu0 0.0
        %1930 = vmatprep.subr.mxu0 0.0
        %1931 = vmatpush1.msra.mxu0 0.0
        %1932 = vmatprep.subr.mxu0 0.0
        %1933 = vmatpush1.msra.mxu0 0.0
        %1934 = vmatprep.subr.mxu0 0.0
        %1935 = vmatpush1.msra.mxu0 0.0
        %1936 = vmatprep.subr.mxu0 0.0
        %1937 = vmatpush1.msra.mxu0 0.0
        %1938 = vmatprep.subr.mxu0 0.0
        %1939 = vmatpush1.msra.mxu0 0.0
        %1940 = vmatprep.subr.mxu0 0.0
        %1941 = vmatpush1.msra.mxu0 0.0
        %1942 = vmatprep.subr.mxu0 0.0
        %1943 = vmatpush1.msra.mxu0 0.0
        %1944 = vmatprep.subr.mxu0 0.0
        %1945 = vmatpush1.msra.mxu0 0.0
        %1946 = vmatprep.subr.mxu0 0.0
        %1947 = vmatpush1.msra.mxu0 0.0
        %1948 = vmatprep.subr.mxu0 0.0
        %1949 = vmatpush1.msra.mxu0 0.0
        %1950 = vmatprep.subr.mxu0 0.0
        %1951 = vmatpush1.msra.mxu0 0.0
        %1952 = vmatprep.subr.mxu0 0.0
        %1953 = vmatpush1.msra.mxu0 0.0
        %1954 = vmatprep.subr.mxu0 0.0
        %1955 = vmatpush1.msra.mxu0 0.0
        %1956 = vmatprep.subr.mxu0 0.0
        %1957 = vmatpush1.msra.mxu0 0.0
        %1958 = vmatprep.subr.mxu0 0.0
        %1959 = vmatpush1.msra.mxu0 0.0
        %1960 = vmatprep.subr.mxu0 0.0
        %1961 = vmatpush1.msra.mxu0 0.0
        %1962 = vmatprep.subr.mxu0 0.0
        %1963 = vmatpush1.msra.mxu0 0.0
        %1964 = vmatprep.subr.mxu0 0.0
        %1965 = vmatpush1.msra.mxu0 0.0
        %1966 = vmatprep.subr.mxu0 0.0
        %1967 = vmatpush1.msra.mxu0 0.0
        %1968 = vmatprep.subr.mxu0 0.0
        %1969 = vmatpush1.msra.mxu0 0.0
        %1970 = vmatprep.subr.mxu0 0.0
        %1971 = vmatpush1.msra.mxu0 0.0
        %1972 = vmatprep.mubr.f32.mxu0 0.0
        %1973 = vmatmul.mubr.f32.gmra.mrb[0].mxu0 %v1906
        %v1974 = vpop.f32.mrb[0].mxu0
        %v1975 = vadd.f32 0.0, %v1974
        %v1976 = vpop.f32.mrb[0].mxu0
        %1977 = vdwg.mxu0
        %v1980 = vunpack.c.l.s4 1966171168
        %v1981 = vunpack.c.0.s8 %v1980
        %v1982 = vlaneseq
        %v1983 = vshrl.u32 %v1982, 7
        %v1984 = vsub.s32 %v1981, %v1983
        %v1985 = vrot.slane %v1975, %v1984
        %v1987 = vunpack.c.l.s4 1966171168
        %v1988 = vunpack.c.0.s8 %v1987
        %v1989 = vlaneseq
        %v1990 = vshrl.u32 %v1989, 7
        %v1991 = vsub.s32 %v1988, %v1990
        %v1992 = vrot.slane %v1985, %v1991
        %1993 = vrot.lane.b32.xlu0 %v1992, 16
        %v1994 = vpop.permute.xlu0 %1993
        %v1996 = vadd.f32 %v1459, %v1994
        %1997 = vrot.lane.b32.xlu0 %v1628, 104
        %v1998 = vpop.permute.xlu0 %1997
        %1999 = vrot.lane.b32.xlu0 %v1456, 104
        %v2000 = vpop.permute.xlu0 %1999
        %v2001 = vsel %vm573, %v1998, 0
        %v2003 = vsel %vm573, %v2000, 0
        %2005 = vmatprep.subr.mxu0 0.0
        %2006 = vmatpush1.xpose.msra.mxu0 %v2003
        %2007 = vmatprep.subr.mxu0 0.0
        %2008 = vmatpush1.xpose.msra.mxu0 0.0
        %2009 = vmatprep.subr.mxu0 0.0
        %2010 = vmatpush1.xpose.msra.mxu0 0.0
        %2011 = vmatprep.subr.mxu0 0.0
        %2012 = vmatpush1.xpose.msra.mxu0 0.0
        %2013 = vmatprep.subr.mxu0 0.0
        %2014 = vmatpush1.xpose.msra.mxu0 0.0
        %2015 = vmatprep.subr.mxu0 0.0
        %2016 = vmatpush1.xpose.msra.mxu0 0.0
        %2017 = vmatprep.subr.mxu0 0.0
        %2018 = vmatpush1.xpose.msra.mxu0 0.0
        %2019 = vmatprep.subr.mxu0 0.0
        %2020 = vmatpush1.xpose.msra.mxu0 0.0
        %2021 = vmatprep.subr.mxu0 0.0
        %2022 = vmatpush1.xpose.msra.mxu0 0.0
        %2023 = vmatprep.subr.mxu0 0.0
        %2024 = vmatpush1.xpose.msra.mxu0 0.0
        %2025 = vmatprep.subr.mxu0 0.0
        %2026 = vmatpush1.xpose.msra.mxu0 0.0
        %2027 = vmatprep.subr.mxu0 0.0
        %2028 = vmatpush1.xpose.msra.mxu0 0.0
        %2029 = vmatprep.subr.mxu0 0.0
        %2030 = vmatpush1.xpose.msra.mxu0 0.0
        %2031 = vmatprep.subr.mxu0 0.0
        %2032 = vmatpush1.xpose.msra.mxu0 0.0
        %2033 = vmatprep.subr.mxu0 0.0
        %2034 = vmatpush1.xpose.msra.mxu0 0.0
        %2035 = vmatprep.subr.mxu0 0.0
        %2036 = vmatpush1.xpose.msra.mxu0 0.0
        %2037 = vmatprep.subr.mxu0 0.0
        %2038 = vmatpush1.xpose.msra.mxu0 0.0
        %2039 = vmatprep.subr.mxu0 0.0
        %2040 = vmatpush1.xpose.msra.mxu0 0.0
        %2041 = vmatprep.subr.mxu0 0.0
        %2042 = vmatpush1.xpose.msra.mxu0 0.0
        %2043 = vmatprep.subr.mxu0 0.0
        %2044 = vmatpush1.xpose.msra.mxu0 0.0
        %2045 = vmatprep.subr.mxu0 0.0
        %2046 = vmatpush1.xpose.msra.mxu0 0.0
        %2047 = vmatprep.subr.mxu0 0.0
        %2048 = vmatpush1.xpose.msra.mxu0 0.0
        %2049 = vmatprep.subr.mxu0 0.0
        %2050 = vmatpush1.xpose.msra.mxu0 0.0
        %2051 = vmatprep.subr.mxu0 0.0
        %2052 = vmatpush1.xpose.msra.mxu0 0.0
        %2053 = vmatprep.subr.mxu0 0.0
        %2054 = vmatpush1.xpose.msra.mxu0 0.0
        %2055 = vmatprep.subr.mxu0 0.0
        %2056 = vmatpush1.xpose.msra.mxu0 0.0
        %2057 = vmatprep.subr.mxu0 0.0
        %2058 = vmatpush1.xpose.msra.mxu0 0.0
        %2059 = vmatprep.subr.mxu0 0.0
        %2060 = vmatpush1.xpose.msra.mxu0 0.0
        %2061 = vmatprep.subr.mxu0 0.0
        %2062 = vmatpush1.xpose.msra.mxu0 0.0
        %2063 = vmatprep.subr.mxu0 0.0
        %2064 = vmatpush1.xpose.msra.mxu0 0.0
        %2065 = vmatprep.subr.mxu0 0.0
        %2066 = vmatpush1.xpose.msra.mxu0 0.0
        %2067 = vmatprep.subr.mxu0 0.0
        %2068 = vmatpush1.xpose.msra.mxu0 0.0
        %2069 = vmatprep.mubr.f32.mxu0 0.0
        %2070 = vmatmul.mubr.f32.gmra.mrb[0].mxu0 %v2001
        %v2071 = vpop.f32.mrb[0].mxu0
        %v2072 = vadd.f32 0.0, %v2071
        %v2073 = vpop.f32.mrb[0].mxu0
        %2074 = vdwg.mxu0
        %v2075 = vsel %vm1536, %v2072, -inf
        %2076 = vmax.xlane.f32.xlu0 %v2075
        %v2077 = vpop.xlane.xlu0 %2076
        %v2078 = vsub.f32 %v2072, %v2077
        %v2079 = vmul.f32 %v2078, 1.442695
        %v2080 = vpow.pop %v2079
        %v2081 = vsel %vm1536, %v2080, 0.0
        %2082 = vadd.xlane.f32.xlu0 %v2081
        %v2083 = vpop.xlane.xlu0 %2082
        %v2084 = vrcp.pop %v2083
        %v2085 = vmul.f32 %v2080, %v2084
        %2086 = vrot.lane.b32.xlu0 %v1456, 72
        %v2087 = vpop.permute.xlu0 %2086
        %v2090 = vsel %vm573, %v2085, 0
        %2092 = vmatprep.subr.mxu0 0.0
        %2093 = vmatpush1.msra.mxu0 %v2087
        %2094 = vmatprep.subr.mxu0 0.0
        %2095 = vmatpush1.msra.mxu0 0.0
        %2096 = vmatprep.subr.mxu0 0.0
        %2097 = vmatpush1.msra.mxu0 0.0
        %2098 = vmatprep.subr.mxu0 0.0
        %2099 = vmatpush1.msra.mxu0 0.0
        %2100 = vmatprep.subr.mxu0 0.0
        %2101 = vmatpush1.msra.mxu0 0.0
        %2102 = vmatprep.subr.mxu0 0.0
        %2103 = vmatpush1.msra.mxu0 0.0
        %2104 = vmatprep.subr.mxu0 0.0
        %2105 = vmatpush1.msra.mxu0 0.0
        %2106 = vmatprep.subr.mxu0 0.0
        %2107 = vmatpush1.msra.mxu0 0.0
        %2108 = vmatprep.subr.mxu0 0.0
        %2109 = vmatpush1.msra.mxu0 0.0
        %2110 = vmatprep.subr.mxu0 0.0
        %2111 = vmatpush1.msra.mxu0 0.0
        %2112 = vmatprep.subr.mxu0 0.0
        %2113 = vmatpush1.msra.mxu0 0.0
        %2114 = vmatprep.subr.mxu0 0.0
        %2115 = vmatpush1.msra.mxu0 0.0
        %2116 = vmatprep.subr.mxu0 0.0
        %2117 = vmatpush1.msra.mxu0 0.0
        %2118 = vmatprep.subr.mxu0 0.0
        %2119 = vmatpush1.msra.mxu0 0.0
        %2120 = vmatprep.subr.mxu0 0.0
        %2121 = vmatpush1.msra.mxu0 0.0
        %2122 = vmatprep.subr.mxu0 0.0
        %2123 = vmatpush1.msra.mxu0 0.0
        %2124 = vmatprep.subr.mxu0 0.0
        %2125 = vmatpush1.msra.mxu0 0.0
        %2126 = vmatprep.subr.mxu0 0.0
        %2127 = vmatpush1.msra.mxu0 0.0
        %2128 = vmatprep.subr.mxu0 0.0
        %2129 = vmatpush1.msra.mxu0 0.0
        %2130 = vmatprep.subr.mxu0 0.0
        %2131 = vmatpush1.msra.mxu0 0.0
        %2132 = vmatprep.subr.mxu0 0.0
        %2133 = vmatpush1.msra.mxu0 0.0
        %2134 = vmatprep.subr.mxu0 0.0
        %2135 = vmatpush1.msra.mxu0 0.0
        %2136 = vmatprep.subr.mxu0 0.0
        %2137 = vmatpush1.msra.mxu0 0.0
        %2138 = vmatprep.subr.mxu0 0.0
        %2139 = vmatpush1.msra.mxu0 0.0
        %2140 = vmatprep.subr.mxu0 0.0
        %2141 = vmatpush1.msra.mxu0 0.0
        %2142 = vmatprep.subr.mxu0 0.0
        %2143 = vmatpush1.msra.mxu0 0.0
        %2144 = vmatprep.subr.mxu0 0.0
        %2145 = vmatpush1.msra.mxu0 0.0
        %2146 = vmatprep.subr.mxu0 0.0
        %2147 = vmatpush1.msra.mxu0 0.0
        %2148 = vmatprep.subr.mxu0 0.0
        %2149 = vmatpush1.msra.mxu0 0.0
        %2150 = vmatprep.subr.mxu0 0.0
        %2151 = vmatpush1.msra.mxu0 0.0
        %2152 = vmatprep.subr.mxu0 0.0
        %2153 = vmatpush1.msra.mxu0 0.0
        %2154 = vmatprep.subr.mxu0 0.0
        %2155 = vmatpush1.msra.mxu0 0.0
        %2156 = vmatprep.mubr.f32.mxu0 0.0
        %2157 = vmatmul.mubr.f32.gmra.mrb[0].mxu0 %v2090
        %v2158 = vpop.f32.mrb[0].mxu0
        %v2159 = vadd.f32 0.0, %v2158
        %v2160 = vpop.f32.mrb[0].mxu0
        %2161 = vdwg.mxu0
        %v2164 = vunpack.c.l.s4 1966171168
        %v2165 = vunpack.c.0.s8 %v2164
        %v2166 = vlaneseq
        %v2167 = vshrl.u32 %v2166, 7
        %v2168 = vsub.s32 %v2165, %v2167
        %v2169 = vrot.slane %v2159, %v2168
        %v2171 = vunpack.c.l.s4 1966171168
        %v2172 = vunpack.c.0.s8 %v2171
        %v2173 = vlaneseq
        %v2174 = vshrl.u32 %v2173, 7
        %v2175 = vsub.s32 %v2172, %v2174
        %v2176 = vrot.slane %v2169, %v2175
        %2177 = vrot.lane.b32.xlu0 %v2176, 24
        %v2178 = vpop.permute.xlu0 %2177
        %v2180 = vadd.f32 %v1459, %v2178
        %v2181 = vsel %vm573, %v1624, %v1812
        %v2182 = vsel %vm496, %v2181, %v1996
        %v2183 = vsel %vm1248, %v2182, %v2180
        %v2184 = vld [vmem:[#allocation10] sm:$0xff]
        %v2185 = vld [vmem:[#allocation10 + $0x8] sm:$0xff]
        %v2186 = vld [vmem:[#allocation10 + $0x10] sm:$0xff]
        %v2187 = vld [vmem:[#allocation10 + $0x18] sm:$0xff]
        %v2188 = vld [vmem:[%s9] sm:$0x1]
        %vm2189 = vcmask 253952
        %v2190 = vsel %vm2189, %v2183, 0.0
        %2191 = vadd.xlane.f32.xlu0 %v2190
        %v2192 = vpop.xlane.xlu0 %2191
        %v2193 = vmul.f32 %v2192, %v1259
        %v2194 = vsub.f32 %v2183, %v2193
        %v2195 = vmul.f32 %v2194, %v2194
        %v2196 = vsel %vm2189, %v2195, 0.0
        %2197 = vadd.xlane.f32.xlu0 %v2196
        %v2198 = vpop.xlane.xlu0 %2197
        %v2199 = vmul.f32 %v2198, %v1259
        %v2200 = vadd.f32 %v2199, 1e-05
        %v2201 = vrsqrt.pop %v2200
        %v2202 = vmul.f32 %v2194, %v2201
        %v2204 = vsel %vm1255, %v2202, 0
        %2206 = vmatprep.subr.mxu0 0.0
        %2207 = vmatpush1.msra.mxu0 %v2184
        %2208 = vmatprep.subr.mxu0 0.0
        %2209 = vmatpush1.msra.mxu0 %v2185
        %2210 = vmatprep.subr.mxu0 0.0
        %2211 = vmatpush1.msra.mxu0 %v2186
        %2212 = vmatprep.subr.mxu0 0.0
        %2213 = vmatpush1.msra.mxu0 %v2187
        %2214 = vmatprep.subr.mxu0 0.0
        %2215 = vmatpush1.msra.mxu0 0.0
        %2216 = vmatprep.subr.mxu0 0.0
        %2217 = vmatpush1.msra.mxu0 0.0
        %2218 = vmatprep.subr.mxu0 0.0
        %2219 = vmatpush1.msra.mxu0 0.0
        %2220 = vmatprep.subr.mxu0 0.0
        %2221 = vmatpush1.msra.mxu0 0.0
        %2222 = vmatprep.subr.mxu0 0.0
        %2223 = vmatpush1.msra.mxu0 0.0
        %2224 = vmatprep.subr.mxu0 0.0
        %2225 = vmatpush1.msra.mxu0 0.0
        %2226 = vmatprep.subr.mxu0 0.0
        %2227 = vmatpush1.msra.mxu0 0.0
        %2228 = vmatprep.subr.mxu0 0.0
        %2229 = vmatpush1.msra.mxu0 0.0
        %2230 = vmatprep.subr.mxu0 0.0
        %2231 = vmatpush1.msra.mxu0 0.0
        %2232 = vmatprep.subr.mxu0 0.0
        %2233 = vmatpush1.msra.mxu0 0.0
        %2234 = vmatprep.subr.mxu0 0.0
        %2235 = vmatpush1.msra.mxu0 0.0
        %2236 = vmatprep.subr.mxu0 0.0
        %2237 = vmatpush1.msra.mxu0 0.0
        %2238 = vmatprep.subr.mxu0 0.0
        %2239 = vmatpush1.msra.mxu0 0.0
        %2240 = vmatprep.subr.mxu0 0.0
        %2241 = vmatpush1.msra.mxu0 0.0
        %2242 = vmatprep.subr.mxu0 0.0
        %2243 = vmatpush1.msra.mxu0 0.0
        %2244 = vmatprep.subr.mxu0 0.0
        %2245 = vmatpush1.msra.mxu0 0.0
        %2246 = vmatprep.subr.mxu0 0.0
        %2247 = vmatpush1.msra.mxu0 0.0
        %2248 = vmatprep.subr.mxu0 0.0
        %2249 = vmatpush1.msra.mxu0 0.0
        %2250 = vmatprep.subr.mxu0 0.0
        %2251 = vmatpush1.msra.mxu0 0.0
        %2252 = vmatprep.subr.mxu0 0.0
        %2253 = vmatpush1.msra.mxu0 0.0
        %2254 = vmatprep.subr.mxu0 0.0
        %2255 = vmatpush1.msra.mxu0 0.0
        %2256 = vmatprep.subr.mxu0 0.0
        %2257 = vmatpush1.msra.mxu0 0.0
        %2258 = vmatprep.subr.mxu0 0.0
        %2259 = vmatpush1.msra.mxu0 0.0
        %2260 = vmatprep.subr.mxu0 0.0
        %2261 = vmatpush1.msra.mxu0 0.0
        %2262 = vmatprep.subr.mxu0 0.0
        %2263 = vmatpush1.msra.mxu0 0.0
        %2264 = vmatprep.subr.mxu0 0.0
        %2265 = vmatpush1.msra.mxu0 0.0
        %2266 = vmatprep.subr.mxu0 0.0
        %2267 = vmatpush1.msra.mxu0 0.0
        %2268 = vmatprep.subr.mxu0 0.0
        %2269 = vmatpush1.msra.mxu0 0.0
        %2270 = vmatprep.mubr.f32.mxu0 0.0
        %2271 = vmatmul.mubr.f32.gmra.mrb[0].mxu0 %v2204
        %v2272 = vpop.f32.mrb[0].mxu0
        %v2273 = vadd.f32 %v2188, %v2272
        %v2274 = vpop.f32.mrb[0].mxu0
        %2275 = vdwg.mxu0
        %v2276 = vxor.u32 %v2273, 2147483648
        %v2277 = vmul.f32 %v2276, 1.442695
        %v2278 = vpow.pop %v2277
        %v2279 = vadd.f32 %v2278, 1.0
        %v2280 = vrcp.pop %v2279
        %v2281 = vmul.f32 1.0, %v2280
        %v2282 = vadd.f32 %v2202, %v2281
        %v2283 = vsel %vm2189, %v2282, 0.0
        %2284 = vadd.xlane.f32.xlu0 %v2283
        %v2285 = vpop.xlane.xlu0 %2284
        %v2286 = vmul.f32 %v2285, %v1259
        %v2287 = vsub.f32 %v2282, %v2286
        %v2288 = vmul.f32 %v2287, %v2287
        %v2289 = vsel %vm2189, %v2288, 0.0
        %2290 = vadd.xlane.f32.xlu0 %v2289
        %v2291 = vpop.xlane.xlu0 %2290
        %v2292 = vmul.f32 %v2291, %v1259
        %v2293 = vadd.f32 %v2292, 1e-05
        %v2294 = vrsqrt.pop %v2293
        %v2295 = vmul.f32 %v2287, %v2294
        %v2296 = vld [vmem:[%s10] sm:$0xff]
        %v2297 = vld [vmem:[%s10 + $0x8] sm:$0xff]
        %v2298 = vld [vmem:[%s10 + $0x10] sm:$0xff]
        %v2299 = vld [vmem:[%s10 + $0x18] sm:$0xff]
        %v2300 = vld [vmem:[%s11] sm:$0x1]
        %v2302 = vsel %vm1255, %v2295, 0
        %2304 = vmatprep.subr.mxu0 0.0
        %2305 = vmatpush1.msra.mxu0 %v2296
        %2306 = vmatprep.subr.mxu0 0.0
        %2307 = vmatpush1.msra.mxu0 %v2297
        %2308 = vmatprep.subr.mxu0 0.0
        %2309 = vmatpush1.msra.mxu0 %v2298
        %2310 = vmatprep.subr.mxu0 0.0
        %2311 = vmatpush1.msra.mxu0 %v2299
        %2312 = vmatprep.subr.mxu0 0.0
        %2313 = vmatpush1.msra.mxu0 0.0
        %2314 = vmatprep.subr.mxu0 0.0
        %2315 = vmatpush1.msra.mxu0 0.0
        %2316 = vmatprep.subr.mxu0 0.0
        %2317 = vmatpush1.msra.mxu0 0.0
        %2318 = vmatprep.subr.mxu0 0.0
        %2319 = vmatpush1.msra.mxu0 0.0
        %2320 = vmatprep.subr.mxu0 0.0
        %2321 = vmatpush1.msra.mxu0 0.0
        %2322 = vmatprep.subr.mxu0 0.0
        %2323 = vmatpush1.msra.mxu0 0.0
        %2324 = vmatprep.subr.mxu0 0.0
        %2325 = vmatpush1.msra.mxu0 0.0
        %2326 = vmatprep.subr.mxu0 0.0
        %2327 = vmatpush1.msra.mxu0 0.0
        %2328 = vmatprep.subr.mxu0 0.0
        %2329 = vmatpush1.msra.mxu0 0.0
        %2330 = vmatprep.subr.mxu0 0.0
        %2331 = vmatpush1.msra.mxu0 0.0
        %2332 = vmatprep.subr.mxu0 0.0
        %2333 = vmatpush1.msra.mxu0 0.0
        %2334 = vmatprep.subr.mxu0 0.0
        %2335 = vmatpush1.msra.mxu0 0.0
        %2336 = vmatprep.subr.mxu0 0.0
        %2337 = vmatpush1.msra.mxu0 0.0
        %2338 = vmatprep.subr.mxu0 0.0
        %2339 = vmatpush1.msra.mxu0 0.0
        %2340 = vmatprep.subr.mxu0 0.0
        %2341 = vmatpush1.msra.mxu0 0.0
        %2342 = vmatprep.subr.mxu0 0.0
        %2343 = vmatpush1.msra.mxu0 0.0
        %2344 = vmatprep.subr.mxu0 0.0
        %2345 = vmatpush1.msra.mxu0 0.0
        %2346 = vmatprep.subr.mxu0 0.0
        %2347 = vmatpush1.msra.mxu0 0.0
        %2348 = vmatprep.subr.mxu0 0.0
        %2349 = vmatpush1.msra.mxu0 0.0
        %2350 = vmatprep.subr.mxu0 0.0
        %2351 = vmatpush1.msra.mxu0 0.0
        %2352 = vmatprep.subr.mxu0 0.0
        %2353 = vmatpush1.msra.mxu0 0.0
        %2354 = vmatprep.subr.mxu0 0.0
        %2355 = vmatpush1.msra.mxu0 0.0
        %2356 = vmatprep.subr.mxu0 0.0
        %2357 = vmatpush1.msra.mxu0 0.0
        %2358 = vmatprep.subr.mxu0 0.0
        %2359 = vmatpush1.msra.mxu0 0.0
        %2360 = vmatprep.subr.mxu0 0.0
        %2361 = vmatpush1.msra.mxu0 0.0
        %2362 = vmatprep.subr.mxu0 0.0
        %2363 = vmatpush1.msra.mxu0 0.0
        %2364 = vmatprep.subr.mxu0 0.0
        %2365 = vmatpush1.msra.mxu0 0.0
        %2366 = vmatprep.subr.mxu0 0.0
        %2367 = vmatpush1.msra.mxu0 0.0
        %2368 = vmatprep.mubr.f32.mxu0 0.0
        %2369 = vmatmul.mubr.f32.gmra.mrb[0].mxu0 %v2302
        %v2370 = vpop.f32.mrb[0].mxu0
        %v2371 = vadd.f32 %v2300, %v2370
        %v2372 = vpop.f32.mrb[0].mxu0
        %2373 = vdwg.mxu0
        %v2374 = vxor.u32 %v2371, 2147483648
        %v2375 = vmul.f32 %v2374, 1.442695
        %v2376 = vpow.pop %v2375
        %v2377 = vadd.f32 %v2376, 1.0
        %v2378 = vrcp.pop %v2377
        %v2379 = vmul.f32 1.0, %v2378
        %2380 = vst [vmem:[%s485] sm:$0x1] %v2379
        %s2381 = sand.u32 %s296, 1
        %s2382 = scalar_lea.sflag [#allocation4], %s2381
        %s2383 = sand.u32 %s296, 1
        %s2384 = scalar_lea.vmem [#allocation11], %s2383
        // Predicated region
        $region89: #{tpu_custom_call.1} parent=67 // pred_check
          %p2385 = pneg %p306
        $region90: #{tpu_custom_call.1} parent=67 // pred_check_branch
          %2387 = sbr.rel (%p2385) target = $region92
        $region91: #{tpu_custom_call.1} parent=67 // pred_region
          %s2389 = ssub.s32 16, 16
          %2390 = vsyncadd %s2382, %s2389
          %s2391 = smul.addr %s31, 16
          %s2392 = scalar_lea.hbm %s12, %s2391
          %s2394 = sshll.u32 %s2384, 4
          %s2395 = int_to_ptr.vmem [resolvable:$true] %s2394
          %2397 = dma.vmem_to_hbm [thread:$0]  %s2395, 16, %s2392, %s2382
        $region92: #{tpu_custom_call.1} parent=67 // pred_fallthru
          _
      $region68: #{tpu_custom_call.1} parent=5 // pred_fallthru
        _
      %p2398 = scmp.le.s32.totalorder 2, %s26
      // Predicated region
      $region93: #{tpu_custom_call.1} parent=5 // pred_check
        %p2399 = pneg %p2398
      $region94: #{tpu_custom_call.1} parent=5 // pred_check_branch
        %2401 = sbr.rel (%p2399) target = $region96
      $region95: #{tpu_custom_call.1} parent=5 // pred_region
        %s2402 = ssub.s32 %s26, 2
        // Predicated region
        $region97: #{tpu_custom_call.1} parent=95 // pred_check
          %p2403 = pneg %p312
        $region98: #{tpu_custom_call.1} parent=95 // pred_check_branch
          %2405 = sbr.rel (%p2403) target = $region100
        $region99: #{tpu_custom_call.1} parent=95 // pred_region
          %s2406 = sand.u32 %s297, 1
          %s2407 = scalar_lea.sflag [#allocation4], %s2406
          %s2408 = sand.u32 %s297, 1
          %s2409 = scalar_lea.vmem [#allocation11], %s2408
          %2410 = dma.done %s2407, 16
        $region100: #{tpu_custom_call.1} parent=95 // pred_fallthru
          _
      $region96: #{tpu_custom_call.1} parent=5 // pred_fallthru
        _
    $region6: #{tpu_custom_call.1} parent=1 // loop_footer
      %s30 = sadd.s32 1, %s26
    $region7: #{tpu_custom_call.1} parent=1 // loop_footer_branch
      %25 = sbr.rel target = $region3
    $region8: #{tpu_custom_call.1} parent=1 // loop_exit
      _
    %2411 = vsyncpa [#allocation3], 1
    %s2412 = scalar_lea.sflag [#allocation3], 1
    %2413 = vsyncpa %s2412, 1
    %2414 = vsyncpa [#allocation6], 1
    %2415 = vsyncpa [#allocation9], 1
    %2416 = vsyncpa [#allocation4], 1
    %s2417 = scalar_lea.sflag [#allocation4], 1
    %2418 = vsyncpa %s2417, 1

</llo_original>
